<compile_context>
chip_gen: v7x
topology: tpu7x:2x2x1
jax: 0.10.0
libtpu: 0.0.40
codegen_flags: <defaults>
</compile_context>

<pallas_src>
import functools
import math

import jax
import jax.numpy as jnp
from jax.experimental import pallas as pl
from jax.experimental.pallas import tpu as pltpu

# ----------------------------- model config (small) -----------------------------
HIDDEN = 32
NUM_HEADS = 2
HEAD_DIM = HIDDEN // NUM_HEADS
INTERMEDIATE = 64
NUM_LAYERS = 2
VOCAB = 100
TYPE_VOCAB = 2
MAX_POS = 16
NUM_LABELS = 9
LN_EPS = 1e-12
HEAD_PAD = 128            # lane-dense width for the classifier / response outputs

BATCH = 2
SEQ = 8


# ----------------------------- in-kernel helpers ---------------------------------
def _layernorm(x, g, b):
    mu = jnp.mean(x, axis=-1, keepdims=True)
    var = jnp.mean((x - mu) * (x - mu), axis=-1, keepdims=True)
    return (x - mu) * jax.lax.rsqrt(var + LN_EPS) * g + b


def _mm(a, w):
    # MXU matmul: bf16 operands, f32 accumulation.
    return jax.lax.dot_general(
        a.astype(jnp.bfloat16), w.astype(jnp.bfloat16),
        (((1,), (0,)), ((), ())),
        preferred_element_type=jnp.float32)


def _mm_nt(a, b):
    # a:[M,D] @ b:[N,D]^T -> [M,N] (contract last dim of both; trans_b on the MXU).
    return jax.lax.dot_general(
        a.astype(jnp.bfloat16), b.astype(jnp.bfloat16),
        (((1,), (1,)), ((), ())),
        preferred_element_type=jnp.float32)


# ----------------------------- the single fused kernel ---------------------------
def _fused_forward_kernel(
    # inputs (one batch element per grid step; weights broadcast)
    emb_ref, mask_ref, eg_ref, eb_ref,
    wqkv_ref, bqkv_ref, wo_ref, bo_ref, l1g_ref, l1b_ref,
    wf1_ref, bf1_ref, wf2_ref, bf2_ref, l2g_ref, l2b_ref,
    wp_ref, bp_ref, wc_ref, bc_ref, wr1_ref, br1_ref, wr2_ref, br2_ref,
    # outputs
    hs_ref, logits_ref, resp_ref,
    *, num_heads):
    S, H = emb_ref.shape[1], emb_ref.shape[2]
    L = wqkv_ref.shape[0]
    Dh = wqkv_ref.shape[-1]
    scale = 1.0 / math.sqrt(Dh)

    mask = mask_ref[0]                                     # [1, S] additive mask, f32

    # --- embedding LayerNorm ---
    h = _layernorm(emb_ref[0], eg_ref[...], eb_ref[...])   # [S, H] f32
    hs_ref[0, 0] = h.astype(hs_ref.dtype)

    # --- encoder layers (static unroll; switch to lax.fori_loop if NUM_LAYERS grows) ---
    for l in range(L):
        # Per-head Q/K/V + per-head output projection; heads only ever index
        # leading ref dims, so no lane-dimension slicing / XLU shuffles and no
        # context scratch: sum_h ctx_h @ Wo[h] == concat(ctx) @ Wo.
        attn = bo_ref[l]                                    # [1, H], broadcasts on first add
        for hd in range(num_heads):
            q = (_mm(h, wqkv_ref[l, 0, hd]) + bqkv_ref[l, 0, hd]) * scale   # [S, Dh]
            k = _mm(h, wqkv_ref[l, 1, hd]) + bqkv_ref[l, 1, hd]
            v = _mm(h, wqkv_ref[l, 2, hd]) + bqkv_ref[l, 2, hd]
            s = _mm_nt(q, k) + mask                         # [S, S]
            s = s - jnp.max(s, axis=-1, keepdims=True)
            p = jnp.exp(s)
            p = p * pl.reciprocal(jnp.sum(p, axis=-1, keepdims=True), approx=True)
            ctx = _mm(p, v)                                 # [S, Dh]
            attn = attn + _mm(ctx, wo_ref[l, hd])           # [S, H]

        h1 = _layernorm(attn + h, l1g_ref[l], l1b_ref[l])

        ff = jax.nn.gelu(_mm(h1, wf1_ref[l]) + bf1_ref[l], approximate=True)
        ff = _mm(ff, wf2_ref[l]) + bf2_ref[l]
        h = _layernorm(ff + h1, l2g_ref[l], l2b_ref[l])
        hs_ref[0, l + 1] = h.astype(hs_ref.dtype)

    # --- pooler + classifier + response generator (dropout = identity) ---
    cls = h[0:1, :]                                         # [CLS] token row
    pooled = jnp.tanh(_mm(cls, wp_ref[...]) + bp_ref[...])  # [1, H]
    # classifier / resp2 weights are lane-padded to 128 in the wrapper, so these
    # stores are full-lane (no masked vst.msk on the serial tail).
    logits_ref[0] = (_mm(pooled, wc_ref[...]) + bc_ref[...]).astype(logits_ref.dtype)
    r = jnp.maximum(_mm(pooled, wr1_ref[...]) + br1_ref[...], 0.0)
    resp_ref[0] = (_mm(r, wr2_ref[...]) + br2_ref[...]).astype(resp_ref.dtype)


def _bcast_spec(x):
    nd = x.ndim
    return pl.BlockSpec(x.shape, lambda b, nd=nd: (0,) * nd)


# ----------------------------- parameter init ------------------------------------
def _dense(key, fan_in, fan_out):
    w = jax.random.normal(key, (fan_in, fan_out), jnp.float32) * 0.02
    b = jnp.zeros((fan_out,), jnp.float32)
    return {"w": w, "b": b}


def init_params(key):
    keys = iter(jax.random.split(key, 64))
    p = {
        "word_emb": jax.random.normal(next(keys), (VOCAB, HIDDEN), jnp.float32) * 0.02,
        "pos_emb": jax.random.normal(next(keys), (MAX_POS, HIDDEN), jnp.float32) * 0.02,
        "type_emb": jax.random.normal(next(keys), (TYPE_VOCAB, HIDDEN), jnp.float32) * 0.02,
        "emb_ln_g": jnp.ones((HIDDEN,), jnp.float32),
        "emb_ln_b": jnp.zeros((HIDDEN,), jnp.float32),
        "layers": [],
        "pooler": _dense(next(keys), HIDDEN, HIDDEN),
        "classifier": _dense(next(keys), HIDDEN, NUM_LABELS),
        "resp1": _dense(next(keys), HIDDEN, HIDDEN),
        "resp2": _dense(next(keys), HIDDEN, HIDDEN),
    }
    for _ in range(NUM_LAYERS):
        p["layers"].append({
            "q": _dense(next(keys), HIDDEN, HIDDEN),
            "k": _dense(next(keys), HIDDEN, HIDDEN),
            "v": _dense(next(keys), HIDDEN, HIDDEN),
            "o": _dense(next(keys), HIDDEN, HIDDEN),
            "ln1_g": jnp.ones((HIDDEN,), jnp.float32),
            "ln1_b": jnp.zeros((HIDDEN,), jnp.float32),
            "ffn_in": _dense(next(keys), HIDDEN, INTERMEDIATE),
            "ffn_out": _dense(next(keys), INTERMEDIATE, HIDDEN),
            "ln2_g": jnp.ones((HIDDEN,), jnp.float32),
            "ln2_b": jnp.zeros((HIDDEN,), jnp.float32),
        })
    return p


# ----------------------------- forward pass ---------------------------------------
def forward(params, input_ids, attention_mask, token_type_ids=None, labels=None):
    B, S = input_ids.shape
    if token_type_ids is None:
        token_type_ids = jnp.zeros_like(input_ids)

    # Embedding gathers stay in XLA (glue); everything else runs in one Pallas kernel.
    emb = (params["word_emb"][input_ids]
           + params["pos_emb"][jnp.arange(S)][None, :, :]
           + params["type_emb"][token_type_ids])                       # [B, S, H]
    add_mask = ((1.0 - attention_mask.astype(jnp.float32)) * -1e9).reshape(B, 1, S)

    L = params["layers"]
    bf16 = jnp.bfloat16
    NH, Dh = NUM_HEADS, HEAD_DIM

    def split_w(w):   # [H, H] -> [NH, H, Dh]   (per-head output columns)
        return w.reshape(HIDDEN, NH, Dh).transpose(1, 0, 2)

    def split_b(b):   # [H] -> [NH, 1, Dh]
        return b.reshape(NH, 1, Dh)

    # QKV weights packed so the kernel indexes leading dims only: [L, 3, NH, H, Dh]
    wqkv = jnp.stack([jnp.stack([split_w(l["q"]["w"]), split_w(l["k"]["w"]),
                                 split_w(l["v"]["w"])]) for l in L]).astype(bf16)
    bqkv = jnp.stack([jnp.stack([split_b(l["q"]["b"]), split_b(l["k"]["b"]),
                                 split_b(l["v"]["b"])]) for l in L])    # [L, 3, NH, 1, Dh]
    # Output projection split per head along its input dim: [L, NH, Dh, H]
    wo = jnp.stack([l["o"]["w"].reshape(NH, Dh, HIDDEN) for l in L]).astype(bf16)
    bo = jnp.stack([l["o"]["b"][None, :] for l in L])
    l1g = jnp.stack([l["ln1_g"][None, :] for l in L])
    l1b = jnp.stack([l["ln1_b"][None, :] for l in L])
    wf1 = jnp.stack([l["ffn_in"]["w"] for l in L]).astype(bf16)
    bf1 = jnp.stack([l["ffn_in"]["b"][None, :] for l in L])
    wf2 = jnp.stack([l["ffn_out"]["w"] for l in L]).astype(bf16)
    bf2 = jnp.stack([l["ffn_out"]["b"][None, :] for l in L])
    l2g = jnp.stack([l["ln2_g"][None, :] for l in L])
    l2b = jnp.stack([l["ln2_b"][None, :] for l in L])

    # Lane-pad the classifier / resp2 heads to 128 output lanes (lane-dense stores).
    wc_pad = jnp.zeros((HIDDEN, HEAD_PAD), jnp.float32).at[:, :NUM_LABELS].set(
        params["classifier"]["w"]).astype(bf16)
    bc_pad = jnp.zeros((1, HEAD_PAD), jnp.float32).at[0, :NUM_LABELS].set(
        params["classifier"]["b"])
    wr2_pad = jnp.zeros((HIDDEN, HEAD_PAD), jnp.float32).at[:, :HIDDEN].set(
        params["resp2"]["w"]).astype(bf16)
    br2_pad = jnp.zeros((1, HEAD_PAD), jnp.float32).at[0, :HIDDEN].set(
        params["resp2"]["b"])

    inputs = (
        emb, add_mask,
        params["emb_ln_g"][None, :], params["emb_ln_b"][None, :],
        wqkv, bqkv, wo, bo, l1g, l1b, wf1, bf1, wf2, bf2, l2g, l2b,
        params["pooler"]["w"].astype(bf16), params["pooler"]["b"][None, :],
        wc_pad, bc_pad,
        params["resp1"]["w"].astype(bf16), params["resp1"]["b"][None, :],
        wr2_pad, br2_pad,
    )

    in_specs = [
        pl.BlockSpec((1, S, HIDDEN), lambda b: (b, 0, 0)),   # emb: one sequence / program
        pl.BlockSpec((1, 1, S), lambda b: (b, 0, 0)),        # additive mask
    ] + [_bcast_spec(x) for x in inputs[2:]]                 # weights: broadcast

    kernel = functools.partial(_fused_forward_kernel, num_heads=NUM_HEADS)
    hs, logits_pad, resp_pad = pl.pallas_call(
        kernel,
        grid=(B,),
        out_shape=(
            jax.ShapeDtypeStruct((B, NUM_LAYERS + 1, S, HIDDEN), jnp.float32),
            jax.ShapeDtypeStruct((B, 1, HEAD_PAD), jnp.float32),
            jax.ShapeDtypeStruct((B, 1, HEAD_PAD), jnp.float32),
        ),
        in_specs=in_specs,
        out_specs=(
            pl.BlockSpec((1, NUM_LAYERS + 1, S, HIDDEN), lambda b: (b, 0, 0, 0)),
            pl.BlockSpec((1, 1, HEAD_PAD), lambda b: (b, 0, 0)),
            pl.BlockSpec((1, 1, HEAD_PAD), lambda b: (b, 0, 0)),
        ),
        compiler_params=pltpu.CompilerParams(
            dimension_semantics=("parallel",),               # second TC on v7x
            vmem_limit_bytes=32 * 1024 * 1024),
    )(*inputs)

    logits = logits_pad[:, 0, :NUM_LABELS]
    resp = resp_pad[:, 0, :HIDDEN]
    hidden_states = tuple(hs[:, i] for i in range(NUM_LAYERS + 1))

    loss = None
    if labels is not None:
        logp = jax.nn.log_softmax(logits, axis=-1)
        loss = -jnp.mean(jnp.take_along_axis(logp, labels[:, None], axis=-1))

    return {
        "loss": loss,
        "logits": logits,
        "response_features": resp,
        "hidden_states": hidden_states,
    }


# ----------------------------- main ------------------------------------------------
if __name__ == "__main__":
    key = jax.random.PRNGKey(0)
    k_par, k_ids, k_lab = jax.random.split(key, 3)

    params = init_params(k_par)

    input_ids = jax.random.randint(k_ids, (BATCH, SEQ), 0, VOCAB, dtype=jnp.int32)
    attention_mask = jnp.concatenate(
        [jnp.ones((BATCH, SEQ - 2), jnp.int32), jnp.zeros((BATCH, 2), jnp.int32)], axis=1)
    token_type_ids = jnp.zeros((BATCH, SEQ), jnp.int32)
    labels = jax.random.randint(k_lab, (BATCH,), 0, NUM_LABELS, dtype=jnp.int32)

    out = forward(params, input_ids, attention_mask, token_type_ids, labels)
    jax.block_until_ready((out["loss"], out["logits"], out["response_features"],
                           out["hidden_states"]))

    assert out["logits"].shape == (BATCH, NUM_LABELS)
    assert out["response_features"].shape == (BATCH, HIDDEN)
    assert len(out["hidden_states"]) == NUM_LAYERS + 1
    assert out["hidden_states"][0].shape == (BATCH, SEQ, HIDDEN)
    assert bool(jnp.isfinite(out["loss"]))
    print("KERNEL_OK")
</pallas_src>

<mosaic_0001>
module attributes {stable_mosaic.version = 11 : i64} {
  func.func @_fused_forward_kernel(%arg0: i32, %arg1: memref<1x8x32xf32, #tpu.memory_space<vmem>>, %arg2: memref<1x1x8xf32, #tpu.memory_space<vmem>>, %arg3: memref<1x32xf32, #tpu.memory_space<vmem>>, %arg4: memref<1x32xf32, #tpu.memory_space<vmem>>, %arg5: memref<2x3x2x32x16xbf16, #tpu.memory_space<vmem>>, %arg6: memref<2x3x2x1x16xf32, #tpu.memory_space<vmem>>, %arg7: memref<2x2x16x32xbf16, #tpu.memory_space<vmem>>, %arg8: memref<2x1x32xf32, #tpu.memory_space<vmem>>, %arg9: memref<2x1x32xf32, #tpu.memory_space<vmem>>, %arg10: memref<2x1x32xf32, #tpu.memory_space<vmem>>, %arg11: memref<2x32x64xbf16, #tpu.memory_space<vmem>>, %arg12: memref<2x1x64xf32, #tpu.memory_space<vmem>>, %arg13: memref<2x64x32xbf16, #tpu.memory_space<vmem>>, %arg14: memref<2x1x32xf32, #tpu.memory_space<vmem>>, %arg15: memref<2x1x32xf32, #tpu.memory_space<vmem>>, %arg16: memref<2x1x32xf32, #tpu.memory_space<vmem>>, %arg17: memref<32x32xbf16, #tpu.memory_space<vmem>>, %arg18: memref<1x32xf32, #tpu.memory_space<vmem>>, %arg19: memref<32x128xbf16, #tpu.memory_space<vmem>>, %arg20: memref<1x128xf32, #tpu.memory_space<vmem>>, %arg21: memref<32x32xbf16, #tpu.memory_space<vmem>>, %arg22: memref<1x32xf32, #tpu.memory_space<vmem>>, %arg23: memref<32x128xbf16, #tpu.memory_space<vmem>>, %arg24: memref<1x128xf32, #tpu.memory_space<vmem>>, %arg25: memref<1x3x8x32xf32, #tpu.memory_space<vmem>>, %arg26: memref<1x1x128xf32, #tpu.memory_space<vmem>>, %arg27: memref<1x1x128xf32, #tpu.memory_space<vmem>>) attributes {dimension_semantics = [#tpu.dimension_semantics<parallel>], iteration_bounds = array<i64: 2>, scalar_prefetch = 0 : i64, scratch_operands = 0 : i64, tpu.core_type = #tpu.core_type<tc>, window_params = [{transform_indices = @transform_0, window_bounds = array<i64: 1, 8, 32>}, {transform_indices = @transform_1, window_bounds = array<i64: 1, 1, 8>}, {pipeline_mode = #tpu.pipeline_mode<synchronous>, transform_indices = @transform_2, window_bounds = array<i64: 1, 32>}, {pipeline_mode = #tpu.pipeline_mode<synchronous>, transform_indices = @transform_3, window_bounds = array<i64: 1, 32>}, {pipeline_mode = #tpu.pipeline_mode<synchronous>, transform_indices = @transform_4, window_bounds = array<i64: 2, 3, 2, 32, 16>}, {pipeline_mode = #tpu.pipeline_mode<synchronous>, transform_indices = @transform_5, window_bounds = array<i64: 2, 3, 2, 1, 16>}, {pipeline_mode = #tpu.pipeline_mode<synchronous>, transform_indices = @transform_6, window_bounds = array<i64: 2, 2, 16, 32>}, {pipeline_mode = #tpu.pipeline_mode<synchronous>, transform_indices = @transform_7, window_bounds = array<i64: 2, 1, 32>}, {pipeline_mode = #tpu.pipeline_mode<synchronous>, transform_indices = @transform_8, window_bounds = array<i64: 2, 1, 32>}, {pipeline_mode = #tpu.pipeline_mode<synchronous>, transform_indices = @transform_9, window_bounds = array<i64: 2, 1, 32>}, {pipeline_mode = #tpu.pipeline_mode<synchronous>, transform_indices = @transform_10, window_bounds = array<i64: 2, 32, 64>}, {pipeline_mode = #tpu.pipeline_mode<synchronous>, transform_indices = @transform_11, window_bounds = array<i64: 2, 1, 64>}, {pipeline_mode = #tpu.pipeline_mode<synchronous>, transform_indices = @transform_12, window_bounds = array<i64: 2, 64, 32>}, {pipeline_mode = #tpu.pipeline_mode<synchronous>, transform_indices = @transform_13, window_bounds = array<i64: 2, 1, 32>}, {pipeline_mode = #tpu.pipeline_mode<synchronous>, transform_indices = @transform_14, window_bounds = array<i64: 2, 1, 32>}, {pipeline_mode = #tpu.pipeline_mode<synchronous>, transform_indices = @transform_15, window_bounds = array<i64: 2, 1, 32>}, {pipeline_mode = #tpu.pipeline_mode<synchronous>, transform_indices = @transform_16, window_bounds = array<i64: 32, 32>}, {pipeline_mode = #tpu.pipeline_mode<synchronous>, transform_indices = @transform_17, window_bounds = array<i64: 1, 32>}, {pipeline_mode = #tpu.pipeline_mode<synchronous>, transform_indices = @transform_18, window_bounds = array<i64: 32, 128>}, {pipeline_mode = #tpu.pipeline_mode<synchronous>, transform_indices = @transform_19, window_bounds = array<i64: 1, 128>}, {pipeline_mode = #tpu.pipeline_mode<synchronous>, transform_indices = @transform_20, window_bounds = array<i64: 32, 32>}, {pipeline_mode = #tpu.pipeline_mode<synchronous>, transform_indices = @transform_21, window_bounds = array<i64: 1, 32>}, {pipeline_mode = #tpu.pipeline_mode<synchronous>, transform_indices = @transform_22, window_bounds = array<i64: 32, 128>}, {pipeline_mode = #tpu.pipeline_mode<synchronous>, transform_indices = @transform_23, window_bounds = array<i64: 1, 128>}, {transform_indices = @transform_24, window_bounds = array<i64: 1, 3, 8, 32>}, {transform_indices = @transform_25, window_bounds = array<i64: 1, 1, 128>}, {transform_indices = @transform_26, window_bounds = array<i64: 1, 1, 128>}]} {
    %c0 = arith.constant 0 : index
    %c0_0 = arith.constant 0 : index
    %c0_1 = arith.constant 0 : index
    %0 = vector.load %arg2[%c0, %c0_0, %c0_1] : memref<1x1x8xf32, #tpu.memory_space<vmem>>, vector<1x1x8xf32>
    %1 = vector.shape_cast %0 : vector<1x1x8xf32> to vector<1x8xf32>
    %c0_2 = arith.constant 0 : index
    %c0_3 = arith.constant 0 : index
    %c0_4 = arith.constant 0 : index
    %2 = vector.load %arg1[%c0_2, %c0_3, %c0_4] : memref<1x8x32xf32, #tpu.memory_space<vmem>>, vector<1x8x32xf32>
    %3 = vector.shape_cast %2 : vector<1x8x32xf32> to vector<8x32xf32>
    %c0_5 = arith.constant 0 : index
    %c0_6 = arith.constant 0 : index
    %4 = vector.load %arg3[%c0_5, %c0_6] : memref<1x32xf32, #tpu.memory_space<vmem>>, vector<1x32xf32>
    %c0_7 = arith.constant 0 : index
    %c0_8 = arith.constant 0 : index
    %5 = vector.load %arg4[%c0_7, %c0_8] : memref<1x32xf32, #tpu.memory_space<vmem>>, vector<1x32xf32>
    %cst = arith.constant dense<0.000000e+00> : vector<8xf32>
    %6 = vector.multi_reduction <add>, %3, %cst [1] : vector<8x32xf32> to vector<8xf32>
    %7 = vector.shape_cast %6 : vector<8xf32> to vector<8x1xf32>
    %cst_9 = arith.constant 3.200000e+01 : f32
    %8 = vector.broadcast %cst_9 : f32 to vector<8x1xf32>
    %9 = arith.divf %7, %8 : vector<8x1xf32>
    %10 = vector.broadcast %9 : vector<8x1xf32> to vector<8x32xf32>
    %11 = arith.subf %3, %10 : vector<8x32xf32>
    %12 = vector.broadcast %9 : vector<8x1xf32> to vector<8x32xf32>
    %13 = arith.subf %3, %12 : vector<8x32xf32>
    %14 = arith.mulf %11, %13 : vector<8x32xf32>
    %cst_10 = arith.constant dense<0.000000e+00> : vector<8xf32>
    %15 = vector.multi_reduction <add>, %14, %cst_10 [1] : vector<8x32xf32> to vector<8xf32>
    %16 = vector.shape_cast %15 : vector<8xf32> to vector<8x1xf32>
    %cst_11 = arith.constant 3.200000e+01 : f32
    %17 = vector.broadcast %cst_11 : f32 to vector<8x1xf32>
    %18 = arith.divf %16, %17 : vector<8x1xf32>
    %19 = vector.broadcast %9 : vector<8x1xf32> to vector<8x32xf32>
    %20 = arith.subf %3, %19 : vector<8x32xf32>
    %cst_12 = arith.constant 9.99999996E-13 : f32
    %21 = vector.broadcast %cst_12 : f32 to vector<8x1xf32>
    %22 = arith.addf %18, %21 : vector<8x1xf32>
    %23 = math.rsqrt %22 : vector<8x1xf32>
    %24 = vector.broadcast %23 : vector<8x1xf32> to vector<8x32xf32>
    %25 = arith.mulf %20, %24 : vector<8x32xf32>
    %26 = vector.broadcast %4 : vector<1x32xf32> to vector<8x32xf32>
    %27 = arith.mulf %25, %26 : vector<8x32xf32>
    %28 = vector.broadcast %5 : vector<1x32xf32> to vector<8x32xf32>
    %29 = arith.addf %27, %28 : vector<8x32xf32>
    %c0_13 = arith.constant 0 : index
    %c0_14 = arith.constant 0 : index
    %c0_15 = arith.constant 0 : index
    %c0_16 = arith.constant 0 : index
    %30 = vector.load %arg25[%c0_13, %c0_14, %c0_15, %c0_16] : memref<1x3x8x32xf32, #tpu.memory_space<vmem>>, vector<1x1x8x32xf32>
    %31 = vector.shape_cast %30 : vector<1x1x8x32xf32> to vector<8x32xf32>
    %32 = vector.shape_cast %29 : vector<8x32xf32> to vector<1x1x8x32xf32>
    tpu.vector_store %arg25[%c0_13, %c0_14, %c0_15, %c0_16], %32 {strides = array<i32>} : memref<1x3x8x32xf32, #tpu.memory_space<vmem>>, vector<1x1x8x32xf32>,
    %c0_17 = arith.constant 0 : index
    %c0_18 = arith.constant 0 : index
    %c0_19 = arith.constant 0 : index
    %33 = vector.load %arg8[%c0_17, %c0_18, %c0_19] : memref<2x1x32xf32, #tpu.memory_space<vmem>>, vector<1x1x32xf32>
    %34 = vector.shape_cast %33 : vector<1x1x32xf32> to vector<1x32xf32>
    %c0_20 = arith.constant 0 : index
    %c0_21 = arith.constant 0 : index
    %c0_22 = arith.constant 0 : index
    %c0_23 = arith.constant 0 : index
    %c0_24 = arith.constant 0 : index
    %35 = vector.load %arg5[%c0_20, %c0_21, %c0_22, %c0_23, %c0_24] : memref<2x3x2x32x16xbf16, #tpu.memory_space<vmem>>, vector<1x1x1x32x16xbf16>
    %36 = vector.shape_cast %35 : vector<1x1x1x32x16xbf16> to vector<32x16xbf16>
    %37 = arith.truncf %29 : vector<8x32xf32> to vector<8x32xbf16>
    %cst_25 = arith.constant dense<0.000000e+00> : vector<8x16xf32>
    %38 = tpu.matmul %37, %36, %cst_25 {dimension_numbers = #tpu.dot_dimension_numbers<[1], [0], [0], [1], [0, 0, 1, 1], [], []>} : vector<8x32xbf16>, vector<32x16xbf16>, vector<8x16xf32> -> vector<8x16xf32>
    %c0_26 = arith.constant 0 : index
    %c0_27 = arith.constant 0 : index
    %c0_28 = arith.constant 0 : index
    %c0_29 = arith.constant 0 : index
    %c0_30 = arith.constant 0 : index
    %39 = vector.load %arg6[%c0_26, %c0_27, %c0_28, %c0_29, %c0_30] : memref<2x3x2x1x16xf32, #tpu.memory_space<vmem>>, vector<1x1x1x1x16xf32>
    %40 = vector.shape_cast %39 : vector<1x1x1x1x16xf32> to vector<1x16xf32>
    %41 = vector.broadcast %40 : vector<1x16xf32> to vector<8x16xf32>
    %42 = arith.addf %38, %41 : vector<8x16xf32>
    %cst_31 = arith.constant 2.500000e-01 : f32
    %43 = vector.broadcast %cst_31 : f32 to vector<8x16xf32>
    %44 = arith.mulf %42, %43 : vector<8x16xf32>
    %c0_32 = arith.constant 0 : index
    %c1 = arith.constant 1 : index
    %c0_33 = arith.constant 0 : index
    %c0_34 = arith.constant 0 : index
    %c0_35 = arith.constant 0 : index
    %45 = vector.load %arg5[%c0_32, %c1, %c0_33, %c0_34, %c0_35] : memref<2x3x2x32x16xbf16, #tpu.memory_space<vmem>>, vector<1x1x1x32x16xbf16>
    %46 = vector.shape_cast %45 : vector<1x1x1x32x16xbf16> to vector<32x16xbf16>
    %47 = arith.truncf %29 : vector<8x32xf32> to vector<8x32xbf16>
    %cst_36 = arith.constant dense<0.000000e+00> : vector<8x16xf32>
    %48 = tpu.matmul %47, %46, %cst_36 {dimension_numbers = #tpu.dot_dimension_numbers<[1], [0], [0], [1], [0, 0, 1, 1], [], []>} : vector<8x32xbf16>, vector<32x16xbf16>, vector<8x16xf32> -> vector<8x16xf32>
    %c0_37 = arith.constant 0 : index
    %c1_38 = arith.constant 1 : index
    %c0_39 = arith.constant 0 : index
    %c0_40 = arith.constant 0 : index
    %c0_41 = arith.constant 0 : index
    %49 = vector.load %arg6[%c0_37, %c1_38, %c0_39, %c0_40, %c0_41] : memref<2x3x2x1x16xf32, #tpu.memory_space<vmem>>, vector<1x1x1x1x16xf32>
    %50 = vector.shape_cast %49 : vector<1x1x1x1x16xf32> to vector<1x16xf32>
    %51 = vector.broadcast %50 : vector<1x16xf32> to vector<8x16xf32>
    %52 = arith.addf %48, %51 : vector<8x16xf32>
    %c0_42 = arith.constant 0 : index
    %c2 = arith.constant 2 : index
    %c0_43 = arith.constant 0 : index
    %c0_44 = arith.constant 0 : index
    %c0_45 = arith.constant 0 : index
    %53 = vector.load %arg5[%c0_42, %c2, %c0_43, %c0_44, %c0_45] : memref<2x3x2x32x16xbf16, #tpu.memory_space<vmem>>, vector<1x1x1x32x16xbf16>
    %54 = vector.shape_cast %53 : vector<1x1x1x32x16xbf16> to vector<32x16xbf16>
    %55 = arith.truncf %29 : vector<8x32xf32> to vector<8x32xbf16>
    %cst_46 = arith.constant dense<0.000000e+00> : vector<8x16xf32>
    %56 = tpu.matmul %55, %54, %cst_46 {dimension_numbers = #tpu.dot_dimension_numbers<[1], [0], [0], [1], [0, 0, 1, 1], [], []>} : vector<8x32xbf16>, vector<32x16xbf16>, vector<8x16xf32> -> vector<8x16xf32>
    %c0_47 = arith.constant 0 : index
    %c2_48 = arith.constant 2 : index
    %c0_49 = arith.constant 0 : index
    %c0_50 = arith.constant 0 : index
    %c0_51 = arith.constant 0 : index
    %57 = vector.load %arg6[%c0_47, %c2_48, %c0_49, %c0_50, %c0_51] : memref<2x3x2x1x16xf32, #tpu.memory_space<vmem>>, vector<1x1x1x1x16xf32>
    %58 = vector.shape_cast %57 : vector<1x1x1x1x16xf32> to vector<1x16xf32>
    %59 = vector.broadcast %58 : vector<1x16xf32> to vector<8x16xf32>
    %60 = arith.addf %56, %59 : vector<8x16xf32>
    %61 = arith.truncf %44 : vector<8x16xf32> to vector<8x16xbf16>
    %62 = arith.truncf %52 : vector<8x16xf32> to vector<8x16xbf16>
    %cst_52 = arith.constant dense<0.000000e+00> : vector<8x8xf32>
    %63 = tpu.matmul %61, %62, %cst_52 {dimension_numbers = #tpu.dot_dimension_numbers<[1], [1], [0], [0], [0, 0, 1, 0], [], []>} : vector<8x16xbf16>, vector<8x16xbf16>, vector<8x8xf32> -> vector<8x8xf32>
    %64 = vector.broadcast %1 : vector<1x8xf32> to vector<8x8xf32>
    %65 = arith.addf %63, %64 : vector<8x8xf32>
    %cst_53 = arith.constant dense<0xFF800000> : vector<8xf32>
    %66 = vector.multi_reduction <maximumf>, %65, %cst_53 [1] : vector<8x8xf32> to vector<8xf32>
    %67 = vector.shape_cast %66 : vector<8xf32> to vector<8x1xf32>
    %68 = vector.broadcast %67 : vector<8x1xf32> to vector<8x8xf32>
    %69 = arith.subf %65, %68 : vector<8x8xf32>
    %70 = math.exp %69 : vector<8x8xf32>
    %cst_54 = arith.constant dense<0.000000e+00> : vector<8xf32>
    %71 = vector.multi_reduction <add>, %70, %cst_54 [1] : vector<8x8xf32> to vector<8xf32>
    %72 = vector.shape_cast %71 : vector<8xf32> to vector<8x1xf32>
    %73 = tpu.reciprocal %72 {approx = true} : vector<8x1xf32> -> vector<8x1xf32>
    %74 = vector.broadcast %73 : vector<8x1xf32> to vector<8x8xf32>
    %75 = arith.mulf %70, %74 : vector<8x8xf32>
    %76 = arith.truncf %75 : vector<8x8xf32> to vector<8x8xbf16>
    %77 = arith.truncf %60 : vector<8x16xf32> to vector<8x16xbf16>
    %cst_55 = arith.constant dense<0.000000e+00> : vector<8x16xf32>
    %78 = tpu.matmul %76, %77, %cst_55 {dimension_numbers = #tpu.dot_dimension_numbers<[1], [0], [0], [1], [0, 0, 1, 1], [], []>} : vector<8x8xbf16>, vector<8x16xbf16>, vector<8x16xf32> -> vector<8x16xf32>
    %c0_56 = arith.constant 0 : index
    %c0_57 = arith.constant 0 : index
    %c0_58 = arith.constant 0 : index
    %c0_59 = arith.constant 0 : index
    %79 = vector.load %arg7[%c0_56, %c0_57, %c0_58, %c0_59] : memref<2x2x16x32xbf16, #tpu.memory_space<vmem>>, vector<1x1x16x32xbf16>
    %80 = vector.shape_cast %79 : vector<1x1x16x32xbf16> to vector<16x32xbf16>
    %81 = arith.truncf %78 : vector<8x16xf32> to vector<8x16xbf16>
    %cst_60 = arith.constant dense<0.000000e+00> : vector<8x32xf32>
    %82 = tpu.matmul %81, %80, %cst_60 {dimension_numbers = #tpu.dot_dimension_numbers<[1], [0], [0], [1], [0, 0, 1, 1], [], []>} : vector<8x16xbf16>, vector<16x32xbf16>, vector<8x32xf32> -> vector<8x32xf32>
    %83 = vector.broadcast %34 : vector<1x32xf32> to vector<8x32xf32>
    %84 = arith.addf %83, %82 : vector<8x32xf32>
    %c0_61 = arith.constant 0 : index
    %c0_62 = arith.constant 0 : index
    %c1_63 = arith.constant 1 : index
    %c0_64 = arith.constant 0 : index
    %c0_65 = arith.constant 0 : index
    %85 = vector.load %arg5[%c0_61, %c0_62, %c1_63, %c0_64, %c0_65] : memref<2x3x2x32x16xbf16, #tpu.memory_space<vmem>>, vector<1x1x1x32x16xbf16>
    %86 = vector.shape_cast %85 : vector<1x1x1x32x16xbf16> to vector<32x16xbf16>
    %87 = arith.truncf %29 : vector<8x32xf32> to vector<8x32xbf16>
    %cst_66 = arith.constant dense<0.000000e+00> : vector<8x16xf32>
    %88 = tpu.matmul %87, %86, %cst_66 {dimension_numbers = #tpu.dot_dimension_numbers<[1], [0], [0], [1], [0, 0, 1, 1], [], []>} : vector<8x32xbf16>, vector<32x16xbf16>, vector<8x16xf32> -> vector<8x16xf32>
    %c0_67 = arith.constant 0 : index
    %c0_68 = arith.constant 0 : index
    %c1_69 = arith.constant 1 : index
    %c0_70 = arith.constant 0 : index
    %c0_71 = arith.constant 0 : index
    %89 = vector.load %arg6[%c0_67, %c0_68, %c1_69, %c0_70, %c0_71] : memref<2x3x2x1x16xf32, #tpu.memory_space<vmem>>, vector<1x1x1x1x16xf32>
    %90 = vector.shape_cast %89 : vector<1x1x1x1x16xf32> to vector<1x16xf32>
    %91 = vector.broadcast %90 : vector<1x16xf32> to vector<8x16xf32>
    %92 = arith.addf %88, %91 : vector<8x16xf32>
    %cst_72 = arith.constant 2.500000e-01 : f32
    %93 = vector.broadcast %cst_72 : f32 to vector<8x16xf32>
    %94 = arith.mulf %92, %93 : vector<8x16xf32>
    %c0_73 = arith.constant 0 : index
    %c1_74 = arith.constant 1 : index
    %c1_75 = arith.constant 1 : index
    %c0_76 = arith.constant 0 : index
    %c0_77 = arith.constant 0 : index
    %95 = vector.load %arg5[%c0_73, %c1_74, %c1_75, %c0_76, %c0_77] : memref<2x3x2x32x16xbf16, #tpu.memory_space<vmem>>, vector<1x1x1x32x16xbf16>
    %96 = vector.shape_cast %95 : vector<1x1x1x32x16xbf16> to vector<32x16xbf16>
    %97 = arith.truncf %29 : vector<8x32xf32> to vector<8x32xbf16>
    %cst_78 = arith.constant dense<0.000000e+00> : vector<8x16xf32>
    %98 = tpu.matmul %97, %96, %cst_78 {dimension_numbers = #tpu.dot_dimension_numbers<[1], [0], [0], [1], [0, 0, 1, 1], [], []>} : vector<8x32xbf16>, vector<32x16xbf16>, vector<8x16xf32> -> vector<8x16xf32>
    %c0_79 = arith.constant 0 : index
    %c1_80 = arith.constant 1 : index
    %c1_81 = arith.constant 1 : index
    %c0_82 = arith.constant 0 : index
    %c0_83 = arith.constant 0 : index
    %99 = vector.load %arg6[%c0_79, %c1_80, %c1_81, %c0_82, %c0_83] : memref<2x3x2x1x16xf32, #tpu.memory_space<vmem>>, vector<1x1x1x1x16xf32>
    %100 = vector.shape_cast %99 : vector<1x1x1x1x16xf32> to vector<1x16xf32>
    %101 = vector.broadcast %100 : vector<1x16xf32> to vector<8x16xf32>
    %102 = arith.addf %98, %101 : vector<8x16xf32>
    %c0_84 = arith.constant 0 : index
    %c2_85 = arith.constant 2 : index
    %c1_86 = arith.constant 1 : index
    %c0_87 = arith.constant 0 : index
    %c0_88 = arith.constant 0 : index
    %103 = vector.load %arg5[%c0_84, %c2_85, %c1_86, %c0_87, %c0_88] : memref<2x3x2x32x16xbf16, #tpu.memory_space<vmem>>, vector<1x1x1x32x16xbf16>
    %104 = vector.shape_cast %103 : vector<1x1x1x32x16xbf16> to vector<32x16xbf16>
    %105 = arith.truncf %29 : vector<8x32xf32> to vector<8x32xbf16>
    %cst_89 = arith.constant dense<0.000000e+00> : vector<8x16xf32>
    %106 = tpu.matmul %105, %104, %cst_89 {dimension_numbers = #tpu.dot_dimension_numbers<[1], [0], [0], [1], [0, 0, 1, 1], [], []>} : vector<8x32xbf16>, vector<32x16xbf16>, vector<8x16xf32> -> vector<8x16xf32>
    %c0_90 = arith.constant 0 : index
    %c2_91 = arith.constant 2 : index
    %c1_92 = arith.constant 1 : index
    %c0_93 = arith.constant 0 : index
    %c0_94 = arith.constant 0 : index
    %107 = vector.load %arg6[%c0_90, %c2_91, %c1_92, %c0_93, %c0_94] : memref<2x3x2x1x16xf32, #tpu.memory_space<vmem>>, vector<1x1x1x1x16xf32>
    %108 = vector.shape_cast %107 : vector<1x1x1x1x16xf32> to vector<1x16xf32>
    %109 = vector.broadcast %108 : vector<1x16xf32> to vector<8x16xf32>
    %110 = arith.addf %106, %109 : vector<8x16xf32>
    %111 = arith.truncf %94 : vector<8x16xf32> to vector<8x16xbf16>
    %112 = arith.truncf %102 : vector<8x16xf32> to vector<8x16xbf16>
    %cst_95 = arith.constant dense<0.000000e+00> : vector<8x8xf32>
    %113 = tpu.matmul %111, %112, %cst_95 {dimension_numbers = #tpu.dot_dimension_numbers<[1], [1], [0], [0], [0, 0, 1, 0], [], []>} : vector<8x16xbf16>, vector<8x16xbf16>, vector<8x8xf32> -> vector<8x8xf32>
    %114 = vector.broadcast %1 : vector<1x8xf32> to vector<8x8xf32>
    %115 = arith.addf %113, %114 : vector<8x8xf32>
    %cst_96 = arith.constant dense<0xFF800000> : vector<8xf32>
    %116 = vector.multi_reduction <maximumf>, %115, %cst_96 [1] : vector<8x8xf32> to vector<8xf32>
    %117 = vector.shape_cast %116 : vector<8xf32> to vector<8x1xf32>
    %118 = vector.broadcast %117 : vector<8x1xf32> to vector<8x8xf32>
    %119 = arith.subf %115, %118 : vector<8x8xf32>
    %120 = math.exp %119 : vector<8x8xf32>
    %cst_97 = arith.constant dense<0.000000e+00> : vector<8xf32>
    %121 = vector.multi_reduction <add>, %120, %cst_97 [1] : vector<8x8xf32> to vector<8xf32>
    %122 = vector.shape_cast %121 : vector<8xf32> to vector<8x1xf32>
    %123 = tpu.reciprocal %122 {approx = true} : vector<8x1xf32> -> vector<8x1xf32>
    %124 = vector.broadcast %123 : vector<8x1xf32> to vector<8x8xf32>
    %125 = arith.mulf %120, %124 : vector<8x8xf32>
    %126 = arith.truncf %125 : vector<8x8xf32> to vector<8x8xbf16>
    %127 = arith.truncf %110 : vector<8x16xf32> to vector<8x16xbf16>
    %cst_98 = arith.constant dense<0.000000e+00> : vector<8x16xf32>
    %128 = tpu.matmul %126, %127, %cst_98 {dimension_numbers = #tpu.dot_dimension_numbers<[1], [0], [0], [1], [0, 0, 1, 1], [], []>} : vector<8x8xbf16>, vector<8x16xbf16>, vector<8x16xf32> -> vector<8x16xf32>
    %c0_99 = arith.constant 0 : index
    %c1_100 = arith.constant 1 : index
    %c0_101 = arith.constant 0 : index
    %c0_102 = arith.constant 0 : index
    %129 = vector.load %arg7[%c0_99, %c1_100, %c0_101, %c0_102] : memref<2x2x16x32xbf16, #tpu.memory_space<vmem>>, vector<1x1x16x32xbf16>
    %130 = vector.shape_cast %129 : vector<1x1x16x32xbf16> to vector<16x32xbf16>
    %131 = arith.truncf %128 : vector<8x16xf32> to vector<8x16xbf16>
    %cst_103 = arith.constant dense<0.000000e+00> : vector<8x32xf32>
    %132 = tpu.matmul %131, %130, %cst_103 {dimension_numbers = #tpu.dot_dimension_numbers<[1], [0], [0], [1], [0, 0, 1, 1], [], []>} : vector<8x16xbf16>, vector<16x32xbf16>, vector<8x32xf32> -> vector<8x32xf32>
    %133 = arith.addf %84, %132 : vector<8x32xf32>
    %134 = arith.addf %133, %29 : vector<8x32xf32>
    %c0_104 = arith.constant 0 : index
    %c0_105 = arith.constant 0 : index
    %c0_106 = arith.constant 0 : index
    %135 = vector.load %arg9[%c0_104, %c0_105, %c0_106] : memref<2x1x32xf32, #tpu.memory_space<vmem>>, vector<1x1x32xf32>
    %136 = vector.shape_cast %135 : vector<1x1x32xf32> to vector<1x32xf32>
    %c0_107 = arith.constant 0 : index
    %c0_108 = arith.constant 0 : index
    %c0_109 = arith.constant 0 : index
    %137 = vector.load %arg10[%c0_107, %c0_108, %c0_109] : memref<2x1x32xf32, #tpu.memory_space<vmem>>, vector<1x1x32xf32>
    %138 = vector.shape_cast %137 : vector<1x1x32xf32> to vector<1x32xf32>
    %cst_110 = arith.constant dense<0.000000e+00> : vector<8xf32>
    %139 = vector.multi_reduction <add>, %134, %cst_110 [1] : vector<8x32xf32> to vector<8xf32>
    %140 = vector.shape_cast %139 : vector<8xf32> to vector<8x1xf32>
    %cst_111 = arith.constant 3.200000e+01 : f32
    %141 = vector.broadcast %cst_111 : f32 to vector<8x1xf32>
    %142 = arith.divf %140, %141 : vector<8x1xf32>
    %143 = vector.broadcast %142 : vector<8x1xf32> to vector<8x32xf32>
    %144 = arith.subf %134, %143 : vector<8x32xf32>
    %145 = vector.broadcast %142 : vector<8x1xf32> to vector<8x32xf32>
    %146 = arith.subf %134, %145 : vector<8x32xf32>
    %147 = arith.mulf %144, %146 : vector<8x32xf32>
    %cst_112 = arith.constant dense<0.000000e+00> : vector<8xf32>
    %148 = vector.multi_reduction <add>, %147, %cst_112 [1] : vector<8x32xf32> to vector<8xf32>
    %149 = vector.shape_cast %148 : vector<8xf32> to vector<8x1xf32>
    %cst_113 = arith.constant 3.200000e+01 : f32
    %150 = vector.broadcast %cst_113 : f32 to vector<8x1xf32>
    %151 = arith.divf %149, %150 : vector<8x1xf32>
    %152 = vector.broadcast %142 : vector<8x1xf32> to vector<8x32xf32>
    %153 = arith.subf %134, %152 : vector<8x32xf32>
    %cst_114 = arith.constant 9.99999996E-13 : f32
    %154 = vector.broadcast %cst_114 : f32 to vector<8x1xf32>
    %155 = arith.addf %151, %154 : vector<8x1xf32>
    %156 = math.rsqrt %155 : vector<8x1xf32>
    %157 = vector.broadcast %156 : vector<8x1xf32> to vector<8x32xf32>
    %158 = arith.mulf %153, %157 : vector<8x32xf32>
    %159 = vector.broadcast %136 : vector<1x32xf32> to vector<8x32xf32>
    %160 = arith.mulf %158, %159 : vector<8x32xf32>
    %161 = vector.broadcast %138 : vector<1x32xf32> to vector<8x32xf32>
    %162 = arith.addf %160, %161 : vector<8x32xf32>
    %c0_115 = arith.constant 0 : index
    %c0_116 = arith.constant 0 : index
    %c0_117 = arith.constant 0 : index
    %163 = vector.load %arg11[%c0_115, %c0_116, %c0_117] : memref<2x32x64xbf16, #tpu.memory_space<vmem>>, vector<1x32x64xbf16>
    %164 = vector.shape_cast %163 : vector<1x32x64xbf16> to vector<32x64xbf16>
    %165 = arith.truncf %162 : vector<8x32xf32> to vector<8x32xbf16>
    %cst_118 = arith.constant dense<0.000000e+00> : vector<8x64xf32>
    %166 = tpu.matmul %165, %164, %cst_118 {dimension_numbers = #tpu.dot_dimension_numbers<[1], [0], [0], [1], [0, 0, 1, 1], [], []>} : vector<8x32xbf16>, vector<32x64xbf16>, vector<8x64xf32> -> vector<8x64xf32>
    %c0_119 = arith.constant 0 : index
    %c0_120 = arith.constant 0 : index
    %c0_121 = arith.constant 0 : index
    %167 = vector.load %arg12[%c0_119, %c0_120, %c0_121] : memref<2x1x64xf32, #tpu.memory_space<vmem>>, vector<1x1x64xf32>
    %168 = vector.shape_cast %167 : vector<1x1x64xf32> to vector<1x64xf32>
    %169 = vector.broadcast %168 : vector<1x64xf32> to vector<8x64xf32>
    %170 = arith.addf %166, %169 : vector<8x64xf32>
    %171 = arith.mulf %170, %170 : vector<8x64xf32>
    %172 = arith.mulf %170, %171 : vector<8x64xf32>
    %cst_122 = arith.constant 4.471500e-02 : f32
    %173 = vector.broadcast %cst_122 : f32 to vector<8x64xf32>
    %174 = arith.mulf %173, %172 : vector<8x64xf32>
    %175 = arith.addf %170, %174 : vector<8x64xf32>
    %cst_123 = arith.constant 0.797884583 : f32
    %176 = vector.broadcast %cst_123 : f32 to vector<8x64xf32>
    %177 = arith.mulf %176, %175 : vector<8x64xf32>
    %178 = math.tanh %177 : vector<8x64xf32>
    %cst_124 = arith.constant 1.000000e+00 : f32
    %179 = vector.broadcast %cst_124 : f32 to vector<8x64xf32>
    %180 = arith.addf %179, %178 : vector<8x64xf32>
    %cst_125 = arith.constant 5.000000e-01 : f32
    %181 = vector.broadcast %cst_125 : f32 to vector<8x64xf32>
    %182 = arith.mulf %181, %180 : vector<8x64xf32>
    %183 = arith.mulf %170, %182 : vector<8x64xf32>
    %c0_126 = arith.constant 0 : index
    %c0_127 = arith.constant 0 : index
    %c0_128 = arith.constant 0 : index
    %184 = vector.load %arg13[%c0_126, %c0_127, %c0_128] : memref<2x64x32xbf16, #tpu.memory_space<vmem>>, vector<1x64x32xbf16>
    %185 = vector.shape_cast %184 : vector<1x64x32xbf16> to vector<64x32xbf16>
    %186 = arith.truncf %183 : vector<8x64xf32> to vector<8x64xbf16>
    %cst_129 = arith.constant dense<0.000000e+00> : vector<8x32xf32>
    %187 = tpu.matmul %186, %185, %cst_129 {dimension_numbers = #tpu.dot_dimension_numbers<[1], [0], [0], [1], [0, 0, 1, 1], [], []>} : vector<8x64xbf16>, vector<64x32xbf16>, vector<8x32xf32> -> vector<8x32xf32>
    %c0_130 = arith.constant 0 : index
    %c0_131 = arith.constant 0 : index
    %c0_132 = arith.constant 0 : index
    %188 = vector.load %arg14[%c0_130, %c0_131, %c0_132] : memref<2x1x32xf32, #tpu.memory_space<vmem>>, vector<1x1x32xf32>
    %189 = vector.shape_cast %188 : vector<1x1x32xf32> to vector<1x32xf32>
    %190 = vector.broadcast %189 : vector<1x32xf32> to vector<8x32xf32>
    %191 = arith.addf %187, %190 : vector<8x32xf32>
    %192 = arith.addf %191, %162 : vector<8x32xf32>
    %c0_133 = arith.constant 0 : index
    %c0_134 = arith.constant 0 : index
    %c0_135 = arith.constant 0 : index
    %193 = vector.load %arg15[%c0_133, %c0_134, %c0_135] : memref<2x1x32xf32, #tpu.memory_space<vmem>>, vector<1x1x32xf32>
    %194 = vector.shape_cast %193 : vector<1x1x32xf32> to vector<1x32xf32>
    %c0_136 = arith.constant 0 : index
    %c0_137 = arith.constant 0 : index
    %c0_138 = arith.constant 0 : index
    %195 = vector.load %arg16[%c0_136, %c0_137, %c0_138] : memref<2x1x32xf32, #tpu.memory_space<vmem>>, vector<1x1x32xf32>
    %196 = vector.shape_cast %195 : vector<1x1x32xf32> to vector<1x32xf32>
    %cst_139 = arith.constant dense<0.000000e+00> : vector<8xf32>
    %197 = vector.multi_reduction <add>, %192, %cst_139 [1] : vector<8x32xf32> to vector<8xf32>
    %198 = vector.shape_cast %197 : vector<8xf32> to vector<8x1xf32>
    %cst_140 = arith.constant 3.200000e+01 : f32
    %199 = vector.broadcast %cst_140 : f32 to vector<8x1xf32>
    %200 = arith.divf %198, %199 : vector<8x1xf32>
    %201 = vector.broadcast %200 : vector<8x1xf32> to vector<8x32xf32>
    %202 = arith.subf %192, %201 : vector<8x32xf32>
    %203 = vector.broadcast %200 : vector<8x1xf32> to vector<8x32xf32>
    %204 = arith.subf %192, %203 : vector<8x32xf32>
    %205 = arith.mulf %202, %204 : vector<8x32xf32>
    %cst_141 = arith.constant dense<0.000000e+00> : vector<8xf32>
    %206 = vector.multi_reduction <add>, %205, %cst_141 [1] : vector<8x32xf32> to vector<8xf32>
    %207 = vector.shape_cast %206 : vector<8xf32> to vector<8x1xf32>
    %cst_142 = arith.constant 3.200000e+01 : f32
    %208 = vector.broadcast %cst_142 : f32 to vector<8x1xf32>
    %209 = arith.divf %207, %208 : vector<8x1xf32>
    %210 = vector.broadcast %200 : vector<8x1xf32> to vector<8x32xf32>
    %211 = arith.subf %192, %210 : vector<8x32xf32>
    %cst_143 = arith.constant 9.99999996E-13 : f32
    %212 = vector.broadcast %cst_143 : f32 to vector<8x1xf32>
    %213 = arith.addf %209, %212 : vector<8x1xf32>
    %214 = math.rsqrt %213 : vector<8x1xf32>
    %215 = vector.broadcast %214 : vector<8x1xf32> to vector<8x32xf32>
    %216 = arith.mulf %211, %215 : vector<8x32xf32>
    %217 = vector.broadcast %194 : vector<1x32xf32> to vector<8x32xf32>
    %218 = arith.mulf %216, %217 : vector<8x32xf32>
    %219 = vector.broadcast %196 : vector<1x32xf32> to vector<8x32xf32>
    %220 = arith.addf %218, %219 : vector<8x32xf32>
    %c0_144 = arith.constant 0 : index
    %c1_145 = arith.constant 1 : index
    %c0_146 = arith.constant 0 : index
    %c0_147 = arith.constant 0 : index
    %221 = vector.load %arg25[%c0_144, %c1_145, %c0_146, %c0_147] : memref<1x3x8x32xf32, #tpu.memory_space<vmem>>, vector<1x1x8x32xf32>
    %222 = vector.shape_cast %221 : vector<1x1x8x32xf32> to vector<8x32xf32>
    %223 = vector.shape_cast %220 : vector<8x32xf32> to vector<1x1x8x32xf32>
    tpu.vector_store %arg25[%c0_144, %c1_145, %c0_146, %c0_147], %223 {strides = array<i32>} : memref<1x3x8x32xf32, #tpu.memory_space<vmem>>, vector<1x1x8x32xf32>,
    %c1_148 = arith.constant 1 : index
    %c0_149 = arith.constant 0 : index
    %c0_150 = arith.constant 0 : index
    %224 = vector.load %arg8[%c1_148, %c0_149, %c0_150] : memref<2x1x32xf32, #tpu.memory_space<vmem>>, vector<1x1x32xf32>
    %225 = vector.shape_cast %224 : vector<1x1x32xf32> to vector<1x32xf32>
    %c1_151 = arith.constant 1 : index
    %c0_152 = arith.constant 0 : index
    %c0_153 = arith.constant 0 : index
    %c0_154 = arith.constant 0 : index
    %c0_155 = arith.constant 0 : index
    %226 = vector.load %arg5[%c1_151, %c0_152, %c0_153, %c0_154, %c0_155] : memref<2x3x2x32x16xbf16, #tpu.memory_space<vmem>>, vector<1x1x1x32x16xbf16>
    %227 = vector.shape_cast %226 : vector<1x1x1x32x16xbf16> to vector<32x16xbf16>
    %228 = arith.truncf %220 : vector<8x32xf32> to vector<8x32xbf16>
    %cst_156 = arith.constant dense<0.000000e+00> : vector<8x16xf32>
    %229 = tpu.matmul %228, %227, %cst_156 {dimension_numbers = #tpu.dot_dimension_numbers<[1], [0], [0], [1], [0, 0, 1, 1], [], []>} : vector<8x32xbf16>, vector<32x16xbf16>, vector<8x16xf32> -> vector<8x16xf32>
    %c1_157 = arith.constant 1 : index
    %c0_158 = arith.constant 0 : index
    %c0_159 = arith.constant 0 : index
    %c0_160 = arith.constant 0 : index
    %c0_161 = arith.constant 0 : index
    %230 = vector.load %arg6[%c1_157, %c0_158, %c0_159, %c0_160, %c0_161] : memref<2x3x2x1x16xf32, #tpu.memory_space<vmem>>, vector<1x1x1x1x16xf32>
    %231 = vector.shape_cast %230 : vector<1x1x1x1x16xf32> to vector<1x16xf32>
    %232 = vector.broadcast %231 : vector<1x16xf32> to vector<8x16xf32>
    %233 = arith.addf %229, %232 : vector<8x16xf32>
    %cst_162 = arith.constant 2.500000e-01 : f32
    %234 = vector.broadcast %cst_162 : f32 to vector<8x16xf32>
    %235 = arith.mulf %233, %234 : vector<8x16xf32>
    %c1_163 = arith.constant 1 : index
    %c1_164 = arith.constant 1 : index
    %c0_165 = arith.constant 0 : index
    %c0_166 = arith.constant 0 : index
    %c0_167 = arith.constant 0 : index
    %236 = vector.load %arg5[%c1_163, %c1_164, %c0_165, %c0_166, %c0_167] : memref<2x3x2x32x16xbf16, #tpu.memory_space<vmem>>, vector<1x1x1x32x16xbf16>
    %237 = vector.shape_cast %236 : vector<1x1x1x32x16xbf16> to vector<32x16xbf16>
    %238 = arith.truncf %220 : vector<8x32xf32> to vector<8x32xbf16>
    %cst_168 = arith.constant dense<0.000000e+00> : vector<8x16xf32>
    %239 = tpu.matmul %238, %237, %cst_168 {dimension_numbers = #tpu.dot_dimension_numbers<[1], [0], [0], [1], [0, 0, 1, 1], [], []>} : vector<8x32xbf16>, vector<32x16xbf16>, vector<8x16xf32> -> vector<8x16xf32>
    %c1_169 = arith.constant 1 : index
    %c1_170 = arith.constant 1 : index
    %c0_171 = arith.constant 0 : index
    %c0_172 = arith.constant 0 : index
    %c0_173 = arith.constant 0 : index
    %240 = vector.load %arg6[%c1_169, %c1_170, %c0_171, %c0_172, %c0_173] : memref<2x3x2x1x16xf32, #tpu.memory_space<vmem>>, vector<1x1x1x1x16xf32>
    %241 = vector.shape_cast %240 : vector<1x1x1x1x16xf32> to vector<1x16xf32>
    %242 = vector.broadcast %241 : vector<1x16xf32> to vector<8x16xf32>
    %243 = arith.addf %239, %242 : vector<8x16xf32>
    %c1_174 = arith.constant 1 : index
    %c2_175 = arith.constant 2 : index
    %c0_176 = arith.constant 0 : index
    %c0_177 = arith.constant 0 : index
    %c0_178 = arith.constant 0 : index
    %244 = vector.load %arg5[%c1_174, %c2_175, %c0_176, %c0_177, %c0_178] : memref<2x3x2x32x16xbf16, #tpu.memory_space<vmem>>, vector<1x1x1x32x16xbf16>
    %245 = vector.shape_cast %244 : vector<1x1x1x32x16xbf16> to vector<32x16xbf16>
    %246 = arith.truncf %220 : vector<8x32xf32> to vector<8x32xbf16>
    %cst_179 = arith.constant dense<0.000000e+00> : vector<8x16xf32>
    %247 = tpu.matmul %246, %245, %cst_179 {dimension_numbers = #tpu.dot_dimension_numbers<[1], [0], [0], [1], [0, 0, 1, 1], [], []>} : vector<8x32xbf16>, vector<32x16xbf16>, vector<8x16xf32> -> vector<8x16xf32>
    %c1_180 = arith.constant 1 : index
    %c2_181 = arith.constant 2 : index
    %c0_182 = arith.constant 0 : index
    %c0_183 = arith.constant 0 : index
    %c0_184 = arith.constant 0 : index
    %248 = vector.load %arg6[%c1_180, %c2_181, %c0_182, %c0_183, %c0_184] : memref<2x3x2x1x16xf32, #tpu.memory_space<vmem>>, vector<1x1x1x1x16xf32>
    %249 = vector.shape_cast %248 : vector<1x1x1x1x16xf32> to vector<1x16xf32>
    %250 = vector.broadcast %249 : vector<1x16xf32> to vector<8x16xf32>
    %251 = arith.addf %247, %250 : vector<8x16xf32>
    %252 = arith.truncf %235 : vector<8x16xf32> to vector<8x16xbf16>
    %253 = arith.truncf %243 : vector<8x16xf32> to vector<8x16xbf16>
    %cst_185 = arith.constant dense<0.000000e+00> : vector<8x8xf32>
    %254 = tpu.matmul %252, %253, %cst_185 {dimension_numbers = #tpu.dot_dimension_numbers<[1], [1], [0], [0], [0, 0, 1, 0], [], []>} : vector<8x16xbf16>, vector<8x16xbf16>, vector<8x8xf32> -> vector<8x8xf32>
    %255 = vector.broadcast %1 : vector<1x8xf32> to vector<8x8xf32>
    %256 = arith.addf %254, %255 : vector<8x8xf32>
    %cst_186 = arith.constant dense<0xFF800000> : vector<8xf32>
    %257 = vector.multi_reduction <maximumf>, %256, %cst_186 [1] : vector<8x8xf32> to vector<8xf32>
    %258 = vector.shape_cast %257 : vector<8xf32> to vector<8x1xf32>
    %259 = vector.broadcast %258 : vector<8x1xf32> to vector<8x8xf32>
    %260 = arith.subf %256, %259 : vector<8x8xf32>
    %261 = math.exp %260 : vector<8x8xf32>
    %cst_187 = arith.constant dense<0.000000e+00> : vector<8xf32>
    %262 = vector.multi_reduction <add>, %261, %cst_187 [1] : vector<8x8xf32> to vector<8xf32>
    %263 = vector.shape_cast %262 : vector<8xf32> to vector<8x1xf32>
    %264 = tpu.reciprocal %263 {approx = true} : vector<8x1xf32> -> vector<8x1xf32>
    %265 = vector.broadcast %264 : vector<8x1xf32> to vector<8x8xf32>
    %266 = arith.mulf %261, %265 : vector<8x8xf32>
    %267 = arith.truncf %266 : vector<8x8xf32> to vector<8x8xbf16>
    %268 = arith.truncf %251 : vector<8x16xf32> to vector<8x16xbf16>
    %cst_188 = arith.constant dense<0.000000e+00> : vector<8x16xf32>
    %269 = tpu.matmul %267, %268, %cst_188 {dimension_numbers = #tpu.dot_dimension_numbers<[1], [0], [0], [1], [0, 0, 1, 1], [], []>} : vector<8x8xbf16>, vector<8x16xbf16>, vector<8x16xf32> -> vector<8x16xf32>
    %c1_189 = arith.constant 1 : index
    %c0_190 = arith.constant 0 : index
    %c0_191 = arith.constant 0 : index
    %c0_192 = arith.constant 0 : index
    %270 = vector.load %arg7[%c1_189, %c0_190, %c0_191, %c0_192] : memref<2x2x16x32xbf16, #tpu.memory_space<vmem>>, vector<1x1x16x32xbf16>
    %271 = vector.shape_cast %270 : vector<1x1x16x32xbf16> to vector<16x32xbf16>
    %272 = arith.truncf %269 : vector<8x16xf32> to vector<8x16xbf16>
    %cst_193 = arith.constant dense<0.000000e+00> : vector<8x32xf32>
    %273 = tpu.matmul %272, %271, %cst_193 {dimension_numbers = #tpu.dot_dimension_numbers<[1], [0], [0], [1], [0, 0, 1, 1], [], []>} : vector<8x16xbf16>, vector<16x32xbf16>, vector<8x32xf32> -> vector<8x32xf32>
    %274 = vector.broadcast %225 : vector<1x32xf32> to vector<8x32xf32>
    %275 = arith.addf %274, %273 : vector<8x32xf32>
    %c1_194 = arith.constant 1 : index
    %c0_195 = arith.constant 0 : index
    %c1_196 = arith.constant 1 : index
    %c0_197 = arith.constant 0 : index
    %c0_198 = arith.constant 0 : index
    %276 = vector.load %arg5[%c1_194, %c0_195, %c1_196, %c0_197, %c0_198] : memref<2x3x2x32x16xbf16, #tpu.memory_space<vmem>>, vector<1x1x1x32x16xbf16>
    %277 = vector.shape_cast %276 : vector<1x1x1x32x16xbf16> to vector<32x16xbf16>
    %278 = arith.truncf %220 : vector<8x32xf32> to vector<8x32xbf16>
    %cst_199 = arith.constant dense<0.000000e+00> : vector<8x16xf32>
    %279 = tpu.matmul %278, %277, %cst_199 {dimension_numbers = #tpu.dot_dimension_numbers<[1], [0], [0], [1], [0, 0, 1, 1], [], []>} : vector<8x32xbf16>, vector<32x16xbf16>, vector<8x16xf32> -> vector<8x16xf32>
    %c1_200 = arith.constant 1 : index
    %c0_201 = arith.constant 0 : index
    %c1_202 = arith.constant 1 : index
    %c0_203 = arith.constant 0 : index
    %c0_204 = arith.constant 0 : index
    %280 = vector.load %arg6[%c1_200, %c0_201, %c1_202, %c0_203, %c0_204] : memref<2x3x2x1x16xf32, #tpu.memory_space<vmem>>, vector<1x1x1x1x16xf32>
    %281 = vector.shape_cast %280 : vector<1x1x1x1x16xf32> to vector<1x16xf32>
    %282 = vector.broadcast %281 : vector<1x16xf32> to vector<8x16xf32>
    %283 = arith.addf %279, %282 : vector<8x16xf32>
    %cst_205 = arith.constant 2.500000e-01 : f32
    %284 = vector.broadcast %cst_205 : f32 to vector<8x16xf32>
    %285 = arith.mulf %283, %284 : vector<8x16xf32>
    %c1_206 = arith.constant 1 : index
    %c1_207 = arith.constant 1 : index
    %c1_208 = arith.constant 1 : index
    %c0_209 = arith.constant 0 : index
    %c0_210 = arith.constant 0 : index
    %286 = vector.load %arg5[%c1_206, %c1_207, %c1_208, %c0_209, %c0_210] : memref<2x3x2x32x16xbf16, #tpu.memory_space<vmem>>, vector<1x1x1x32x16xbf16>
    %287 = vector.shape_cast %286 : vector<1x1x1x32x16xbf16> to vector<32x16xbf16>
    %288 = arith.truncf %220 : vector<8x32xf32> to vector<8x32xbf16>
    %cst_211 = arith.constant dense<0.000000e+00> : vector<8x16xf32>
    %289 = tpu.matmul %288, %287, %cst_211 {dimension_numbers = #tpu.dot_dimension_numbers<[1], [0], [0], [1], [0, 0, 1, 1], [], []>} : vector<8x32xbf16>, vector<32x16xbf16>, vector<8x16xf32> -> vector<8x16xf32>
    %c1_212 = arith.constant 1 : index
    %c1_213 = arith.constant 1 : index
    %c1_214 = arith.constant 1 : index
    %c0_215 = arith.constant 0 : index
    %c0_216 = arith.constant 0 : index
    %290 = vector.load %arg6[%c1_212, %c1_213, %c1_214, %c0_215, %c0_216] : memref<2x3x2x1x16xf32, #tpu.memory_space<vmem>>, vector<1x1x1x1x16xf32>
    %291 = vector.shape_cast %290 : vector<1x1x1x1x16xf32> to vector<1x16xf32>
    %292 = vector.broadcast %291 : vector<1x16xf32> to vector<8x16xf32>
    %293 = arith.addf %289, %292 : vector<8x16xf32>
    %c1_217 = arith.constant 1 : index
    %c2_218 = arith.constant 2 : index
    %c1_219 = arith.constant 1 : index
    %c0_220 = arith.constant 0 : index
    %c0_221 = arith.constant 0 : index
    %294 = vector.load %arg5[%c1_217, %c2_218, %c1_219, %c0_220, %c0_221] : memref<2x3x2x32x16xbf16, #tpu.memory_space<vmem>>, vector<1x1x1x32x16xbf16>
    %295 = vector.shape_cast %294 : vector<1x1x1x32x16xbf16> to vector<32x16xbf16>
    %296 = arith.truncf %220 : vector<8x32xf32> to vector<8x32xbf16>
    %cst_222 = arith.constant dense<0.000000e+00> : vector<8x16xf32>
    %297 = tpu.matmul %296, %295, %cst_222 {dimension_numbers = #tpu.dot_dimension_numbers<[1], [0], [0], [1], [0, 0, 1, 1], [], []>} : vector<8x32xbf16>, vector<32x16xbf16>, vector<8x16xf32> -> vector<8x16xf32>
    %c1_223 = arith.constant 1 : index
    %c2_224 = arith.constant 2 : index
    %c1_225 = arith.constant 1 : index
    %c0_226 = arith.constant 0 : index
    %c0_227 = arith.constant 0 : index
    %298 = vector.load %arg6[%c1_223, %c2_224, %c1_225, %c0_226, %c0_227] : memref<2x3x2x1x16xf32, #tpu.memory_space<vmem>>, vector<1x1x1x1x16xf32>
    %299 = vector.shape_cast %298 : vector<1x1x1x1x16xf32> to vector<1x16xf32>
    %300 = vector.broadcast %299 : vector<1x16xf32> to vector<8x16xf32>
    %301 = arith.addf %297, %300 : vector<8x16xf32>
    %302 = arith.truncf %285 : vector<8x16xf32> to vector<8x16xbf16>
    %303 = arith.truncf %293 : vector<8x16xf32> to vector<8x16xbf16>
    %cst_228 = arith.constant dense<0.000000e+00> : vector<8x8xf32>
    %304 = tpu.matmul %302, %303, %cst_228 {dimension_numbers = #tpu.dot_dimension_numbers<[1], [1], [0], [0], [0, 0, 1, 0], [], []>} : vector<8x16xbf16>, vector<8x16xbf16>, vector<8x8xf32> -> vector<8x8xf32>
    %305 = vector.broadcast %1 : vector<1x8xf32> to vector<8x8xf32>
    %306 = arith.addf %304, %305 : vector<8x8xf32>
    %cst_229 = arith.constant dense<0xFF800000> : vector<8xf32>
    %307 = vector.multi_reduction <maximumf>, %306, %cst_229 [1] : vector<8x8xf32> to vector<8xf32>
    %308 = vector.shape_cast %307 : vector<8xf32> to vector<8x1xf32>
    %309 = vector.broadcast %308 : vector<8x1xf32> to vector<8x8xf32>
    %310 = arith.subf %306, %309 : vector<8x8xf32>
    %311 = math.exp %310 : vector<8x8xf32>
    %cst_230 = arith.constant dense<0.000000e+00> : vector<8xf32>
    %312 = vector.multi_reduction <add>, %311, %cst_230 [1] : vector<8x8xf32> to vector<8xf32>
    %313 = vector.shape_cast %312 : vector<8xf32> to vector<8x1xf32>
    %314 = tpu.reciprocal %313 {approx = true} : vector<8x1xf32> -> vector<8x1xf32>
    %315 = vector.broadcast %314 : vector<8x1xf32> to vector<8x8xf32>
    %316 = arith.mulf %311, %315 : vector<8x8xf32>
    %317 = arith.truncf %316 : vector<8x8xf32> to vector<8x8xbf16>
    %318 = arith.truncf %301 : vector<8x16xf32> to vector<8x16xbf16>
    %cst_231 = arith.constant dense<0.000000e+00> : vector<8x16xf32>
    %319 = tpu.matmul %317, %318, %cst_231 {dimension_numbers = #tpu.dot_dimension_numbers<[1], [0], [0], [1], [0, 0, 1, 1], [], []>} : vector<8x8xbf16>, vector<8x16xbf16>, vector<8x16xf32> -> vector<8x16xf32>
    %c1_232 = arith.constant 1 : index
    %c1_233 = arith.constant 1 : index
    %c0_234 = arith.constant 0 : index
    %c0_235 = arith.constant 0 : index
    %320 = vector.load %arg7[%c1_232, %c1_233, %c0_234, %c0_235] : memref<2x2x16x32xbf16, #tpu.memory_space<vmem>>, vector<1x1x16x32xbf16>
    %321 = vector.shape_cast %320 : vector<1x1x16x32xbf16> to vector<16x32xbf16>
    %322 = arith.truncf %319 : vector<8x16xf32> to vector<8x16xbf16>
    %cst_236 = arith.constant dense<0.000000e+00> : vector<8x32xf32>
    %323 = tpu.matmul %322, %321, %cst_236 {dimension_numbers = #tpu.dot_dimension_numbers<[1], [0], [0], [1], [0, 0, 1, 1], [], []>} : vector<8x16xbf16>, vector<16x32xbf16>, vector<8x32xf32> -> vector<8x32xf32>
    %324 = arith.addf %275, %323 : vector<8x32xf32>
    %325 = arith.addf %324, %220 : vector<8x32xf32>
    %c1_237 = arith.constant 1 : index
    %c0_238 = arith.constant 0 : index
    %c0_239 = arith.constant 0 : index
    %326 = vector.load %arg9[%c1_237, %c0_238, %c0_239] : memref<2x1x32xf32, #tpu.memory_space<vmem>>, vector<1x1x32xf32>
    %327 = vector.shape_cast %326 : vector<1x1x32xf32> to vector<1x32xf32>
    %c1_240 = arith.constant 1 : index
    %c0_241 = arith.constant 0 : index
    %c0_242 = arith.constant 0 : index
    %328 = vector.load %arg10[%c1_240, %c0_241, %c0_242] : memref<2x1x32xf32, #tpu.memory_space<vmem>>, vector<1x1x32xf32>
    %329 = vector.shape_cast %328 : vector<1x1x32xf32> to vector<1x32xf32>
    %cst_243 = arith.constant dense<0.000000e+00> : vector<8xf32>
    %330 = vector.multi_reduction <add>, %325, %cst_243 [1] : vector<8x32xf32> to vector<8xf32>
    %331 = vector.shape_cast %330 : vector<8xf32> to vector<8x1xf32>
    %cst_244 = arith.constant 3.200000e+01 : f32
    %332 = vector.broadcast %cst_244 : f32 to vector<8x1xf32>
    %333 = arith.divf %331, %332 : vector<8x1xf32>
    %334 = vector.broadcast %333 : vector<8x1xf32> to vector<8x32xf32>
    %335 = arith.subf %325, %334 : vector<8x32xf32>
    %336 = vector.broadcast %333 : vector<8x1xf32> to vector<8x32xf32>
    %337 = arith.subf %325, %336 : vector<8x32xf32>
    %338 = arith.mulf %335, %337 : vector<8x32xf32>
    %cst_245 = arith.constant dense<0.000000e+00> : vector<8xf32>
    %339 = vector.multi_reduction <add>, %338, %cst_245 [1] : vector<8x32xf32> to vector<8xf32>
    %340 = vector.shape_cast %339 : vector<8xf32> to vector<8x1xf32>
    %cst_246 = arith.constant 3.200000e+01 : f32
    %341 = vector.broadcast %cst_246 : f32 to vector<8x1xf32>
    %342 = arith.divf %340, %341 : vector<8x1xf32>
    %343 = vector.broadcast %333 : vector<8x1xf32> to vector<8x32xf32>
    %344 = arith.subf %325, %343 : vector<8x32xf32>
    %cst_247 = arith.constant 9.99999996E-13 : f32
    %345 = vector.broadcast %cst_247 : f32 to vector<8x1xf32>
    %346 = arith.addf %342, %345 : vector<8x1xf32>
    %347 = math.rsqrt %346 : vector<8x1xf32>
    %348 = vector.broadcast %347 : vector<8x1xf32> to vector<8x32xf32>
    %349 = arith.mulf %344, %348 : vector<8x32xf32>
    %350 = vector.broadcast %327 : vector<1x32xf32> to vector<8x32xf32>
    %351 = arith.mulf %349, %350 : vector<8x32xf32>
    %352 = vector.broadcast %329 : vector<1x32xf32> to vector<8x32xf32>
    %353 = arith.addf %351, %352 : vector<8x32xf32>
    %c1_248 = arith.constant 1 : index
    %c0_249 = arith.constant 0 : index
    %c0_250 = arith.constant 0 : index
    %354 = vector.load %arg11[%c1_248, %c0_249, %c0_250] : memref<2x32x64xbf16, #tpu.memory_space<vmem>>, vector<1x32x64xbf16>
    %355 = vector.shape_cast %354 : vector<1x32x64xbf16> to vector<32x64xbf16>
    %356 = arith.truncf %353 : vector<8x32xf32> to vector<8x32xbf16>
    %cst_251 = arith.constant dense<0.000000e+00> : vector<8x64xf32>
    %357 = tpu.matmul %356, %355, %cst_251 {dimension_numbers = #tpu.dot_dimension_numbers<[1], [0], [0], [1], [0, 0, 1, 1], [], []>} : vector<8x32xbf16>, vector<32x64xbf16>, vector<8x64xf32> -> vector<8x64xf32>
    %c1_252 = arith.constant 1 : index
    %c0_253 = arith.constant 0 : index
    %c0_254 = arith.constant 0 : index
    %358 = vector.load %arg12[%c1_252, %c0_253, %c0_254] : memref<2x1x64xf32, #tpu.memory_space<vmem>>, vector<1x1x64xf32>
    %359 = vector.shape_cast %358 : vector<1x1x64xf32> to vector<1x64xf32>
    %360 = vector.broadcast %359 : vector<1x64xf32> to vector<8x64xf32>
    %361 = arith.addf %357, %360 : vector<8x64xf32>
    %362 = arith.mulf %361, %361 : vector<8x64xf32>
    %363 = arith.mulf %361, %362 : vector<8x64xf32>
    %cst_255 = arith.constant 4.471500e-02 : f32
    %364 = vector.broadcast %cst_255 : f32 to vector<8x64xf32>
    %365 = arith.mulf %364, %363 : vector<8x64xf32>
    %366 = arith.addf %361, %365 : vector<8x64xf32>
    %cst_256 = arith.constant 0.797884583 : f32
    %367 = vector.broadcast %cst_256 : f32 to vector<8x64xf32>
    %368 = arith.mulf %367, %366 : vector<8x64xf32>
    %369 = math.tanh %368 : vector<8x64xf32>
    %cst_257 = arith.constant 1.000000e+00 : f32
    %370 = vector.broadcast %cst_257 : f32 to vector<8x64xf32>
    %371 = arith.addf %370, %369 : vector<8x64xf32>
    %cst_258 = arith.constant 5.000000e-01 : f32
    %372 = vector.broadcast %cst_258 : f32 to vector<8x64xf32>
    %373 = arith.mulf %372, %371 : vector<8x64xf32>
    %374 = arith.mulf %361, %373 : vector<8x64xf32>
    %c1_259 = arith.constant 1 : index
    %c0_260 = arith.constant 0 : index
    %c0_261 = arith.constant 0 : index
    %375 = vector.load %arg13[%c1_259, %c0_260, %c0_261] : memref<2x64x32xbf16, #tpu.memory_space<vmem>>, vector<1x64x32xbf16>
    %376 = vector.shape_cast %375 : vector<1x64x32xbf16> to vector<64x32xbf16>
    %377 = arith.truncf %374 : vector<8x64xf32> to vector<8x64xbf16>
    %cst_262 = arith.constant dense<0.000000e+00> : vector<8x32xf32>
    %378 = tpu.matmul %377, %376, %cst_262 {dimension_numbers = #tpu.dot_dimension_numbers<[1], [0], [0], [1], [0, 0, 1, 1], [], []>} : vector<8x64xbf16>, vector<64x32xbf16>, vector<8x32xf32> -> vector<8x32xf32>
    %c1_263 = arith.constant 1 : index
    %c0_264 = arith.constant 0 : index
    %c0_265 = arith.constant 0 : index
    %379 = vector.load %arg14[%c1_263, %c0_264, %c0_265] : memref<2x1x32xf32, #tpu.memory_space<vmem>>, vector<1x1x32xf32>
    %380 = vector.shape_cast %379 : vector<1x1x32xf32> to vector<1x32xf32>
    %381 = vector.broadcast %380 : vector<1x32xf32> to vector<8x32xf32>
    %382 = arith.addf %378, %381 : vector<8x32xf32>
    %383 = arith.addf %382, %353 : vector<8x32xf32>
    %c1_266 = arith.constant 1 : index
    %c0_267 = arith.constant 0 : index
    %c0_268 = arith.constant 0 : index
    %384 = vector.load %arg15[%c1_266, %c0_267, %c0_268] : memref<2x1x32xf32, #tpu.memory_space<vmem>>, vector<1x1x32xf32>
    %385 = vector.shape_cast %384 : vector<1x1x32xf32> to vector<1x32xf32>
    %c1_269 = arith.constant 1 : index
    %c0_270 = arith.constant 0 : index
    %c0_271 = arith.constant 0 : index
    %386 = vector.load %arg16[%c1_269, %c0_270, %c0_271] : memref<2x1x32xf32, #tpu.memory_space<vmem>>, vector<1x1x32xf32>
    %387 = vector.shape_cast %386 : vector<1x1x32xf32> to vector<1x32xf32>
    %cst_272 = arith.constant dense<0.000000e+00> : vector<8xf32>
    %388 = vector.multi_reduction <add>, %383, %cst_272 [1] : vector<8x32xf32> to vector<8xf32>
    %389 = vector.shape_cast %388 : vector<8xf32> to vector<8x1xf32>
    %cst_273 = arith.constant 3.200000e+01 : f32
    %390 = vector.broadcast %cst_273 : f32 to vector<8x1xf32>
    %391 = arith.divf %389, %390 : vector<8x1xf32>
    %392 = vector.broadcast %391 : vector<8x1xf32> to vector<8x32xf32>
    %393 = arith.subf %383, %392 : vector<8x32xf32>
    %394 = vector.broadcast %391 : vector<8x1xf32> to vector<8x32xf32>
    %395 = arith.subf %383, %394 : vector<8x32xf32>
    %396 = arith.mulf %393, %395 : vector<8x32xf32>
    %cst_274 = arith.constant dense<0.000000e+00> : vector<8xf32>
    %397 = vector.multi_reduction <add>, %396, %cst_274 [1] : vector<8x32xf32> to vector<8xf32>
    %398 = vector.shape_cast %397 : vector<8xf32> to vector<8x1xf32>
    %cst_275 = arith.constant 3.200000e+01 : f32
    %399 = vector.broadcast %cst_275 : f32 to vector<8x1xf32>
    %400 = arith.divf %398, %399 : vector<8x1xf32>
    %401 = vector.broadcast %391 : vector<8x1xf32> to vector<8x32xf32>
    %402 = arith.subf %383, %401 : vector<8x32xf32>
    %cst_276 = arith.constant 9.99999996E-13 : f32
    %403 = vector.broadcast %cst_276 : f32 to vector<8x1xf32>
    %404 = arith.addf %400, %403 : vector<8x1xf32>
    %405 = math.rsqrt %404 : vector<8x1xf32>
    %406 = vector.broadcast %405 : vector<8x1xf32> to vector<8x32xf32>
    %407 = arith.mulf %402, %406 : vector<8x32xf32>
    %408 = vector.broadcast %385 : vector<1x32xf32> to vector<8x32xf32>
    %409 = arith.mulf %407, %408 : vector<8x32xf32>
    %410 = vector.broadcast %387 : vector<1x32xf32> to vector<8x32xf32>
    %411 = arith.addf %409, %410 : vector<8x32xf32>
    %c0_277 = arith.constant 0 : index
    %c2_278 = arith.constant 2 : index
    %c0_279 = arith.constant 0 : index
    %c0_280 = arith.constant 0 : index
    %412 = vector.load %arg25[%c0_277, %c2_278, %c0_279, %c0_280] : memref<1x3x8x32xf32, #tpu.memory_space<vmem>>, vector<1x1x8x32xf32>
    %413 = vector.shape_cast %412 : vector<1x1x8x32xf32> to vector<8x32xf32>
    %414 = vector.shape_cast %411 : vector<8x32xf32> to vector<1x1x8x32xf32>
    tpu.vector_store %arg25[%c0_277, %c2_278, %c0_279, %c0_280], %414 {strides = array<i32>} : memref<1x3x8x32xf32, #tpu.memory_space<vmem>>, vector<1x1x8x32xf32>,
    %415 = vector.extract_strided_slice %411 {offsets = [0, 0], sizes = [1, 32], strides = [1, 1]} : vector<8x32xf32> to vector<1x32xf32>
    %c0_281 = arith.constant 0 : index
    %c0_282 = arith.constant 0 : index
    %416 = vector.load %arg17[%c0_281, %c0_282] : memref<32x32xbf16, #tpu.memory_space<vmem>>, vector<32x32xbf16>
    %417 = arith.truncf %415 : vector<1x32xf32> to vector<1x32xbf16>
    %cst_283 = arith.constant dense<0.000000e+00> : vector<1x32xf32>
    %418 = tpu.matmul %417, %416, %cst_283 {dimension_numbers = #tpu.dot_dimension_numbers<[1], [0], [0], [1], [0, 0, 1, 1], [], []>} : vector<1x32xbf16>, vector<32x32xbf16>, vector<1x32xf32> -> vector<1x32xf32>
    %c0_284 = arith.constant 0 : index
    %c0_285 = arith.constant 0 : index
    %419 = vector.load %arg18[%c0_284, %c0_285] : memref<1x32xf32, #tpu.memory_space<vmem>>, vector<1x32xf32>
    %420 = arith.addf %418, %419 : vector<1x32xf32>
    %421 = math.tanh %420 : vector<1x32xf32>
    %c0_286 = arith.constant 0 : index
    %c0_287 = arith.constant 0 : index
    %422 = vector.load %arg19[%c0_286, %c0_287] : memref<32x128xbf16, #tpu.memory_space<vmem>>, vector<32x128xbf16>
    %423 = arith.truncf %421 : vector<1x32xf32> to vector<1x32xbf16>
    %cst_288 = arith.constant dense<0.000000e+00> : vector<1x128xf32>
    %424 = tpu.matmul %423, %422, %cst_288 {dimension_numbers = #tpu.dot_dimension_numbers<[1], [0], [0], [1], [0, 0, 1, 1], [], []>} : vector<1x32xbf16>, vector<32x128xbf16>, vector<1x128xf32> -> vector<1x128xf32>
    %c0_289 = arith.constant 0 : index
    %c0_290 = arith.constant 0 : index
    %425 = vector.load %arg20[%c0_289, %c0_290] : memref<1x128xf32, #tpu.memory_space<vmem>>, vector<1x128xf32>
    %426 = arith.addf %424, %425 : vector<1x128xf32>
    %c0_291 = arith.constant 0 : index
    %c0_292 = arith.constant 0 : index
    %c0_293 = arith.constant 0 : index
    %427 = vector.load %arg26[%c0_291, %c0_292, %c0_293] : memref<1x1x128xf32, #tpu.memory_space<vmem>>, vector<1x1x128xf32>
    %428 = vector.shape_cast %427 : vector<1x1x128xf32> to vector<1x128xf32>
    %429 = vector.shape_cast %426 : vector<1x128xf32> to vector<1x1x128xf32>
    tpu.vector_store %arg26[%c0_291, %c0_292, %c0_293], %429 {strides = array<i32>} : memref<1x1x128xf32, #tpu.memory_space<vmem>>, vector<1x1x128xf32>,
    %c0_294 = arith.constant 0 : index
    %c0_295 = arith.constant 0 : index
    %430 = vector.load %arg21[%c0_294, %c0_295] : memref<32x32xbf16, #tpu.memory_space<vmem>>, vector<32x32xbf16>
    %431 = arith.truncf %421 : vector<1x32xf32> to vector<1x32xbf16>
    %cst_296 = arith.constant dense<0.000000e+00> : vector<1x32xf32>
    %432 = tpu.matmul %431, %430, %cst_296 {dimension_numbers = #tpu.dot_dimension_numbers<[1], [0], [0], [1], [0, 0, 1, 1], [], []>} : vector<1x32xbf16>, vector<32x32xbf16>, vector<1x32xf32> -> vector<1x32xf32>
    %c0_297 = arith.constant 0 : index
    %c0_298 = arith.constant 0 : index
    %433 = vector.load %arg22[%c0_297, %c0_298] : memref<1x32xf32, #tpu.memory_space<vmem>>, vector<1x32xf32>
    %434 = arith.addf %432, %433 : vector<1x32xf32>
    %cst_299 = arith.constant 0.000000e+00 : f32
    %435 = vector.broadcast %cst_299 : f32 to vector<1x32xf32>
    %436 = arith.maximumf %434, %435 : vector<1x32xf32>
    %c0_300 = arith.constant 0 : index
    %c0_301 = arith.constant 0 : index
    %437 = vector.load %arg23[%c0_300, %c0_301] : memref<32x128xbf16, #tpu.memory_space<vmem>>, vector<32x128xbf16>
    %438 = arith.truncf %436 : vector<1x32xf32> to vector<1x32xbf16>
    %cst_302 = arith.constant dense<0.000000e+00> : vector<1x128xf32>
    %439 = tpu.matmul %438, %437, %cst_302 {dimension_numbers = #tpu.dot_dimension_numbers<[1], [0], [0], [1], [0, 0, 1, 1], [], []>} : vector<1x32xbf16>, vector<32x128xbf16>, vector<1x128xf32> -> vector<1x128xf32>
    %c0_303 = arith.constant 0 : index
    %c0_304 = arith.constant 0 : index
    %440 = vector.load %arg24[%c0_303, %c0_304] : memref<1x128xf32, #tpu.memory_space<vmem>>, vector<1x128xf32>
    %441 = arith.addf %439, %440 : vector<1x128xf32>
    %c0_305 = arith.constant 0 : index
    %c0_306 = arith.constant 0 : index
    %c0_307 = arith.constant 0 : index
    %442 = vector.load %arg27[%c0_305, %c0_306, %c0_307] : memref<1x1x128xf32, #tpu.memory_space<vmem>>, vector<1x1x128xf32>
    %443 = vector.shape_cast %442 : vector<1x1x128xf32> to vector<1x128xf32>
    %444 = vector.shape_cast %441 : vector<1x128xf32> to vector<1x1x128xf32>
    tpu.vector_store %arg27[%c0_305, %c0_306, %c0_307], %444 {strides = array<i32>} : memref<1x1x128xf32, #tpu.memory_space<vmem>>, vector<1x1x128xf32>,
    return
  }
  func.func @transform_0(%arg0: i32) -> (i32, i32, i32) {
    %c0_i32 = arith.constant 0 : i32
    %c0_i32_0 = arith.constant 0 : i32
    %c0_i32_1 = arith.constant 0 : i32
    return %arg0, %c0_i32, %c0_i32_0 : i32, i32, i32
  }
  func.func @transform_1(%arg0: i32) -> (i32, i32, i32) {
    %c0_i32 = arith.constant 0 : i32
    %c0_i32_0 = arith.constant 0 : i32
    %c0_i32_1 = arith.constant 0 : i32
    return %arg0, %c0_i32, %c0_i32_0 : i32, i32, i32
  }
  func.func @transform_2(%arg0: i32) -> (i32, i32) {
    %c0_i32 = arith.constant 0 : i32
    %c0_i32_0 = arith.constant 0 : i32
    %c0_i32_1 = arith.constant 0 : i32
    return %c0_i32, %c0_i32_0 : i32, i32
  }
  func.func @transform_3(%arg0: i32) -> (i32, i32) {
    %c0_i32 = arith.constant 0 : i32
    %c0_i32_0 = arith.constant 0 : i32
    %c0_i32_1 = arith.constant 0 : i32
    return %c0_i32, %c0_i32_0 : i32, i32
  }
  func.func @transform_4(%arg0: i32) -> (i32, i32, i32, i32, i32) {
    %c0_i32 = arith.constant 0 : i32
    %c0_i32_0 = arith.constant 0 : i32
    %c0_i32_1 = arith.constant 0 : i32
    %c0_i32_2 = arith.constant 0 : i32
    %c0_i32_3 = arith.constant 0 : i32
    %c0_i32_4 = arith.constant 0 : i32
    return %c0_i32, %c0_i32_0, %c0_i32_1, %c0_i32_2, %c0_i32_3 : i32, i32, i32, i32, i32
  }
  func.func @transform_5(%arg0: i32) -> (i32, i32, i32, i32, i32) {
    %c0_i32 = arith.constant 0 : i32
    %c0_i32_0 = arith.constant 0 : i32
    %c0_i32_1 = arith.constant 0 : i32
    %c0_i32_2 = arith.constant 0 : i32
    %c0_i32_3 = arith.constant 0 : i32
    %c0_i32_4 = arith.constant 0 : i32
    return %c0_i32, %c0_i32_0, %c0_i32_1, %c0_i32_2, %c0_i32_3 : i32, i32, i32, i32, i32
  }
  func.func @transform_6(%arg0: i32) -> (i32, i32, i32, i32) {
    %c0_i32 = arith.constant 0 : i32
    %c0_i32_0 = arith.constant 0 : i32
    %c0_i32_1 = arith.constant 0 : i32
    %c0_i32_2 = arith.constant 0 : i32
    %c0_i32_3 = arith.constant 0 : i32
    return %c0_i32, %c0_i32_0, %c0_i32_1, %c0_i32_2 : i32, i32, i32, i32
  }
  func.func @transform_7(%arg0: i32) -> (i32, i32, i32) {
    %c0_i32 = arith.constant 0 : i32
    %c0_i32_0 = arith.constant 0 : i32
    %c0_i32_1 = arith.constant 0 : i32
    %c0_i32_2 = arith.constant 0 : i32
    return %c0_i32, %c0_i32_0, %c0_i32_1 : i32, i32, i32
  }
  func.func @transform_8(%arg0: i32) -> (i32, i32, i32) {
    %c0_i32 = arith.constant 0 : i32
    %c0_i32_0 = arith.constant 0 : i32
    %c0_i32_1 = arith.constant 0 : i32
    %c0_i32_2 = arith.constant 0 : i32
    return %c0_i32, %c0_i32_0, %c0_i32_1 : i32, i32, i32
  }
  func.func @transform_9(%arg0: i32) -> (i32, i32, i32) {
    %c0_i32 = arith.constant 0 : i32
    %c0_i32_0 = arith.constant 0 : i32
    %c0_i32_1 = arith.constant 0 : i32
    %c0_i32_2 = arith.constant 0 : i32
    return %c0_i32, %c0_i32_0, %c0_i32_1 : i32, i32, i32
  }
  func.func @transform_10(%arg0: i32) -> (i32, i32, i32) {
    %c0_i32 = arith.constant 0 : i32
    %c0_i32_0 = arith.constant 0 : i32
    %c0_i32_1 = arith.constant 0 : i32
    %c0_i32_2 = arith.constant 0 : i32
    return %c0_i32, %c0_i32_0, %c0_i32_1 : i32, i32, i32
  }
  func.func @transform_11(%arg0: i32) -> (i32, i32, i32) {
    %c0_i32 = arith.constant 0 : i32
    %c0_i32_0 = arith.constant 0 : i32
    %c0_i32_1 = arith.constant 0 : i32
    %c0_i32_2 = arith.constant 0 : i32
    return %c0_i32, %c0_i32_0, %c0_i32_1 : i32, i32, i32
  }
  func.func @transform_12(%arg0: i32) -> (i32, i32, i32) {
    %c0_i32 = arith.constant 0 : i32
    %c0_i32_0 = arith.constant 0 : i32
    %c0_i32_1 = arith.constant 0 : i32
    %c0_i32_2 = arith.constant 0 : i32
    return %c0_i32, %c0_i32_0, %c0_i32_1 : i32, i32, i32
  }
  func.func @transform_13(%arg0: i32) -> (i32, i32, i32) {
    %c0_i32 = arith.constant 0 : i32
    %c0_i32_0 = arith.constant 0 : i32
    %c0_i32_1 = arith.constant 0 : i32
    %c0_i32_2 = arith.constant 0 : i32
    return %c0_i32, %c0_i32_0, %c0_i32_1 : i32, i32, i32
  }
  func.func @transform_14(%arg0: i32) -> (i32, i32, i32) {
    %c0_i32 = arith.constant 0 : i32
    %c0_i32_0 = arith.constant 0 : i32
    %c0_i32_1 = arith.constant 0 : i32
    %c0_i32_2 = arith.constant 0 : i32
    return %c0_i32, %c0_i32_0, %c0_i32_1 : i32, i32, i32
  }
  func.func @transform_15(%arg0: i32) -> (i32, i32, i32) {
    %c0_i32 = arith.constant 0 : i32
    %c0_i32_0 = arith.constant 0 : i32
    %c0_i32_1 = arith.constant 0 : i32
    %c0_i32_2 = arith.constant 0 : i32
    return %c0_i32, %c0_i32_0, %c0_i32_1 : i32, i32, i32
  }
  func.func @transform_16(%arg0: i32) -> (i32, i32) {
    %c0_i32 = arith.constant 0 : i32
    %c0_i32_0 = arith.constant 0 : i32
    %c0_i32_1 = arith.constant 0 : i32
    return %c0_i32, %c0_i32_0 : i32, i32
  }
  func.func @transform_17(%arg0: i32) -> (i32, i32) {
    %c0_i32 = arith.constant 0 : i32
    %c0_i32_0 = arith.constant 0 : i32
    %c0_i32_1 = arith.constant 0 : i32
    return %c0_i32, %c0_i32_0 : i32, i32
  }
  func.func @transform_18(%arg0: i32) -> (i32, i32) {
    %c0_i32 = arith.constant 0 : i32
    %c0_i32_0 = arith.constant 0 : i32
    %c0_i32_1 = arith.constant 0 : i32
    return %c0_i32, %c0_i32_0 : i32, i32
  }
  func.func @transform_19(%arg0: i32) -> (i32, i32) {
    %c0_i32 = arith.constant 0 : i32
    %c0_i32_0 = arith.constant 0 : i32
    %c0_i32_1 = arith.constant 0 : i32
    return %c0_i32, %c0_i32_0 : i32, i32
  }
  func.func @transform_20(%arg0: i32) -> (i32, i32) {
    %c0_i32 = arith.constant 0 : i32
    %c0_i32_0 = arith.constant 0 : i32
    %c0_i32_1 = arith.constant 0 : i32
    return %c0_i32, %c0_i32_0 : i32, i32
  }
  func.func @transform_21(%arg0: i32) -> (i32, i32) {
    %c0_i32 = arith.constant 0 : i32
    %c0_i32_0 = arith.constant 0 : i32
    %c0_i32_1 = arith.constant 0 : i32
    return %c0_i32, %c0_i32_0 : i32, i32
  }
  func.func @transform_22(%arg0: i32) -> (i32, i32) {
    %c0_i32 = arith.constant 0 : i32
    %c0_i32_0 = arith.constant 0 : i32
    %c0_i32_1 = arith.constant 0 : i32
    return %c0_i32, %c0_i32_0 : i32, i32
  }
  func.func @transform_23(%arg0: i32) -> (i32, i32) {
    %c0_i32 = arith.constant 0 : i32
    %c0_i32_0 = arith.constant 0 : i32
    %c0_i32_1 = arith.constant 0 : i32
    return %c0_i32, %c0_i32_0 : i32, i32
  }
  func.func @transform_24(%arg0: i32) -> (i32, i32, i32, i32) {
    %c0_i32 = arith.constant 0 : i32
    %c0_i32_0 = arith.constant 0 : i32
    %c0_i32_1 = arith.constant 0 : i32
    %c0_i32_2 = arith.constant 0 : i32
    return %arg0, %c0_i32, %c0_i32_0, %c0_i32_1 : i32, i32, i32, i32
  }
  func.func @transform_25(%arg0: i32) -> (i32, i32, i32) {
    %c0_i32 = arith.constant 0 : i32
    %c0_i32_0 = arith.constant 0 : i32
    %c0_i32_1 = arith.constant 0 : i32
    return %arg0, %c0_i32, %c0_i32_0 : i32, i32, i32
  }
  func.func @transform_26(%arg0: i32) -> (i32, i32, i32) {
    %c0_i32 = arith.constant 0 : i32
    %c0_i32_0 = arith.constant 0 : i32
    %c0_i32_1 = arith.constant 0 : i32
    return %arg0, %c0_i32, %c0_i32_0 : i32, i32, i32
  }
}

</mosaic_0001>

<llo_original>
// kernel: tpu_custom_call.1
$region0: #{tpu_custom_call.1}
  #allocation0 [shape = 'u32[]', space=smem, size = 0x4, offset = 0x4, fixed_abs, tag = 'smem constant byte address 0x4 - core index']
  #allocation1 [shape = 'u32[144,128]{1,0:T(1,128)}', space=vmem, size = 0x12000, scoped, tag = 'internal scratch']
  %s0 = inlined_call_operand.vmem [shape: f32[2,8,32], index: 0, kind: input, shape index: {}]
  %s1 = inlined_call_operand.vmem [shape: f32[2,1,8], index: 1, kind: input, shape index: {}]
  %s2 = inlined_call_operand.vmem [shape: f32[1,32], index: 2, kind: input, shape index: {}]
  %s3 = inlined_call_operand.vmem [shape: f32[1,32], index: 3, kind: input, shape index: {}]
  %s4 = inlined_call_operand.vmem [shape: bf16[2,3,2,32,16], index: 4, kind: input, shape index: {}]
  %s5 = inlined_call_operand.vmem [shape: f32[2,3,2,1,16], index: 5, kind: input, shape index: {}]
  %s6 = inlined_call_operand.vmem [shape: bf16[2,2,16,32], index: 6, kind: input, shape index: {}]
  %s7 = inlined_call_operand.vmem [shape: f32[2,1,32], index: 7, kind: input, shape index: {}]
  %s8 = inlined_call_operand.vmem [shape: f32[2,1,32], index: 8, kind: input, shape index: {}]
  %s9 = inlined_call_operand.vmem [shape: f32[2,1,32], index: 9, kind: input, shape index: {}]
  %s10 = inlined_call_operand.vmem [shape: bf16[2,32,64], index: 10, kind: input, shape index: {}]
  %s11 = inlined_call_operand.vmem [shape: f32[2,1,64], index: 11, kind: input, shape index: {}]
  %s12 = inlined_call_operand.vmem [shape: bf16[2,64,32], index: 12, kind: input, shape index: {}]
  %s13 = inlined_call_operand.vmem [shape: f32[2,1,32], index: 13, kind: input, shape index: {}]
  %s14 = inlined_call_operand.vmem [shape: f32[2,1,32], index: 14, kind: input, shape index: {}]
  %s15 = inlined_call_operand.vmem [shape: f32[2,1,32], index: 15, kind: input, shape index: {}]
  %s16 = inlined_call_operand.vmem [shape: bf16[32,32], index: 16, kind: input, shape index: {}]
  %s17 = inlined_call_operand.vmem [shape: f32[1,32], index: 17, kind: input, shape index: {}]
  %s18 = inlined_call_operand.vmem [shape: bf16[32,128], index: 18, kind: input, shape index: {}]
  %s19 = inlined_call_operand.vmem [shape: f32[1,128], index: 19, kind: input, shape index: {}]
  %s20 = inlined_call_operand.vmem [shape: bf16[32,32], index: 20, kind: input, shape index: {}]
  %s21 = inlined_call_operand.vmem [shape: f32[1,32], index: 21, kind: input, shape index: {}]
  %s22 = inlined_call_operand.vmem [shape: bf16[32,128], index: 22, kind: input, shape index: {}]
  %s23 = inlined_call_operand.vmem [shape: f32[1,128], index: 23, kind: input, shape index: {}]
  %s24 = inlined_call_operand.hbm [shape: f32[2,3,8,32], index: 24, kind: output, shape index: {0}]
  %s25 = inlined_call_operand.hbm [shape: f32[2,1,128], index: 25, kind: output, shape index: {1}]
  %s26 = inlined_call_operand.hbm [shape: f32[2,1,128], index: 26, kind: output, shape index: {2}]
  %27 = xla_tuple %s24, %s25, %s26
  %s28 = sld [smem:[#allocation0]]
  $region145: #{tpu_custom_call.1} parent=0
    _
  %s30 = ssub.s32 1, %s28
  %s31 = scalar_select 0, %s30, %s28
  $region1: #{tpu_custom_call.1} parent=0
    #allocation2 [shape = 'u8[24576]{0}', space=vmem, size = 0x6000, scoped, tag = 'output window, operand 0']
    #allocation3 [shape = 's32[2]{0}', space=sflag, size = 0x8, scoped, tag = 'scoped memory for tpu_custom_call.1']
    #allocation4 [shape = 'u8[1024]{0}', space=vmem, size = 0x400, scoped, tag = 'output window, operand 1']
    #allocation5 [shape = 's32[2]{0}', space=sflag, size = 0x8, scoped, tag = 'scoped memory for tpu_custom_call.1']
    #allocation6 [shape = 'u8[1024]{0}', space=vmem, size = 0x400, scoped, tag = 'output window, operand 2']
    %32 = vsyncpa [#allocation3], 0
    %s33 = scalar_lea.sflag [#allocation3], 1
    %34 = vsyncpa %s33, 0
    %35 = vsyncpa [#allocation5], 0
    %s36 = scalar_lea.sflag [#allocation5], 1
    %37 = vsyncpa %s36, 0
    loop: start=0, step=1, limit=4
    $region2: #{tpu_custom_call.1} parent=1 // loop_pre_header
      _
    $region3: #{tpu_custom_call.1} parent=1 // loop_header
      %s39 = sphi 0, %s43
      %p40 = scmp.ge.s32.totalorder %s39, 4
      %s49 = sphi 0, %s51
      %s52 = sphi 0, %s49
      %s53 = sphi 0, %s52
      %s69 = sphi 0, %s53
      %s75 = sphi 0, %s77
      %s78 = sphi 0, %s75
      %s79 = sphi 0, %s78
      %s95 = sphi 0, %s79
      %s99 = sphi 0, %s99
      %s101 = sphi 0, %s99
      %s102 = sphi 0, %s101
      %s116 = sphi 0, %s102
      %s120 = sphi 0, %s120
      %s122 = sphi 0, %s120
      %s123 = sphi 0, %s122
      %s137 = sphi 0, %s123
      %s141 = sphi 0, %s141
      %s143 = sphi 0, %s141
      %s144 = sphi 0, %s143
      %s158 = sphi 0, %s144
      %s162 = sphi 0, %s162
      %s164 = sphi 0, %s162
      %s165 = sphi 0, %s164
      %s179 = sphi 0, %s165
      %s183 = sphi 0, %s183
      %s185 = sphi 0, %s183
      %s186 = sphi 0, %s185
      %s200 = sphi 0, %s186
      %s204 = sphi 0, %s204
      %s206 = sphi 0, %s204
      %s207 = sphi 0, %s206
      %s221 = sphi 0, %s207
      %s225 = sphi 0, %s225
      %s227 = sphi 0, %s225
      %s228 = sphi 0, %s227
      %s242 = sphi 0, %s228
      %s246 = sphi 0, %s246
      %s248 = sphi 0, %s246
      %s249 = sphi 0, %s248
      %s263 = sphi 0, %s249
      %s267 = sphi 0, %s267
      %s269 = sphi 0, %s267
      %s270 = sphi 0, %s269
      %s284 = sphi 0, %s270
      %s288 = sphi 0, %s288
      %s290 = sphi 0, %s288
      %s291 = sphi 0, %s290
      %s305 = sphi 0, %s291
      %s309 = sphi 0, %s309
      %s311 = sphi 0, %s309
      %s312 = sphi 0, %s311
      %s326 = sphi 0, %s312
      %s330 = sphi 0, %s330
      %s332 = sphi 0, %s330
      %s333 = sphi 0, %s332
      %s347 = sphi 0, %s333
      %s351 = sphi 0, %s351
      %s353 = sphi 0, %s351
      %s354 = sphi 0, %s353
      %s368 = sphi 0, %s354
      %s372 = sphi 0, %s372
      %s374 = sphi 0, %s372
      %s375 = sphi 0, %s374
      %s389 = sphi 0, %s375
      %s393 = sphi 0, %s393
      %s395 = sphi 0, %s393
      %s396 = sphi 0, %s395
      %s410 = sphi 0, %s396
      %s414 = sphi 0, %s414
      %s416 = sphi 0, %s414
      %s417 = sphi 0, %s416
      %s431 = sphi 0, %s417
      %s435 = sphi 0, %s435
      %s437 = sphi 0, %s435
      %s438 = sphi 0, %s437
      %s452 = sphi 0, %s438
      %s456 = sphi 0, %s456
      %s458 = sphi 0, %s456
      %s459 = sphi 0, %s458
      %s473 = sphi 0, %s459
      %s477 = sphi 0, %s477
      %s479 = sphi 0, %s477
      %s480 = sphi 0, %s479
      %s494 = sphi 0, %s480
      %s498 = sphi 0, %s498
      %s500 = sphi 0, %s498
      %s501 = sphi 0, %s500
      %s515 = sphi 0, %s501
      %s519 = sphi 0, %s519
      %s521 = sphi 0, %s519
      %s522 = sphi 0, %s521
      %s536 = sphi 0, %s522
      %s540 = sphi 0, %s540
      %s542 = sphi 0, %s540
      %s543 = sphi 0, %s542
      %s557 = sphi 0, %s543
      %s563 = sphi 0, %s565
      %s566 = sphi 0, %s563
      %s567 = sphi 0, %s566
      %s583 = sphi 0, %s567
      %s589 = sphi 0, %s591
      %s592 = sphi 0, %s589
      %s593 = sphi 0, %s592
      %s609 = sphi 0, %s593
      %s615 = sphi 0, %s617
      %s618 = sphi 0, %s615
      %s619 = sphi 0, %s618
      %s635 = sphi 0, %s619
    $region4: #{tpu_custom_call.1} parent=1 // loop_header_branch
      %42 = sbr.rel (%p40) target = $region8
    $region5: #{tpu_custom_call.1} parent=1 // loop_body
      %s44 = ssub.s32 %s39, 1
      %s45 = ssub.s32 %s39, 2
      %s46 = sadd.s32 %s39, 1
      %s47 = ssub.s32 %s39, %s46
      %p48 = scmp.eq.s32.totalorder %s47, 0
      %s50 = sadd.s32 %s49, 1
      %s51 = scalar_select %p48, %s49, %s50
      %p54 = pneg %p48
      %p55 = scmp.eq.s32.totalorder %s39, 1
      %p56 = por %p54, %p55
      %p57 = scmp.ne.s32.totalorder %s49, %s52
      %p58 = scmp.eq.s32.totalorder %s39, 0
      %p59 = por %p57, %p58
      %p60 = scmp.ne.s32.totalorder %s49, %s52
      %p61 = scmp.eq.s32.totalorder %s44, 1
      %p62 = por %p60, %p61
      %p63 = scmp.ne.s32.totalorder %s52, %s53
      %p64 = scmp.eq.s32.totalorder %s44, 0
      %p65 = por %p63, %p64
      %p66 = scmp.ne.s32.totalorder %s52, %s53
      %p67 = scmp.eq.s32.totalorder %s45, 1
      %p68 = por %p66, %p67
      %p70 = scmp.ne.s32.totalorder %s53, %s69
      %p71 = scmp.eq.s32.totalorder %s45, 0
      %p72 = por %p70, %p71
      %s73 = ssub.s32 %s39, %s46
      %p74 = scmp.eq.s32.totalorder %s73, 0
      %s76 = sadd.s32 %s75, 1
      %s77 = scalar_select %p74, %s75, %s76
      %p80 = pneg %p74
      %p81 = scmp.eq.s32.totalorder %s39, 1
      %p82 = por %p80, %p81
      %p83 = scmp.ne.s32.totalorder %s75, %s78
      %p84 = scmp.eq.s32.totalorder %s39, 0
      %p85 = por %p83, %p84
      %p86 = scmp.ne.s32.totalorder %s75, %s78
      %p87 = scmp.eq.s32.totalorder %s44, 1
      %p88 = por %p86, %p87
      %p89 = scmp.ne.s32.totalorder %s78, %s79
      %p90 = scmp.eq.s32.totalorder %s44, 0
      %p91 = por %p89, %p90
      %p92 = scmp.ne.s32.totalorder %s78, %s79
      %p93 = scmp.eq.s32.totalorder %s45, 1
      %p94 = por %p92, %p93
      %p96 = scmp.ne.s32.totalorder %s79, %s95
      %p97 = scmp.eq.s32.totalorder %s45, 0
      %p98 = por %p96, %p97
      %s100 = sadd.s32 %s99, 1
      %p103 = scmp.eq.s32.totalorder %s39, 1
      %p104 = scmp.ne.s32.totalorder %s99, %s101
      %p105 = scmp.eq.s32.totalorder %s39, 0
      %p106 = por %p104, %p105
      %p107 = scmp.ne.s32.totalorder %s99, %s101
      %p108 = scmp.eq.s32.totalorder %s44, 1
      %p109 = por %p107, %p108
      %p110 = scmp.ne.s32.totalorder %s101, %s102
      %p111 = scmp.eq.s32.totalorder %s44, 0
      %p112 = por %p110, %p111
      %p113 = scmp.ne.s32.totalorder %s101, %s102
      %p114 = scmp.eq.s32.totalorder %s45, 1
      %p115 = por %p113, %p114
      %p117 = scmp.ne.s32.totalorder %s102, %s116
      %p118 = scmp.eq.s32.totalorder %s45, 0
      %p119 = por %p117, %p118
      %s121 = sadd.s32 %s120, 1
      %p124 = scmp.eq.s32.totalorder %s39, 1
      %p125 = scmp.ne.s32.totalorder %s120, %s122
      %p126 = scmp.eq.s32.totalorder %s39, 0
      %p127 = por %p125, %p126
      %p128 = scmp.ne.s32.totalorder %s120, %s122
      %p129 = scmp.eq.s32.totalorder %s44, 1
      %p130 = por %p128, %p129
      %p131 = scmp.ne.s32.totalorder %s122, %s123
      %p132 = scmp.eq.s32.totalorder %s44, 0
      %p133 = por %p131, %p132
      %p134 = scmp.ne.s32.totalorder %s122, %s123
      %p135 = scmp.eq.s32.totalorder %s45, 1
      %p136 = por %p134, %p135
      %p138 = scmp.ne.s32.totalorder %s123, %s137
      %p139 = scmp.eq.s32.totalorder %s45, 0
      %p140 = por %p138, %p139
      %s142 = sadd.s32 %s141, 1
      %p145 = scmp.eq.s32.totalorder %s39, 1
      %p146 = scmp.ne.s32.totalorder %s141, %s143
      %p147 = scmp.eq.s32.totalorder %s39, 0
      %p148 = por %p146, %p147
      %p149 = scmp.ne.s32.totalorder %s141, %s143
      %p150 = scmp.eq.s32.totalorder %s44, 1
      %p151 = por %p149, %p150
      %p152 = scmp.ne.s32.totalorder %s143, %s144
      %p153 = scmp.eq.s32.totalorder %s44, 0
      %p154 = por %p152, %p153
      %p155 = scmp.ne.s32.totalorder %s143, %s144
      %p156 = scmp.eq.s32.totalorder %s45, 1
      %p157 = por %p155, %p156
      %p159 = scmp.ne.s32.totalorder %s144, %s158
      %p160 = scmp.eq.s32.totalorder %s45, 0
      %p161 = por %p159, %p160
      %s163 = sadd.s32 %s162, 1
      %p166 = scmp.eq.s32.totalorder %s39, 1
      %p167 = scmp.ne.s32.totalorder %s162, %s164
      %p168 = scmp.eq.s32.totalorder %s39, 0
      %p169 = por %p167, %p168
      %p170 = scmp.ne.s32.totalorder %s162, %s164
      %p171 = scmp.eq.s32.totalorder %s44, 1
      %p172 = por %p170, %p171
      %p173 = scmp.ne.s32.totalorder %s164, %s165
      %p174 = scmp.eq.s32.totalorder %s44, 0
      %p175 = por %p173, %p174
      %p176 = scmp.ne.s32.totalorder %s164, %s165
      %p177 = scmp.eq.s32.totalorder %s45, 1
      %p178 = por %p176, %p177
      %p180 = scmp.ne.s32.totalorder %s165, %s179
      %p181 = scmp.eq.s32.totalorder %s45, 0
      %p182 = por %p180, %p181
      %s184 = sadd.s32 %s183, 1
      %p187 = scmp.eq.s32.totalorder %s39, 1
      %p188 = scmp.ne.s32.totalorder %s183, %s185
      %p189 = scmp.eq.s32.totalorder %s39, 0
      %p190 = por %p188, %p189
      %p191 = scmp.ne.s32.totalorder %s183, %s185
      %p192 = scmp.eq.s32.totalorder %s44, 1
      %p193 = por %p191, %p192
      %p194 = scmp.ne.s32.totalorder %s185, %s186
      %p195 = scmp.eq.s32.totalorder %s44, 0
      %p196 = por %p194, %p195
      %p197 = scmp.ne.s32.totalorder %s185, %s186
      %p198 = scmp.eq.s32.totalorder %s45, 1
      %p199 = por %p197, %p198
      %p201 = scmp.ne.s32.totalorder %s186, %s200
      %p202 = scmp.eq.s32.totalorder %s45, 0
      %p203 = por %p201, %p202
      %s205 = sadd.s32 %s204, 1
      %p208 = scmp.eq.s32.totalorder %s39, 1
      %p209 = scmp.ne.s32.totalorder %s204, %s206
      %p210 = scmp.eq.s32.totalorder %s39, 0
      %p211 = por %p209, %p210
      %p212 = scmp.ne.s32.totalorder %s204, %s206
      %p213 = scmp.eq.s32.totalorder %s44, 1
      %p214 = por %p212, %p213
      %p215 = scmp.ne.s32.totalorder %s206, %s207
      %p216 = scmp.eq.s32.totalorder %s44, 0
      %p217 = por %p215, %p216
      %p218 = scmp.ne.s32.totalorder %s206, %s207
      %p219 = scmp.eq.s32.totalorder %s45, 1
      %p220 = por %p218, %p219
      %p222 = scmp.ne.s32.totalorder %s207, %s221
      %p223 = scmp.eq.s32.totalorder %s45, 0
      %p224 = por %p222, %p223
      %s226 = sadd.s32 %s225, 1
      %p229 = scmp.eq.s32.totalorder %s39, 1
      %p230 = scmp.ne.s32.totalorder %s225, %s227
      %p231 = scmp.eq.s32.totalorder %s39, 0
      %p232 = por %p230, %p231
      %p233 = scmp.ne.s32.totalorder %s225, %s227
      %p234 = scmp.eq.s32.totalorder %s44, 1
      %p235 = por %p233, %p234
      %p236 = scmp.ne.s32.totalorder %s227, %s228
      %p237 = scmp.eq.s32.totalorder %s44, 0
      %p238 = por %p236, %p237
      %p239 = scmp.ne.s32.totalorder %s227, %s228
      %p240 = scmp.eq.s32.totalorder %s45, 1
      %p241 = por %p239, %p240
      %p243 = scmp.ne.s32.totalorder %s228, %s242
      %p244 = scmp.eq.s32.totalorder %s45, 0
      %p245 = por %p243, %p244
      %s247 = sadd.s32 %s246, 1
      %p250 = scmp.eq.s32.totalorder %s39, 1
      %p251 = scmp.ne.s32.totalorder %s246, %s248
      %p252 = scmp.eq.s32.totalorder %s39, 0
      %p253 = por %p251, %p252
      %p254 = scmp.ne.s32.totalorder %s246, %s248
      %p255 = scmp.eq.s32.totalorder %s44, 1
      %p256 = por %p254, %p255
      %p257 = scmp.ne.s32.totalorder %s248, %s249
      %p258 = scmp.eq.s32.totalorder %s44, 0
      %p259 = por %p257, %p258
      %p260 = scmp.ne.s32.totalorder %s248, %s249
      %p261 = scmp.eq.s32.totalorder %s45, 1
      %p262 = por %p260, %p261
      %p264 = scmp.ne.s32.totalorder %s249, %s263
      %p265 = scmp.eq.s32.totalorder %s45, 0
      %p266 = por %p264, %p265
      %s268 = sadd.s32 %s267, 1
      %p271 = scmp.eq.s32.totalorder %s39, 1
      %p272 = scmp.ne.s32.totalorder %s267, %s269
      %p273 = scmp.eq.s32.totalorder %s39, 0
      %p274 = por %p272, %p273
      %p275 = scmp.ne.s32.totalorder %s267, %s269
      %p276 = scmp.eq.s32.totalorder %s44, 1
      %p277 = por %p275, %p276
      %p278 = scmp.ne.s32.totalorder %s269, %s270
      %p279 = scmp.eq.s32.totalorder %s44, 0
      %p280 = por %p278, %p279
      %p281 = scmp.ne.s32.totalorder %s269, %s270
      %p282 = scmp.eq.s32.totalorder %s45, 1
      %p283 = por %p281, %p282
      %p285 = scmp.ne.s32.totalorder %s270, %s284
      %p286 = scmp.eq.s32.totalorder %s45, 0
      %p287 = por %p285, %p286
      %s289 = sadd.s32 %s288, 1
      %p292 = scmp.eq.s32.totalorder %s39, 1
      %p293 = scmp.ne.s32.totalorder %s288, %s290
      %p294 = scmp.eq.s32.totalorder %s39, 0
      %p295 = por %p293, %p294
      %p296 = scmp.ne.s32.totalorder %s288, %s290
      %p297 = scmp.eq.s32.totalorder %s44, 1
      %p298 = por %p296, %p297
      %p299 = scmp.ne.s32.totalorder %s290, %s291
      %p300 = scmp.eq.s32.totalorder %s44, 0
      %p301 = por %p299, %p300
      %p302 = scmp.ne.s32.totalorder %s290, %s291
      %p303 = scmp.eq.s32.totalorder %s45, 1
      %p304 = por %p302, %p303
      %p306 = scmp.ne.s32.totalorder %s291, %s305
      %p307 = scmp.eq.s32.totalorder %s45, 0
      %p308 = por %p306, %p307
      %s310 = sadd.s32 %s309, 1
      %p313 = scmp.eq.s32.totalorder %s39, 1
      %p314 = scmp.ne.s32.totalorder %s309, %s311
      %p315 = scmp.eq.s32.totalorder %s39, 0
      %p316 = por %p314, %p315
      %p317 = scmp.ne.s32.totalorder %s309, %s311
      %p318 = scmp.eq.s32.totalorder %s44, 1
      %p319 = por %p317, %p318
      %p320 = scmp.ne.s32.totalorder %s311, %s312
      %p321 = scmp.eq.s32.totalorder %s44, 0
      %p322 = por %p320, %p321
      %p323 = scmp.ne.s32.totalorder %s311, %s312
      %p324 = scmp.eq.s32.totalorder %s45, 1
      %p325 = por %p323, %p324
      %p327 = scmp.ne.s32.totalorder %s312, %s326
      %p328 = scmp.eq.s32.totalorder %s45, 0
      %p329 = por %p327, %p328
      %s331 = sadd.s32 %s330, 1
      %p334 = scmp.eq.s32.totalorder %s39, 1
      %p335 = scmp.ne.s32.totalorder %s330, %s332
      %p336 = scmp.eq.s32.totalorder %s39, 0
      %p337 = por %p335, %p336
      %p338 = scmp.ne.s32.totalorder %s330, %s332
      %p339 = scmp.eq.s32.totalorder %s44, 1
      %p340 = por %p338, %p339
      %p341 = scmp.ne.s32.totalorder %s332, %s333
      %p342 = scmp.eq.s32.totalorder %s44, 0
      %p343 = por %p341, %p342
      %p344 = scmp.ne.s32.totalorder %s332, %s333
      %p345 = scmp.eq.s32.totalorder %s45, 1
      %p346 = por %p344, %p345
      %p348 = scmp.ne.s32.totalorder %s333, %s347
      %p349 = scmp.eq.s32.totalorder %s45, 0
      %p350 = por %p348, %p349
      %s352 = sadd.s32 %s351, 1
      %p355 = scmp.eq.s32.totalorder %s39, 1
      %p356 = scmp.ne.s32.totalorder %s351, %s353
      %p357 = scmp.eq.s32.totalorder %s39, 0
      %p358 = por %p356, %p357
      %p359 = scmp.ne.s32.totalorder %s351, %s353
      %p360 = scmp.eq.s32.totalorder %s44, 1
      %p361 = por %p359, %p360
      %p362 = scmp.ne.s32.totalorder %s353, %s354
      %p363 = scmp.eq.s32.totalorder %s44, 0
      %p364 = por %p362, %p363
      %p365 = scmp.ne.s32.totalorder %s353, %s354
      %p366 = scmp.eq.s32.totalorder %s45, 1
      %p367 = por %p365, %p366
      %p369 = scmp.ne.s32.totalorder %s354, %s368
      %p370 = scmp.eq.s32.totalorder %s45, 0
      %p371 = por %p369, %p370
      %s373 = sadd.s32 %s372, 1
      %p376 = scmp.eq.s32.totalorder %s39, 1
      %p377 = scmp.ne.s32.totalorder %s372, %s374
      %p378 = scmp.eq.s32.totalorder %s39, 0
      %p379 = por %p377, %p378
      %p380 = scmp.ne.s32.totalorder %s372, %s374
      %p381 = scmp.eq.s32.totalorder %s44, 1
      %p382 = por %p380, %p381
      %p383 = scmp.ne.s32.totalorder %s374, %s375
      %p384 = scmp.eq.s32.totalorder %s44, 0
      %p385 = por %p383, %p384
      %p386 = scmp.ne.s32.totalorder %s374, %s375
      %p387 = scmp.eq.s32.totalorder %s45, 1
      %p388 = por %p386, %p387
      %p390 = scmp.ne.s32.totalorder %s375, %s389
      %p391 = scmp.eq.s32.totalorder %s45, 0
      %p392 = por %p390, %p391
      %s394 = sadd.s32 %s393, 1
      %p397 = scmp.eq.s32.totalorder %s39, 1
      %p398 = scmp.ne.s32.totalorder %s393, %s395
      %p399 = scmp.eq.s32.totalorder %s39, 0
      %p400 = por %p398, %p399
      %p401 = scmp.ne.s32.totalorder %s393, %s395
      %p402 = scmp.eq.s32.totalorder %s44, 1
      %p403 = por %p401, %p402
      %p404 = scmp.ne.s32.totalorder %s395, %s396
      %p405 = scmp.eq.s32.totalorder %s44, 0
      %p406 = por %p404, %p405
      %p407 = scmp.ne.s32.totalorder %s395, %s396
      %p408 = scmp.eq.s32.totalorder %s45, 1
      %p409 = por %p407, %p408
      %p411 = scmp.ne.s32.totalorder %s396, %s410
      %p412 = scmp.eq.s32.totalorder %s45, 0
      %p413 = por %p411, %p412
      %s415 = sadd.s32 %s414, 1
      %p418 = scmp.eq.s32.totalorder %s39, 1
      %p419 = scmp.ne.s32.totalorder %s414, %s416
      %p420 = scmp.eq.s32.totalorder %s39, 0
      %p421 = por %p419, %p420
      %p422 = scmp.ne.s32.totalorder %s414, %s416
      %p423 = scmp.eq.s32.totalorder %s44, 1
      %p424 = por %p422, %p423
      %p425 = scmp.ne.s32.totalorder %s416, %s417
      %p426 = scmp.eq.s32.totalorder %s44, 0
      %p427 = por %p425, %p426
      %p428 = scmp.ne.s32.totalorder %s416, %s417
      %p429 = scmp.eq.s32.totalorder %s45, 1
      %p430 = por %p428, %p429
      %p432 = scmp.ne.s32.totalorder %s417, %s431
      %p433 = scmp.eq.s32.totalorder %s45, 0
      %p434 = por %p432, %p433
      %s436 = sadd.s32 %s435, 1
      %p439 = scmp.eq.s32.totalorder %s39, 1
      %p440 = scmp.ne.s32.totalorder %s435, %s437
      %p441 = scmp.eq.s32.totalorder %s39, 0
      %p442 = por %p440, %p441
      %p443 = scmp.ne.s32.totalorder %s435, %s437
      %p444 = scmp.eq.s32.totalorder %s44, 1
      %p445 = por %p443, %p444
      %p446 = scmp.ne.s32.totalorder %s437, %s438
      %p447 = scmp.eq.s32.totalorder %s44, 0
      %p448 = por %p446, %p447
      %p449 = scmp.ne.s32.totalorder %s437, %s438
      %p450 = scmp.eq.s32.totalorder %s45, 1
      %p451 = por %p449, %p450
      %p453 = scmp.ne.s32.totalorder %s438, %s452
      %p454 = scmp.eq.s32.totalorder %s45, 0
      %p455 = por %p453, %p454
      %s457 = sadd.s32 %s456, 1
      %p460 = scmp.eq.s32.totalorder %s39, 1
      %p461 = scmp.ne.s32.totalorder %s456, %s458
      %p462 = scmp.eq.s32.totalorder %s39, 0
      %p463 = por %p461, %p462
      %p464 = scmp.ne.s32.totalorder %s456, %s458
      %p465 = scmp.eq.s32.totalorder %s44, 1
      %p466 = por %p464, %p465
      %p467 = scmp.ne.s32.totalorder %s458, %s459
      %p468 = scmp.eq.s32.totalorder %s44, 0
      %p469 = por %p467, %p468
      %p470 = scmp.ne.s32.totalorder %s458, %s459
      %p471 = scmp.eq.s32.totalorder %s45, 1
      %p472 = por %p470, %p471
      %p474 = scmp.ne.s32.totalorder %s459, %s473
      %p475 = scmp.eq.s32.totalorder %s45, 0
      %p476 = por %p474, %p475
      %s478 = sadd.s32 %s477, 1
      %p481 = scmp.eq.s32.totalorder %s39, 1
      %p482 = scmp.ne.s32.totalorder %s477, %s479
      %p483 = scmp.eq.s32.totalorder %s39, 0
      %p484 = por %p482, %p483
      %p485 = scmp.ne.s32.totalorder %s477, %s479
      %p486 = scmp.eq.s32.totalorder %s44, 1
      %p487 = por %p485, %p486
      %p488 = scmp.ne.s32.totalorder %s479, %s480
      %p489 = scmp.eq.s32.totalorder %s44, 0
      %p490 = por %p488, %p489
      %p491 = scmp.ne.s32.totalorder %s479, %s480
      %p492 = scmp.eq.s32.totalorder %s45, 1
      %p493 = por %p491, %p492
      %p495 = scmp.ne.s32.totalorder %s480, %s494
      %p496 = scmp.eq.s32.totalorder %s45, 0
      %p497 = por %p495, %p496
      %s499 = sadd.s32 %s498, 1
      %p502 = scmp.eq.s32.totalorder %s39, 1
      %p503 = scmp.ne.s32.totalorder %s498, %s500
      %p504 = scmp.eq.s32.totalorder %s39, 0
      %p505 = por %p503, %p504
      %p506 = scmp.ne.s32.totalorder %s498, %s500
      %p507 = scmp.eq.s32.totalorder %s44, 1
      %p508 = por %p506, %p507
      %p509 = scmp.ne.s32.totalorder %s500, %s501
      %p510 = scmp.eq.s32.totalorder %s44, 0
      %p511 = por %p509, %p510
      %p512 = scmp.ne.s32.totalorder %s500, %s501
      %p513 = scmp.eq.s32.totalorder %s45, 1
      %p514 = por %p512, %p513
      %p516 = scmp.ne.s32.totalorder %s501, %s515
      %p517 = scmp.eq.s32.totalorder %s45, 0
      %p518 = por %p516, %p517
      %s520 = sadd.s32 %s519, 1
      %p523 = scmp.eq.s32.totalorder %s39, 1
      %p524 = scmp.ne.s32.totalorder %s519, %s521
      %p525 = scmp.eq.s32.totalorder %s39, 0
      %p526 = por %p524, %p525
      %p527 = scmp.ne.s32.totalorder %s519, %s521
      %p528 = scmp.eq.s32.totalorder %s44, 1
      %p529 = por %p527, %p528
      %p530 = scmp.ne.s32.totalorder %s521, %s522
      %p531 = scmp.eq.s32.totalorder %s44, 0
      %p532 = por %p530, %p531
      %p533 = scmp.ne.s32.totalorder %s521, %s522
      %p534 = scmp.eq.s32.totalorder %s45, 1
      %p535 = por %p533, %p534
      %p537 = scmp.ne.s32.totalorder %s522, %s536
      %p538 = scmp.eq.s32.totalorder %s45, 0
      %p539 = por %p537, %p538
      %s541 = sadd.s32 %s540, 1
      %p544 = scmp.eq.s32.totalorder %s39, 1
      %p545 = scmp.ne.s32.totalorder %s540, %s542
      %p546 = scmp.eq.s32.totalorder %s39, 0
      %p547 = por %p545, %p546
      %p548 = scmp.ne.s32.totalorder %s540, %s542
      %p549 = scmp.eq.s32.totalorder %s44, 1
      %p550 = por %p548, %p549
      %p551 = scmp.ne.s32.totalorder %s542, %s543
      %p552 = scmp.eq.s32.totalorder %s44, 0
      %p553 = por %p551, %p552
      %p554 = scmp.ne.s32.totalorder %s542, %s543
      %p555 = scmp.eq.s32.totalorder %s45, 1
      %p556 = por %p554, %p555
      %p558 = scmp.ne.s32.totalorder %s543, %s557
      %p559 = scmp.eq.s32.totalorder %s45, 0
      %p560 = por %p558, %p559
      %s561 = ssub.s32 %s39, %s46
      %p562 = scmp.eq.s32.totalorder %s561, 0
      %s564 = sadd.s32 %s563, 1
      %s565 = scalar_select %p562, %s563, %s564
      %p568 = pneg %p562
      %p569 = scmp.eq.s32.totalorder %s39, 1
      %p570 = por %p568, %p569
      %p571 = scmp.ne.s32.totalorder %s563, %s566
      %p572 = scmp.eq.s32.totalorder %s39, 0
      %p573 = por %p571, %p572
      %p574 = scmp.ne.s32.totalorder %s563, %s566
      %p575 = scmp.eq.s32.totalorder %s44, 1
      %p576 = por %p574, %p575
      %p577 = scmp.ne.s32.totalorder %s566, %s567
      %p578 = scmp.eq.s32.totalorder %s44, 0
      %p579 = por %p577, %p578
      %p580 = scmp.ne.s32.totalorder %s566, %s567
      %p581 = scmp.eq.s32.totalorder %s45, 1
      %p582 = por %p580, %p581
      %p584 = scmp.ne.s32.totalorder %s567, %s583
      %p585 = scmp.eq.s32.totalorder %s45, 0
      %p586 = por %p584, %p585
      %s587 = ssub.s32 %s39, %s46
      %p588 = scmp.eq.s32.totalorder %s587, 0
      %s590 = sadd.s32 %s589, 1
      %s591 = scalar_select %p588, %s589, %s590
      %p594 = pneg %p588
      %p595 = scmp.eq.s32.totalorder %s39, 1
      %p596 = por %p594, %p595
      %p597 = scmp.ne.s32.totalorder %s589, %s592
      %p598 = scmp.eq.s32.totalorder %s39, 0
      %p599 = por %p597, %p598
      %p600 = scmp.ne.s32.totalorder %s589, %s592
      %p601 = scmp.eq.s32.totalorder %s44, 1
      %p602 = por %p600, %p601
      %p603 = scmp.ne.s32.totalorder %s592, %s593
      %p604 = scmp.eq.s32.totalorder %s44, 0
      %p605 = por %p603, %p604
      %p606 = scmp.ne.s32.totalorder %s592, %s593
      %p607 = scmp.eq.s32.totalorder %s45, 1
      %p608 = por %p606, %p607
      %p610 = scmp.ne.s32.totalorder %s593, %s609
      %p611 = scmp.eq.s32.totalorder %s45, 0
      %p612 = por %p610, %p611
      %s613 = ssub.s32 %s39, %s46
      %p614 = scmp.eq.s32.totalorder %s613, 0
      %s616 = sadd.s32 %s615, 1
      %s617 = scalar_select %p614, %s615, %s616
      %p620 = pneg %p614
      %p621 = scmp.eq.s32.totalorder %s39, 1
      %p622 = por %p620, %p621
      %p623 = scmp.ne.s32.totalorder %s615, %s618
      %p624 = scmp.eq.s32.totalorder %s39, 0
      %p625 = por %p623, %p624
      %p626 = scmp.ne.s32.totalorder %s615, %s618
      %p627 = scmp.eq.s32.totalorder %s44, 1
      %p628 = por %p626, %p627
      %p629 = scmp.ne.s32.totalorder %s618, %s619
      %p630 = scmp.eq.s32.totalorder %s44, 0
      %p631 = por %p629, %p630
      %p632 = scmp.ne.s32.totalorder %s618, %s619
      %p633 = scmp.eq.s32.totalorder %s45, 1
      %p634 = por %p632, %p633
      %p636 = scmp.ne.s32.totalorder %s619, %s635
      %p637 = scmp.eq.s32.totalorder %s45, 0
      %p638 = por %p636, %p637
      %p639 = scmp.le.s32.totalorder 1, %s39
      %p640 = scmp.lt.s32.totalorder %s39, 3
      %p641 = pnand %p639, %p640
      %p642 = pneg %p641
      // Predicated region
      $region9: #{tpu_custom_call.1} parent=5 // pred_check
        _
      $region10: #{tpu_custom_call.1} parent=5 // pred_check_branch
        %644 = sbr.rel (%p641) target = $region12
      $region11: #{tpu_custom_call.1} parent=5 // pred_region
        %s645 = ssub.s32 %s39, 1
        // Predicated region
        $region13: #{tpu_custom_call.1} parent=11 // pred_check
          %p646 = pneg %p112
        $region14: #{tpu_custom_call.1} parent=11 // pred_check_branch
          %648 = sbr.rel (%p646) target = $region16
        $region15: #{tpu_custom_call.1} parent=11 // pred_region
          _
        $region16: #{tpu_custom_call.1} parent=11 // pred_fallthru
          _
        // Predicated region
        $region17: #{tpu_custom_call.1} parent=11 // pred_check
          %p649 = pneg %p133
        $region18: #{tpu_custom_call.1} parent=11 // pred_check_branch
          %651 = sbr.rel (%p649) target = $region20
        $region19: #{tpu_custom_call.1} parent=11 // pred_region
          _
        $region20: #{tpu_custom_call.1} parent=11 // pred_fallthru
          _
        // Predicated region
        $region21: #{tpu_custom_call.1} parent=11 // pred_check
          %p652 = pneg %p154
        $region22: #{tpu_custom_call.1} parent=11 // pred_check_branch
          %654 = sbr.rel (%p652) target = $region24
        $region23: #{tpu_custom_call.1} parent=11 // pred_region
          _
        $region24: #{tpu_custom_call.1} parent=11 // pred_fallthru
          _
        // Predicated region
        $region25: #{tpu_custom_call.1} parent=11 // pred_check
          %p655 = pneg %p175
        $region26: #{tpu_custom_call.1} parent=11 // pred_check_branch
          %657 = sbr.rel (%p655) target = $region28
        $region27: #{tpu_custom_call.1} parent=11 // pred_region
          _
        $region28: #{tpu_custom_call.1} parent=11 // pred_fallthru
          _
        // Predicated region
        $region29: #{tpu_custom_call.1} parent=11 // pred_check
          %p658 = pneg %p196
        $region30: #{tpu_custom_call.1} parent=11 // pred_check_branch
          %660 = sbr.rel (%p658) target = $region32
        $region31: #{tpu_custom_call.1} parent=11 // pred_region
          _
        $region32: #{tpu_custom_call.1} parent=11 // pred_fallthru
          _
        // Predicated region
        $region33: #{tpu_custom_call.1} parent=11 // pred_check
          %p661 = pneg %p217
        $region34: #{tpu_custom_call.1} parent=11 // pred_check_branch
          %663 = sbr.rel (%p661) target = $region36
        $region35: #{tpu_custom_call.1} parent=11 // pred_region
          _
        $region36: #{tpu_custom_call.1} parent=11 // pred_fallthru
          _
        // Predicated region
        $region37: #{tpu_custom_call.1} parent=11 // pred_check
          %p664 = pneg %p238
        $region38: #{tpu_custom_call.1} parent=11 // pred_check_branch
          %666 = sbr.rel (%p664) target = $region40
        $region39: #{tpu_custom_call.1} parent=11 // pred_region
          _
        $region40: #{tpu_custom_call.1} parent=11 // pred_fallthru
          _
        // Predicated region
        $region41: #{tpu_custom_call.1} parent=11 // pred_check
          %p667 = pneg %p259
        $region42: #{tpu_custom_call.1} parent=11 // pred_check_branch
          %669 = sbr.rel (%p667) target = $region44
        $region43: #{tpu_custom_call.1} parent=11 // pred_region
          _
        $region44: #{tpu_custom_call.1} parent=11 // pred_fallthru
          _
        // Predicated region
        $region45: #{tpu_custom_call.1} parent=11 // pred_check
          %p670 = pneg %p280
        $region46: #{tpu_custom_call.1} parent=11 // pred_check_branch
          %672 = sbr.rel (%p670) target = $region48
        $region47: #{tpu_custom_call.1} parent=11 // pred_region
          _
        $region48: #{tpu_custom_call.1} parent=11 // pred_fallthru
          _
        // Predicated region
        $region49: #{tpu_custom_call.1} parent=11 // pred_check
          %p673 = pneg %p301
        $region50: #{tpu_custom_call.1} parent=11 // pred_check_branch
          %675 = sbr.rel (%p673) target = $region52
        $region51: #{tpu_custom_call.1} parent=11 // pred_region
          _
        $region52: #{tpu_custom_call.1} parent=11 // pred_fallthru
          _
        // Predicated region
        $region53: #{tpu_custom_call.1} parent=11 // pred_check
          %p676 = pneg %p322
        $region54: #{tpu_custom_call.1} parent=11 // pred_check_branch
          %678 = sbr.rel (%p676) target = $region56
        $region55: #{tpu_custom_call.1} parent=11 // pred_region
          _
        $region56: #{tpu_custom_call.1} parent=11 // pred_fallthru
          _
        // Predicated region
        $region57: #{tpu_custom_call.1} parent=11 // pred_check
          %p679 = pneg %p343
        $region58: #{tpu_custom_call.1} parent=11 // pred_check_branch
          %681 = sbr.rel (%p679) target = $region60
        $region59: #{tpu_custom_call.1} parent=11 // pred_region
          _
        $region60: #{tpu_custom_call.1} parent=11 // pred_fallthru
          _
        // Predicated region
        $region61: #{tpu_custom_call.1} parent=11 // pred_check
          %p682 = pneg %p364
        $region62: #{tpu_custom_call.1} parent=11 // pred_check_branch
          %684 = sbr.rel (%p682) target = $region64
        $region63: #{tpu_custom_call.1} parent=11 // pred_region
          _
        $region64: #{tpu_custom_call.1} parent=11 // pred_fallthru
          _
        // Predicated region
        $region65: #{tpu_custom_call.1} parent=11 // pred_check
          %p685 = pneg %p385
        $region66: #{tpu_custom_call.1} parent=11 // pred_check_branch
          %687 = sbr.rel (%p685) target = $region68
        $region67: #{tpu_custom_call.1} parent=11 // pred_region
          _
        $region68: #{tpu_custom_call.1} parent=11 // pred_fallthru
          _
        // Predicated region
        $region69: #{tpu_custom_call.1} parent=11 // pred_check
          %p688 = pneg %p406
        $region70: #{tpu_custom_call.1} parent=11 // pred_check_branch
          %690 = sbr.rel (%p688) target = $region72
        $region71: #{tpu_custom_call.1} parent=11 // pred_region
          _
        $region72: #{tpu_custom_call.1} parent=11 // pred_fallthru
          _
        // Predicated region
        $region73: #{tpu_custom_call.1} parent=11 // pred_check
          %p691 = pneg %p427
        $region74: #{tpu_custom_call.1} parent=11 // pred_check_branch
          %693 = sbr.rel (%p691) target = $region76
        $region75: #{tpu_custom_call.1} parent=11 // pred_region
          _
        $region76: #{tpu_custom_call.1} parent=11 // pred_fallthru
          _
        // Predicated region
        $region77: #{tpu_custom_call.1} parent=11 // pred_check
          %p694 = pneg %p448
        $region78: #{tpu_custom_call.1} parent=11 // pred_check_branch
          %696 = sbr.rel (%p694) target = $region80
        $region79: #{tpu_custom_call.1} parent=11 // pred_region
          _
        $region80: #{tpu_custom_call.1} parent=11 // pred_fallthru
          _
        // Predicated region
        $region81: #{tpu_custom_call.1} parent=11 // pred_check
          %p697 = pneg %p469
        $region82: #{tpu_custom_call.1} parent=11 // pred_check_branch
          %699 = sbr.rel (%p697) target = $region84
        $region83: #{tpu_custom_call.1} parent=11 // pred_region
          _
        $region84: #{tpu_custom_call.1} parent=11 // pred_fallthru
          _
        // Predicated region
        $region85: #{tpu_custom_call.1} parent=11 // pred_check
          %p700 = pneg %p490
        $region86: #{tpu_custom_call.1} parent=11 // pred_check_branch
          %702 = sbr.rel (%p700) target = $region88
        $region87: #{tpu_custom_call.1} parent=11 // pred_region
          _
        $region88: #{tpu_custom_call.1} parent=11 // pred_fallthru
          _
        // Predicated region
        $region89: #{tpu_custom_call.1} parent=11 // pred_check
          %p703 = pneg %p511
        $region90: #{tpu_custom_call.1} parent=11 // pred_check_branch
          %705 = sbr.rel (%p703) target = $region92
        $region91: #{tpu_custom_call.1} parent=11 // pred_region
          _
        $region92: #{tpu_custom_call.1} parent=11 // pred_fallthru
          _
        // Predicated region
        $region93: #{tpu_custom_call.1} parent=11 // pred_check
          %p706 = pneg %p532
        $region94: #{tpu_custom_call.1} parent=11 // pred_check_branch
          %708 = sbr.rel (%p706) target = $region96
        $region95: #{tpu_custom_call.1} parent=11 // pred_region
          _
        $region96: #{tpu_custom_call.1} parent=11 // pred_fallthru
          _
        // Predicated region
        $region97: #{tpu_custom_call.1} parent=11 // pred_check
          %p709 = pneg %p553
        $region98: #{tpu_custom_call.1} parent=11 // pred_check_branch
          %711 = sbr.rel (%p709) target = $region100
        $region99: #{tpu_custom_call.1} parent=11 // pred_region
          _
        $region100: #{tpu_custom_call.1} parent=11 // pred_fallthru
          _
      $region12: #{tpu_custom_call.1} parent=5 // pred_fallthru
        _
      %p712 = scmp.lt.s32.totalorder %s39, 2
      // Predicated region
      $region101: #{tpu_custom_call.1} parent=5 // pred_check
        %p713 = pneg %p712
      $region102: #{tpu_custom_call.1} parent=5 // pred_check_branch
        %715 = sbr.rel (%p713) target = $region104
      $region103: #{tpu_custom_call.1} parent=5 // pred_region
        // Predicated region
        $region105: #{tpu_custom_call.1} parent=103 // pred_check
          %p716 = pneg %p59
        $region106: #{tpu_custom_call.1} parent=103 // pred_check_branch
          %718 = sbr.rel (%p716) target = $region108
        $region107: #{tpu_custom_call.1} parent=103 // pred_region
          %p719 = scmp.lt.s32.totalorder %s39, 1
          %s720 = scalar_select %p719, %s39, 1
          %s721 = smul.addr %s720, 8
          %s722 = scalar_lea.vmem %s0, %s721
        $region108: #{tpu_custom_call.1} parent=103 // pred_fallthru
          _
        // Predicated region
        $region109: #{tpu_custom_call.1} parent=103 // pred_check
          %p723 = pneg %p85
        $region110: #{tpu_custom_call.1} parent=103 // pred_check_branch
          %725 = sbr.rel (%p723) target = $region112
        $region111: #{tpu_custom_call.1} parent=103 // pred_region
          %p726 = scmp.lt.s32.totalorder %s39, 1
          %s727 = scalar_select %p726, %s39, 1
          %s728 = scalar_lea.vmem %s1, %s727
        $region112: #{tpu_custom_call.1} parent=103 // pred_fallthru
          _
      $region104: #{tpu_custom_call.1} parent=5 // pred_fallthru
        _
      %p729 = scmp.le.s32.totalorder 1, %s39
      %p730 = scmp.lt.s32.totalorder %s39, 3
      %p731 = pnand %p729, %p730
      %p732 = pneg %p731
      // Predicated region
      $region113: #{tpu_custom_call.1} parent=5 // pred_check
        _
      $region114: #{tpu_custom_call.1} parent=5 // pred_check_branch
        %734 = sbr.rel (%p731) target = $region116
      $region115: #{tpu_custom_call.1} parent=5 // pred_region
        %s735 = ssub.s32 %s39, 1
        %p736 = scmp.lt.s32.totalorder %s44, 1
        %s737 = scalar_select %p736, %s44, 1
        %s738 = smul.addr %s737, 8
        %s739 = scalar_lea.vmem %s0, %s738
        %p740 = pneg %p65
        %p741 = pneg %p62
        %p742 = scmp.lt.s32.totalorder %s44, 1
        %s743 = scalar_select %p742, %s44, 1
        %s744 = scalar_lea.vmem %s1, %s743
        %p745 = pneg %p91
        %p746 = pneg %p88
        %p747 = pneg %p112
        %p748 = pneg %p109
        %p749 = pneg %p133
        %p750 = pneg %p130
        %p751 = pneg %p154
        %p752 = pneg %p151
        %p753 = pneg %p175
        %p754 = pneg %p172
        %p755 = pneg %p196
        %p756 = pneg %p193
        %p757 = pneg %p217
        %p758 = pneg %p214
        %p759 = pneg %p238
        %p760 = pneg %p235
        %p761 = pneg %p259
        %p762 = pneg %p256
        %p763 = pneg %p280
        %p764 = pneg %p277
        %p765 = pneg %p301
        %p766 = pneg %p298
        %p767 = pneg %p322
        %p768 = pneg %p319
        %p769 = pneg %p343
        %p770 = pneg %p340
        %p771 = pneg %p364
        %p772 = pneg %p361
        %p773 = pneg %p385
        %p774 = pneg %p382
        %p775 = pneg %p406
        %p776 = pneg %p403
        %p777 = pneg %p427
        %p778 = pneg %p424
        %p779 = pneg %p448
        %p780 = pneg %p445
        %p781 = pneg %p469
        %p782 = pneg %p466
        %p783 = pneg %p490
        %p784 = pneg %p487
        %p785 = pneg %p511
        %p786 = pneg %p508
        %p787 = pneg %p532
        %p788 = pneg %p529
        %p789 = pneg %p553
        %p790 = pneg %p550
        %p791 = pneg %p579
        %p792 = pneg %p576
        %s793 = sand.u32 %s566, 1
        %s794 = scalar_lea.sflag [#allocation3], %s793
        %s795 = sand.u32 %s566, 1
        %s796 = smul.addr %s795, 24
        %s797 = scalar_lea.vmem [#allocation2], %s796
        %p798 = pneg %p605
        %p799 = pneg %p602
        %s800 = sand.u32 %s44, 1
        %s801 = scalar_lea.sflag [#allocation5], %s800
        %s802 = sand.u32 %s592, 1
        %s803 = scalar_lea.vmem [#allocation4], %s802
        %p804 = pneg %p631
        %p805 = pneg %p628
        %s806 = sand.u32 %s44, 1
        %s807 = scalar_lea.sflag [#allocation5], %s806
        %s808 = sand.u32 %s618, 1
        %s809 = scalar_lea.vmem [#allocation6], %s808
        %p810 = scmp.lt.s32.totalorder %s44, 1
        %s811 = scalar_select %p810, %s44, 1
        %s812 = smul.addr %s811, 8
        %s813 = scalar_lea.vmem %s0, %s812
        %p814 = scmp.lt.s32.totalorder %s44, 1
        %s815 = scalar_select %p814, %s44, 1
        %s816 = scalar_lea.vmem %s1, %s815
        %v818 = vld [vmem:[%s816] sm:$0x1]
        %v819 = vld [vmem:[%s813] sm:$0xff]
        %v820 = vld [vmem:[%s2] sm:$0x1]
        %v821 = vld [vmem:[%s3] sm:$0x1]
        %vm822 = vcmask 261120
        %v823 = vsel %vm822, %v819, 0.0
        %824 = vadd.xlane.f32.xlu0 %v823
        %v825 = vpop.xlane.xlu0 %824
        %v826 = vrcp.pop 32.0
        %v827 = vmul.f32 %v825, %v826
        %v828 = vsub.f32 %v819, %v827
        %v829 = vmul.f32 %v828, %v828
        %v830 = vsel %vm822, %v829, 0.0
        %831 = vadd.xlane.f32.xlu0 %v830
        %v832 = vpop.xlane.xlu0 %831
        %v833 = vmul.f32 %v832, %v826
        %v834 = vadd.f32 %v833, 1e-12
        %v835 = vrsqrt.pop %v834
        %v836 = vmul.f32 %v828, %v835
        %v838 = vlaneseq
        %v839 = vshrl.u32 %v838, 7
        %v840 = vsub.s32 0, %v839
        %v841 = vrot.slane %v820, %v840
        %v843 = vmul.f32 %v836, %v841
        %v845 = vlaneseq
        %v846 = vshrl.u32 %v845, 7
        %v847 = vsub.s32 0, %v846
        %v848 = vrot.slane %v821, %v847
        %v850 = vadd.f32 %v843, %v848
        %851 = vst.msk [vmem:[%s797] sm:$0xff] %vm822, %v850
        %v852 = vld [vmem:[%s7] sm:$0x1]
        %v853 = vld [vmem:[%s4] sm:$0xf]
        %v854 = vld [vmem:[%s4 + $0x4] sm:$0xf]
        %v855 = vld [vmem:[%s4 + $0x8] sm:$0xf]
        %v856 = vld [vmem:[%s4 + $0xc] sm:$0xf]
        %v857 = vpack.c.bf16 %v850, %v850
        %v858 = vld [vmem:[%s5] sm:$0x1]
        %v860 = vlaneseq
        %v861 = vshrl.u32 %v860, 7
        %v862 = vsub.s32 0, %v861
        %v863 = vrot.slane %v858, %v862
        %v869 = vunpack.c.l.b16 %v853
        %v870 = vunpack.c.l.b16 %v854
        %v871 = vunpack.c.l.b16 %v855
        %v872 = vunpack.c.l.b16 %v856
        %v873 = vpack.c.b16 %v870, %v869
        %v874 = vpack.c.b16 %v872, %v871
        %v878 = vsel %vm822, %v857, 0
        %880 = vmatprep.subr.bf16.mxu0 0
        %881 = vmatpush1.bf16.msra.mxu0 %v873
        %882 = vmatprep.subr.bf16.mxu0 0
        %883 = vmatpush1.bf16.msra.mxu0 %v874
        %884 = vmatprep.subr.bf16.mxu0 0
        %885 = vmatpush1.bf16.msra.mxu0 0
        %886 = vmatprep.subr.bf16.mxu0 0
        %887 = vmatpush1.bf16.msra.mxu0 0
        %888 = vmatprep.subr.bf16.mxu0 0
        %889 = vmatpush1.bf16.msra.mxu0 0
        %890 = vmatprep.subr.bf16.mxu0 0
        %891 = vmatpush1.bf16.msra.mxu0 0
        %892 = vmatprep.subr.bf16.mxu0 0
        %893 = vmatpush1.bf16.msra.mxu0 0
        %894 = vmatprep.subr.bf16.mxu0 0
        %895 = vmatpush1.bf16.msra.mxu0 0
        %896 = vmatprep.subr.bf16.mxu0 0
        %897 = vmatpush1.bf16.msra.mxu0 0
        %898 = vmatprep.subr.bf16.mxu0 0
        %899 = vmatpush1.bf16.msra.mxu0 0
        %900 = vmatprep.subr.bf16.mxu0 0
        %901 = vmatpush1.bf16.msra.mxu0 0
        %902 = vmatprep.subr.bf16.mxu0 0
        %903 = vmatpush1.bf16.msra.mxu0 0
        %904 = vmatprep.subr.bf16.mxu0 0
        %905 = vmatpush1.bf16.msra.mxu0 0
        %906 = vmatprep.subr.bf16.mxu0 0
        %907 = vmatpush1.bf16.msra.mxu0 0
        %908 = vmatprep.subr.bf16.mxu0 0
        %909 = vmatpush1.bf16.msra.mxu0 0
        %910 = vmatprep.subr.bf16.mxu0 0
        %911 = vmatpush1.bf16.msra.mxu0 0
        %912 = vmatprep.mubr.bf16.mxu0 0
        %913 = vmatmul.mubr.bf16.gmra.mrb[0].mxu0 %v878
        %v914 = vpop.f32.mrb[0].mxu0
        %v915 = vadd.f32 %v863, %v914
        %v916 = vpop.f32.mrb[0].mxu0
        %v917 = vpop.f32.mrb[0].mxu0
        %v918 = vpop.f32.mrb[0].mxu0
        %919 = vdwg.mxu0
        %v920 = vmul.f32 %v915, 0.25
        %s921 = scalar_lea.vmem %s4, 32
        %v922 = vld [vmem:[%s921] sm:$0xf]
        %v923 = vld [vmem:[%s921 + $0x4] sm:$0xf]
        %v924 = vld [vmem:[%s921 + $0x8] sm:$0xf]
        %v925 = vld [vmem:[%s921 + $0xc] sm:$0xf]
        %s926 = scalar_lea.vmem %s5, 2
        %v927 = vld [vmem:[%s926] sm:$0x1]
        %v929 = vlaneseq
        %v930 = vshrl.u32 %v929, 7
        %v931 = vsub.s32 0, %v930
        %v932 = vrot.slane %v927, %v931
        %v938 = vunpack.c.l.b16 %v922
        %v939 = vunpack.c.l.b16 %v923
        %v940 = vunpack.c.l.b16 %v924
        %v941 = vunpack.c.l.b16 %v925
        %v942 = vpack.c.b16 %v939, %v938
        %v943 = vpack.c.b16 %v941, %v940
        %946 = vmatprep.subr.bf16.mxu0 0
        %947 = vmatpush1.bf16.msra.mxu0 %v942
        %948 = vmatprep.subr.bf16.mxu0 0
        %949 = vmatpush1.bf16.msra.mxu0 %v943
        %950 = vmatprep.subr.bf16.mxu0 0
        %951 = vmatpush1.bf16.msra.mxu0 0
        %952 = vmatprep.subr.bf16.mxu0 0
        %953 = vmatpush1.bf16.msra.mxu0 0
        %954 = vmatprep.subr.bf16.mxu0 0
        %955 = vmatpush1.bf16.msra.mxu0 0
        %956 = vmatprep.subr.bf16.mxu0 0
        %957 = vmatpush1.bf16.msra.mxu0 0
        %958 = vmatprep.subr.bf16.mxu0 0
        %959 = vmatpush1.bf16.msra.mxu0 0
        %960 = vmatprep.subr.bf16.mxu0 0
        %961 = vmatpush1.bf16.msra.mxu0 0
        %962 = vmatprep.subr.bf16.mxu0 0
        %963 = vmatpush1.bf16.msra.mxu0 0
        %964 = vmatprep.subr.bf16.mxu0 0
        %965 = vmatpush1.bf16.msra.mxu0 0
        %966 = vmatprep.subr.bf16.mxu0 0
        %967 = vmatpush1.bf16.msra.mxu0 0
        %968 = vmatprep.subr.bf16.mxu0 0
        %969 = vmatpush1.bf16.msra.mxu0 0
        %970 = vmatprep.subr.bf16.mxu0 0
        %971 = vmatpush1.bf16.msra.mxu0 0
        %972 = vmatprep.subr.bf16.mxu0 0
        %973 = vmatpush1.bf16.msra.mxu0 0
        %974 = vmatprep.subr.bf16.mxu0 0
        %975 = vmatpush1.bf16.msra.mxu0 0
        %976 = vmatprep.subr.bf16.mxu0 0
        %977 = vmatpush1.bf16.msra.mxu0 0
        %978 = vmatprep.mubr.bf16.mxu0 0
        %979 = vmatmul.mubr.bf16.gmra.mrb[0].mxu0 %v878
        %v980 = vpop.f32.mrb[0].mxu0
        %v981 = vadd.f32 %v932, %v980
        %v982 = vpop.f32.mrb[0].mxu0
        %v983 = vpop.f32.mrb[0].mxu0
        %v984 = vpop.f32.mrb[0].mxu0
        %985 = vdwg.mxu0
        %s986 = scalar_lea.vmem %s4, 64
        %v987 = vld [vmem:[%s986] sm:$0xf]
        %v988 = vld [vmem:[%s986 + $0x4] sm:$0xf]
        %v989 = vld [vmem:[%s986 + $0x8] sm:$0xf]
        %v990 = vld [vmem:[%s986 + $0xc] sm:$0xf]
        %s991 = scalar_lea.vmem %s5, 4
        %v992 = vld [vmem:[%s991] sm:$0x1]
        %v994 = vlaneseq
        %v995 = vshrl.u32 %v994, 7
        %v996 = vsub.s32 0, %v995
        %v997 = vrot.slane %v992, %v996
        %v1003 = vunpack.c.l.b16 %v987
        %v1004 = vunpack.c.l.b16 %v988
        %v1005 = vunpack.c.l.b16 %v989
        %v1006 = vunpack.c.l.b16 %v990
        %v1007 = vpack.c.b16 %v1004, %v1003
        %v1008 = vpack.c.b16 %v1006, %v1005
        %1011 = vmatprep.subr.bf16.mxu0 0
        %1012 = vmatpush1.bf16.msra.mxu0 %v1007
        %1013 = vmatprep.subr.bf16.mxu0 0
        %1014 = vmatpush1.bf16.msra.mxu0 %v1008
        %1015 = vmatprep.subr.bf16.mxu0 0
        %1016 = vmatpush1.bf16.msra.mxu0 0
        %1017 = vmatprep.subr.bf16.mxu0 0
        %1018 = vmatpush1.bf16.msra.mxu0 0
        %1019 = vmatprep.subr.bf16.mxu0 0
        %1020 = vmatpush1.bf16.msra.mxu0 0
        %1021 = vmatprep.subr.bf16.mxu0 0
        %1022 = vmatpush1.bf16.msra.mxu0 0
        %1023 = vmatprep.subr.bf16.mxu0 0
        %1024 = vmatpush1.bf16.msra.mxu0 0
        %1025 = vmatprep.subr.bf16.mxu0 0
        %1026 = vmatpush1.bf16.msra.mxu0 0
        %1027 = vmatprep.subr.bf16.mxu0 0
        %1028 = vmatpush1.bf16.msra.mxu0 0
        %1029 = vmatprep.subr.bf16.mxu0 0
        %1030 = vmatpush1.bf16.msra.mxu0 0
        %1031 = vmatprep.subr.bf16.mxu0 0
        %1032 = vmatpush1.bf16.msra.mxu0 0
        %1033 = vmatprep.subr.bf16.mxu0 0
        %1034 = vmatpush1.bf16.msra.mxu0 0
        %1035 = vmatprep.subr.bf16.mxu0 0
        %1036 = vmatpush1.bf16.msra.mxu0 0
        %1037 = vmatprep.subr.bf16.mxu0 0
        %1038 = vmatpush1.bf16.msra.mxu0 0
        %1039 = vmatprep.subr.bf16.mxu0 0
        %1040 = vmatpush1.bf16.msra.mxu0 0
        %1041 = vmatprep.subr.bf16.mxu0 0
        %1042 = vmatpush1.bf16.msra.mxu0 0
        %1043 = vmatprep.mubr.bf16.mxu0 0
        %1044 = vmatmul.mubr.bf16.gmra.mrb[0].mxu0 %v878
        %v1045 = vpop.f32.mrb[0].mxu0
        %v1046 = vadd.f32 %v997, %v1045
        %v1047 = vpop.f32.mrb[0].mxu0
        %v1048 = vpop.f32.mrb[0].mxu0
        %v1049 = vpop.f32.mrb[0].mxu0
        %1050 = vdwg.mxu0
        %v1051 = vpack.c.bf16 %v920, %v920
        %v1052 = vpack.c.bf16 %v981, %v981
        %v1054 = vlaneseq
        %v1055 = vshrl.u32 %v1054, 7
        %v1056 = vsub.s32 0, %v1055
        %v1057 = vrot.slane %v818, %v1056
        %vm1059 = vcmask 130048
        %v1061 = vsel %vm1059, %v1051, 0
        %v1064 = vsel %vm1059, %v1052, 0
        %1066 = vmatprep.subr.bf16.mxu0 0
        %1067 = vmatpush1.bf16.xpose.msra.mxu0 %v1064
        %1068 = vmatprep.subr.bf16.mxu0 0
        %1069 = vmatpush1.bf16.xpose.msra.mxu0 0
        %1070 = vmatprep.subr.bf16.mxu0 0
        %1071 = vmatpush1.bf16.xpose.msra.mxu0 0
        %1072 = vmatprep.subr.bf16.mxu0 0
        %1073 = vmatpush1.bf16.xpose.msra.mxu0 0
        %1074 = vmatprep.subr.bf16.mxu0 0
        %1075 = vmatpush1.bf16.xpose.msra.mxu0 0
        %1076 = vmatprep.subr.bf16.mxu0 0
        %1077 = vmatpush1.bf16.xpose.msra.mxu0 0
        %1078 = vmatprep.subr.bf16.mxu0 0
        %1079 = vmatpush1.bf16.xpose.msra.mxu0 0
        %1080 = vmatprep.subr.bf16.mxu0 0
        %1081 = vmatpush1.bf16.xpose.msra.mxu0 0
        %1082 = vmatprep.subr.bf16.mxu0 0
        %1083 = vmatpush1.bf16.xpose.msra.mxu0 0
        %1084 = vmatprep.subr.bf16.mxu0 0
        %1085 = vmatpush1.bf16.xpose.msra.mxu0 0
        %1086 = vmatprep.subr.bf16.mxu0 0
        %1087 = vmatpush1.bf16.xpose.msra.mxu0 0
        %1088 = vmatprep.subr.bf16.mxu0 0
        %1089 = vmatpush1.bf16.xpose.msra.mxu0 0
        %1090 = vmatprep.subr.bf16.mxu0 0
        %1091 = vmatpush1.bf16.xpose.msra.mxu0 0
        %1092 = vmatprep.subr.bf16.mxu0 0
        %1093 = vmatpush1.bf16.xpose.msra.mxu0 0
        %1094 = vmatprep.subr.bf16.mxu0 0
        %1095 = vmatpush1.bf16.xpose.msra.mxu0 0
        %1096 = vmatprep.subr.bf16.mxu0 0
        %1097 = vmatpush1.bf16.xpose.msra.mxu0 0
        %1098 = vmatprep.mubr.bf16.mxu0 0
        %1099 = vmatmul.mubr.bf16.gmra.mrb[0].mxu0 %v1061
        %v1100 = vpop.f32.mrb[0].mxu0
        %v1101 = vadd.f32 %v1057, %v1100
        %v1102 = vpop.f32.mrb[0].mxu0
        %v1103 = vpop.f32.mrb[0].mxu0
        %v1104 = vpop.f32.mrb[0].mxu0
        %1105 = vdwg.mxu0
        %vm1106 = vcmask 64512
        %v1107 = vsel %vm1106, %v1101, -inf
        %1108 = vmax.xlane.f32.xlu0 %v1107
        %v1109 = vpop.xlane.xlu0 %1108
        %v1110 = vsub.f32 %v1101, %v1109
        %v1111 = vmul.f32 %v1110, 1.442695
        %v1112 = vpow.pop %v1111
        %v1113 = vsel %vm1106, %v1112, 0.0
        %1114 = vadd.xlane.f32.xlu0 %v1113
        %v1115 = vpop.xlane.xlu0 %1114
        %v1116 = vrcp.pop %v1115
        %v1117 = vmul.f32 %v1112, %v1116
        %v1118 = vpack.c.bf16 %v1117, %v1117
        %v1119 = vpack.c.bf16 %v1046, %v1046
        %v1121 = vsel %vm1106, %v1118, 0
        %vm1123 = vcmask 1043456
        %v1125 = vsel %vm1123, %v1119, 0
        %1127 = vmatprep.subr.bf16.mxu0 0
        %1128 = vmatpush1.bf16.msra.mxu0 %v1125
        %1129 = vmatprep.subr.bf16.mxu0 0
        %1130 = vmatpush1.bf16.msra.mxu0 0
        %1131 = vmatprep.subr.bf16.mxu0 0
        %1132 = vmatpush1.bf16.msra.mxu0 0
        %1133 = vmatprep.subr.bf16.mxu0 0
        %1134 = vmatpush1.bf16.msra.mxu0 0
        %1135 = vmatprep.subr.bf16.mxu0 0
        %1136 = vmatpush1.bf16.msra.mxu0 0
        %1137 = vmatprep.subr.bf16.mxu0 0
        %1138 = vmatpush1.bf16.msra.mxu0 0
        %1139 = vmatprep.subr.bf16.mxu0 0
        %1140 = vmatpush1.bf16.msra.mxu0 0
        %1141 = vmatprep.subr.bf16.mxu0 0
        %1142 = vmatpush1.bf16.msra.mxu0 0
        %1143 = vmatprep.subr.bf16.mxu0 0
        %1144 = vmatpush1.bf16.msra.mxu0 0
        %1145 = vmatprep.subr.bf16.mxu0 0
        %1146 = vmatpush1.bf16.msra.mxu0 0
        %1147 = vmatprep.subr.bf16.mxu0 0
        %1148 = vmatpush1.bf16.msra.mxu0 0
        %1149 = vmatprep.subr.bf16.mxu0 0
        %1150 = vmatpush1.bf16.msra.mxu0 0
        %1151 = vmatprep.subr.bf16.mxu0 0
        %1152 = vmatpush1.bf16.msra.mxu0 0
        %1153 = vmatprep.subr.bf16.mxu0 0
        %1154 = vmatpush1.bf16.msra.mxu0 0
        %1155 = vmatprep.subr.bf16.mxu0 0
        %1156 = vmatpush1.bf16.msra.mxu0 0
        %1157 = vmatprep.subr.bf16.mxu0 0
        %1158 = vmatpush1.bf16.msra.mxu0 0
        %1159 = vmatprep.mubr.bf16.mxu0 0
        %1160 = vmatmul.mubr.bf16.gmra.mrb[0].mxu0 %v1121
        %v1161 = vpop.f32.mrb[0].mxu0
        %v1162 = vadd.f32 0.0, %v1161
        %v1163 = vpop.f32.mrb[0].mxu0
        %v1164 = vpop.f32.mrb[0].mxu0
        %v1165 = vpop.f32.mrb[0].mxu0
        %1166 = vdwg.mxu0
        %v1167 = vld [vmem:[%s6] sm:$0xf]
        %v1168 = vld [vmem:[%s6 + $0x4] sm:$0xf]
        %v1169 = vpack.c.bf16 %v1162, %v1162
        %v1172 = vunpack.c.l.b16 %v1167
        %v1173 = vunpack.c.l.b16 %v1168
        %v1174 = vpack.c.b16 %v1173, %v1172
        %v1177 = vsel %vm1059, %v1169, 0
        %1179 = vmatprep.subr.bf16.mxu0 0
        %1180 = vmatpush1.bf16.msra.mxu0 %v1174
        %1181 = vmatprep.subr.bf16.mxu0 0
        %1182 = vmatpush1.bf16.msra.mxu0 0
        %1183 = vmatprep.subr.bf16.mxu0 0
        %1184 = vmatpush1.bf16.msra.mxu0 0
        %1185 = vmatprep.subr.bf16.mxu0 0
        %1186 = vmatpush1.bf16.msra.mxu0 0
        %1187 = vmatprep.subr.bf16.mxu0 0
        %1188 = vmatpush1.bf16.msra.mxu0 0
        %1189 = vmatprep.subr.bf16.mxu0 0
        %1190 = vmatpush1.bf16.msra.mxu0 0
        %1191 = vmatprep.subr.bf16.mxu0 0
        %1192 = vmatpush1.bf16.msra.mxu0 0
        %1193 = vmatprep.subr.bf16.mxu0 0
        %1194 = vmatpush1.bf16.msra.mxu0 0
        %1195 = vmatprep.subr.bf16.mxu0 0
        %1196 = vmatpush1.bf16.msra.mxu0 0
        %1197 = vmatprep.subr.bf16.mxu0 0
        %1198 = vmatpush1.bf16.msra.mxu0 0
        %1199 = vmatprep.subr.bf16.mxu0 0
        %1200 = vmatpush1.bf16.msra.mxu0 0
        %1201 = vmatprep.subr.bf16.mxu0 0
        %1202 = vmatpush1.bf16.msra.mxu0 0
        %1203 = vmatprep.subr.bf16.mxu0 0
        %1204 = vmatpush1.bf16.msra.mxu0 0
        %1205 = vmatprep.subr.bf16.mxu0 0
        %1206 = vmatpush1.bf16.msra.mxu0 0
        %1207 = vmatprep.subr.bf16.mxu0 0
        %1208 = vmatpush1.bf16.msra.mxu0 0
        %1209 = vmatprep.subr.bf16.mxu0 0
        %1210 = vmatpush1.bf16.msra.mxu0 0
        %1211 = vmatprep.mubr.bf16.mxu0 0
        %1212 = vmatmul.mubr.bf16.gmra.mrb[0].mxu0 %v1177
        %v1213 = vpop.f32.mrb[0].mxu0
        %v1214 = vadd.f32 0.0, %v1213
        %v1215 = vpop.f32.mrb[0].mxu0
        %v1216 = vpop.f32.mrb[0].mxu0
        %v1217 = vpop.f32.mrb[0].mxu0
        %1218 = vdwg.mxu0
        %v1220 = vlaneseq
        %v1221 = vshrl.u32 %v1220, 7
        %v1222 = vsub.s32 0, %v1221
        %v1223 = vrot.slane %v852, %v1222
        %v1225 = vadd.f32 %v1223, %v1214
        %s1226 = scalar_lea.vmem %s4, 16
        %v1227 = vld [vmem:[%s1226] sm:$0xf]
        %v1228 = vld [vmem:[%s1226 + $0x4] sm:$0xf]
        %v1229 = vld [vmem:[%s1226 + $0x8] sm:$0xf]
        %v1230 = vld [vmem:[%s1226 + $0xc] sm:$0xf]
        %s1231 = scalar_lea.vmem %s5, 1
        %v1232 = vld [vmem:[%s1231] sm:$0x1]
        %v1234 = vlaneseq
        %v1235 = vshrl.u32 %v1234, 7
        %v1236 = vsub.s32 0, %v1235
        %v1237 = vrot.slane %v1232, %v1236
        %v1243 = vunpack.c.l.b16 %v1227
        %v1244 = vunpack.c.l.b16 %v1228
        %v1245 = vunpack.c.l.b16 %v1229
        %v1246 = vunpack.c.l.b16 %v1230
        %v1247 = vpack.c.b16 %v1244, %v1243
        %v1248 = vpack.c.b16 %v1246, %v1245
        %1251 = vmatprep.subr.bf16.mxu0 0
        %1252 = vmatpush1.bf16.msra.mxu0 %v1247
        %1253 = vmatprep.subr.bf16.mxu0 0
        %1254 = vmatpush1.bf16.msra.mxu0 %v1248
        %1255 = vmatprep.subr.bf16.mxu0 0
        %1256 = vmatpush1.bf16.msra.mxu0 0
        %1257 = vmatprep.subr.bf16.mxu0 0
        %1258 = vmatpush1.bf16.msra.mxu0 0
        %1259 = vmatprep.subr.bf16.mxu0 0
        %1260 = vmatpush1.bf16.msra.mxu0 0
        %1261 = vmatprep.subr.bf16.mxu0 0
        %1262 = vmatpush1.bf16.msra.mxu0 0
        %1263 = vmatprep.subr.bf16.mxu0 0
        %1264 = vmatpush1.bf16.msra.mxu0 0
        %1265 = vmatprep.subr.bf16.mxu0 0
        %1266 = vmatpush1.bf16.msra.mxu0 0
        %1267 = vmatprep.subr.bf16.mxu0 0
        %1268 = vmatpush1.bf16.msra.mxu0 0
        %1269 = vmatprep.subr.bf16.mxu0 0
        %1270 = vmatpush1.bf16.msra.mxu0 0
        %1271 = vmatprep.subr.bf16.mxu0 0
        %1272 = vmatpush1.bf16.msra.mxu0 0
        %1273 = vmatprep.subr.bf16.mxu0 0
        %1274 = vmatpush1.bf16.msra.mxu0 0
        %1275 = vmatprep.subr.bf16.mxu0 0
        %1276 = vmatpush1.bf16.msra.mxu0 0
        %1277 = vmatprep.subr.bf16.mxu0 0
        %1278 = vmatpush1.bf16.msra.mxu0 0
        %1279 = vmatprep.subr.bf16.mxu0 0
        %1280 = vmatpush1.bf16.msra.mxu0 0
        %1281 = vmatprep.subr.bf16.mxu0 0
        %1282 = vmatpush1.bf16.msra.mxu0 0
        %1283 = vmatprep.mubr.bf16.mxu0 0
        %1284 = vmatmul.mubr.bf16.gmra.mrb[0].mxu0 %v878
        %v1285 = vpop.f32.mrb[0].mxu0
        %v1286 = vadd.f32 %v1237, %v1285
        %v1287 = vpop.f32.mrb[0].mxu0
        %v1288 = vpop.f32.mrb[0].mxu0
        %v1289 = vpop.f32.mrb[0].mxu0
        %1290 = vdwg.mxu0
        %v1291 = vmul.f32 %v1286, 0.25
        %s1292 = scalar_lea.vmem %s4, 48
        %v1293 = vld [vmem:[%s1292] sm:$0xf]
        %v1294 = vld [vmem:[%s1292 + $0x4] sm:$0xf]
        %v1295 = vld [vmem:[%s1292 + $0x8] sm:$0xf]
        %v1296 = vld [vmem:[%s1292 + $0xc] sm:$0xf]
        %s1297 = scalar_lea.vmem %s5, 3
        %v1298 = vld [vmem:[%s1297] sm:$0x1]
        %v1300 = vlaneseq
        %v1301 = vshrl.u32 %v1300, 7
        %v1302 = vsub.s32 0, %v1301
        %v1303 = vrot.slane %v1298, %v1302
        %v1309 = vunpack.c.l.b16 %v1293
        %v1310 = vunpack.c.l.b16 %v1294
        %v1311 = vunpack.c.l.b16 %v1295
        %v1312 = vunpack.c.l.b16 %v1296
        %v1313 = vpack.c.b16 %v1310, %v1309
        %v1314 = vpack.c.b16 %v1312, %v1311
        %1317 = vmatprep.subr.bf16.mxu0 0
        %1318 = vmatpush1.bf16.msra.mxu0 %v1313
        %1319 = vmatprep.subr.bf16.mxu0 0
        %1320 = vmatpush1.bf16.msra.mxu0 %v1314
        %1321 = vmatprep.subr.bf16.mxu0 0
        %1322 = vmatpush1.bf16.msra.mxu0 0
        %1323 = vmatprep.subr.bf16.mxu0 0
        %1324 = vmatpush1.bf16.msra.mxu0 0
        %1325 = vmatprep.subr.bf16.mxu0 0
        %1326 = vmatpush1.bf16.msra.mxu0 0
        %1327 = vmatprep.subr.bf16.mxu0 0
        %1328 = vmatpush1.bf16.msra.mxu0 0
        %1329 = vmatprep.subr.bf16.mxu0 0
        %1330 = vmatpush1.bf16.msra.mxu0 0
        %1331 = vmatprep.subr.bf16.mxu0 0
        %1332 = vmatpush1.bf16.msra.mxu0 0
        %1333 = vmatprep.subr.bf16.mxu0 0
        %1334 = vmatpush1.bf16.msra.mxu0 0
        %1335 = vmatprep.subr.bf16.mxu0 0
        %1336 = vmatpush1.bf16.msra.mxu0 0
        %1337 = vmatprep.subr.bf16.mxu0 0
        %1338 = vmatpush1.bf16.msra.mxu0 0
        %1339 = vmatprep.subr.bf16.mxu0 0
        %1340 = vmatpush1.bf16.msra.mxu0 0
        %1341 = vmatprep.subr.bf16.mxu0 0
        %1342 = vmatpush1.bf16.msra.mxu0 0
        %1343 = vmatprep.subr.bf16.mxu0 0
        %1344 = vmatpush1.bf16.msra.mxu0 0
        %1345 = vmatprep.subr.bf16.mxu0 0
        %1346 = vmatpush1.bf16.msra.mxu0 0
        %1347 = vmatprep.subr.bf16.mxu0 0
        %1348 = vmatpush1.bf16.msra.mxu0 0
        %1349 = vmatprep.mubr.bf16.mxu0 0
        %1350 = vmatmul.mubr.bf16.gmra.mrb[0].mxu0 %v878
        %v1351 = vpop.f32.mrb[0].mxu0
        %v1352 = vadd.f32 %v1303, %v1351
        %v1353 = vpop.f32.mrb[0].mxu0
        %v1354 = vpop.f32.mrb[0].mxu0
        %v1355 = vpop.f32.mrb[0].mxu0
        %1356 = vdwg.mxu0
        %s1357 = scalar_lea.vmem %s4, 80
        %v1358 = vld [vmem:[%s1357] sm:$0xf]
        %v1359 = vld [vmem:[%s1357 + $0x4] sm:$0xf]
        %v1360 = vld [vmem:[%s1357 + $0x8] sm:$0xf]
        %v1361 = vld [vmem:[%s1357 + $0xc] sm:$0xf]
        %s1362 = scalar_lea.vmem %s5, 5
        %v1363 = vld [vmem:[%s1362] sm:$0x1]
        %v1365 = vlaneseq
        %v1366 = vshrl.u32 %v1365, 7
        %v1367 = vsub.s32 0, %v1366
        %v1368 = vrot.slane %v1363, %v1367
        %v1374 = vunpack.c.l.b16 %v1358
        %v1375 = vunpack.c.l.b16 %v1359
        %v1376 = vunpack.c.l.b16 %v1360
        %v1377 = vunpack.c.l.b16 %v1361
        %v1378 = vpack.c.b16 %v1375, %v1374
        %v1379 = vpack.c.b16 %v1377, %v1376
        %1382 = vmatprep.subr.bf16.mxu0 0
        %1383 = vmatpush1.bf16.msra.mxu0 %v1378
        %1384 = vmatprep.subr.bf16.mxu0 0
        %1385 = vmatpush1.bf16.msra.mxu0 %v1379
        %1386 = vmatprep.subr.bf16.mxu0 0
        %1387 = vmatpush1.bf16.msra.mxu0 0
        %1388 = vmatprep.subr.bf16.mxu0 0
        %1389 = vmatpush1.bf16.msra.mxu0 0
        %1390 = vmatprep.subr.bf16.mxu0 0
        %1391 = vmatpush1.bf16.msra.mxu0 0
        %1392 = vmatprep.subr.bf16.mxu0 0
        %1393 = vmatpush1.bf16.msra.mxu0 0
        %1394 = vmatprep.subr.bf16.mxu0 0
        %1395 = vmatpush1.bf16.msra.mxu0 0
        %1396 = vmatprep.subr.bf16.mxu0 0
        %1397 = vmatpush1.bf16.msra.mxu0 0
        %1398 = vmatprep.subr.bf16.mxu0 0
        %1399 = vmatpush1.bf16.msra.mxu0 0
        %1400 = vmatprep.subr.bf16.mxu0 0
        %1401 = vmatpush1.bf16.msra.mxu0 0
        %1402 = vmatprep.subr.bf16.mxu0 0
        %1403 = vmatpush1.bf16.msra.mxu0 0
        %1404 = vmatprep.subr.bf16.mxu0 0
        %1405 = vmatpush1.bf16.msra.mxu0 0
        %1406 = vmatprep.subr.bf16.mxu0 0
        %1407 = vmatpush1.bf16.msra.mxu0 0
        %1408 = vmatprep.subr.bf16.mxu0 0
        %1409 = vmatpush1.bf16.msra.mxu0 0
        %1410 = vmatprep.subr.bf16.mxu0 0
        %1411 = vmatpush1.bf16.msra.mxu0 0
        %1412 = vmatprep.subr.bf16.mxu0 0
        %1413 = vmatpush1.bf16.msra.mxu0 0
        %1414 = vmatprep.mubr.bf16.mxu0 0
        %1415 = vmatmul.mubr.bf16.gmra.mrb[0].mxu0 %v878
        %v1416 = vpop.f32.mrb[0].mxu0
        %v1417 = vadd.f32 %v1368, %v1416
        %v1418 = vpop.f32.mrb[0].mxu0
        %v1419 = vpop.f32.mrb[0].mxu0
        %v1420 = vpop.f32.mrb[0].mxu0
        %1421 = vdwg.mxu0
        %v1422 = vpack.c.bf16 %v1291, %v1291
        %v1423 = vpack.c.bf16 %v1352, %v1352
        %v1425 = vsel %vm1059, %v1422, 0
        %v1428 = vsel %vm1059, %v1423, 0
        %1430 = vmatprep.subr.bf16.mxu0 0
        %1431 = vmatpush1.bf16.xpose.msra.mxu0 %v1428
        %1432 = vmatprep.subr.bf16.mxu0 0
        %1433 = vmatpush1.bf16.xpose.msra.mxu0 0
        %1434 = vmatprep.subr.bf16.mxu0 0
        %1435 = vmatpush1.bf16.xpose.msra.mxu0 0
        %1436 = vmatprep.subr.bf16.mxu0 0
        %1437 = vmatpush1.bf16.xpose.msra.mxu0 0
        %1438 = vmatprep.subr.bf16.mxu0 0
        %1439 = vmatpush1.bf16.xpose.msra.mxu0 0
        %1440 = vmatprep.subr.bf16.mxu0 0
        %1441 = vmatpush1.bf16.xpose.msra.mxu0 0
        %1442 = vmatprep.subr.bf16.mxu0 0
        %1443 = vmatpush1.bf16.xpose.msra.mxu0 0
        %1444 = vmatprep.subr.bf16.mxu0 0
        %1445 = vmatpush1.bf16.xpose.msra.mxu0 0
        %1446 = vmatprep.subr.bf16.mxu0 0
        %1447 = vmatpush1.bf16.xpose.msra.mxu0 0
        %1448 = vmatprep.subr.bf16.mxu0 0
        %1449 = vmatpush1.bf16.xpose.msra.mxu0 0
        %1450 = vmatprep.subr.bf16.mxu0 0
        %1451 = vmatpush1.bf16.xpose.msra.mxu0 0
        %1452 = vmatprep.subr.bf16.mxu0 0
        %1453 = vmatpush1.bf16.xpose.msra.mxu0 0
        %1454 = vmatprep.subr.bf16.mxu0 0
        %1455 = vmatpush1.bf16.xpose.msra.mxu0 0
        %1456 = vmatprep.subr.bf16.mxu0 0
        %1457 = vmatpush1.bf16.xpose.msra.mxu0 0
        %1458 = vmatprep.subr.bf16.mxu0 0
        %1459 = vmatpush1.bf16.xpose.msra.mxu0 0
        %1460 = vmatprep.subr.bf16.mxu0 0
        %1461 = vmatpush1.bf16.xpose.msra.mxu0 0
        %1462 = vmatprep.mubr.bf16.mxu0 0
        %1463 = vmatmul.mubr.bf16.gmra.mrb[0].mxu0 %v1425
        %v1464 = vpop.f32.mrb[0].mxu0
        %v1465 = vadd.f32 %v1057, %v1464
        %v1466 = vpop.f32.mrb[0].mxu0
        %v1467 = vpop.f32.mrb[0].mxu0
        %v1468 = vpop.f32.mrb[0].mxu0
        %1469 = vdwg.mxu0
        %v1470 = vsel %vm1106, %v1465, -inf
        %1471 = vmax.xlane.f32.xlu0 %v1470
        %v1472 = vpop.xlane.xlu0 %1471
        %v1473 = vsub.f32 %v1465, %v1472
        %v1474 = vmul.f32 %v1473, 1.442695
        %v1475 = vpow.pop %v1474
        %v1476 = vsel %vm1106, %v1475, 0.0
        %1477 = vadd.xlane.f32.xlu0 %v1476
        %v1478 = vpop.xlane.xlu0 %1477
        %v1479 = vrcp.pop %v1478
        %v1480 = vmul.f32 %v1475, %v1479
        %v1481 = vpack.c.bf16 %v1480, %v1480
        %v1482 = vpack.c.bf16 %v1417, %v1417
        %v1484 = vsel %vm1106, %v1481, 0
        %v1487 = vsel %vm1123, %v1482, 0
        %1489 = vmatprep.subr.bf16.mxu0 0
        %1490 = vmatpush1.bf16.msra.mxu0 %v1487
        %1491 = vmatprep.subr.bf16.mxu0 0
        %1492 = vmatpush1.bf16.msra.mxu0 0
        %1493 = vmatprep.subr.bf16.mxu0 0
        %1494 = vmatpush1.bf16.msra.mxu0 0
        %1495 = vmatprep.subr.bf16.mxu0 0
        %1496 = vmatpush1.bf16.msra.mxu0 0
        %1497 = vmatprep.subr.bf16.mxu0 0
        %1498 = vmatpush1.bf16.msra.mxu0 0
        %1499 = vmatprep.subr.bf16.mxu0 0
        %1500 = vmatpush1.bf16.msra.mxu0 0
        %1501 = vmatprep.subr.bf16.mxu0 0
        %1502 = vmatpush1.bf16.msra.mxu0 0
        %1503 = vmatprep.subr.bf16.mxu0 0
        %1504 = vmatpush1.bf16.msra.mxu0 0
        %1505 = vmatprep.subr.bf16.mxu0 0
        %1506 = vmatpush1.bf16.msra.mxu0 0
        %1507 = vmatprep.subr.bf16.mxu0 0
        %1508 = vmatpush1.bf16.msra.mxu0 0
        %1509 = vmatprep.subr.bf16.mxu0 0
        %1510 = vmatpush1.bf16.msra.mxu0 0
        %1511 = vmatprep.subr.bf16.mxu0 0
        %1512 = vmatpush1.bf16.msra.mxu0 0
        %1513 = vmatprep.subr.bf16.mxu0 0
        %1514 = vmatpush1.bf16.msra.mxu0 0
        %1515 = vmatprep.subr.bf16.mxu0 0
        %1516 = vmatpush1.bf16.msra.mxu0 0
        %1517 = vmatprep.subr.bf16.mxu0 0
        %1518 = vmatpush1.bf16.msra.mxu0 0
        %1519 = vmatprep.subr.bf16.mxu0 0
        %1520 = vmatpush1.bf16.msra.mxu0 0
        %1521 = vmatprep.mubr.bf16.mxu0 0
        %1522 = vmatmul.mubr.bf16.gmra.mrb[0].mxu0 %v1484
        %v1523 = vpop.f32.mrb[0].mxu0
        %v1524 = vadd.f32 0.0, %v1523
        %v1525 = vpop.f32.mrb[0].mxu0
        %v1526 = vpop.f32.mrb[0].mxu0
        %v1527 = vpop.f32.mrb[0].mxu0
        %1528 = vdwg.mxu0
        %s1529 = scalar_lea.vmem %s6, 8
        %v1530 = vld [vmem:[%s1529] sm:$0xf]
        %v1531 = vld [vmem:[%s1529 + $0x4] sm:$0xf]
        %v1532 = vpack.c.bf16 %v1524, %v1524
        %v1535 = vunpack.c.l.b16 %v1530
        %v1536 = vunpack.c.l.b16 %v1531
        %v1537 = vpack.c.b16 %v1536, %v1535
        %v1540 = vsel %vm1059, %v1532, 0
        %1542 = vmatprep.subr.bf16.mxu0 0
        %1543 = vmatpush1.bf16.msra.mxu0 %v1537
        %1544 = vmatprep.subr.bf16.mxu0 0
        %1545 = vmatpush1.bf16.msra.mxu0 0
        %1546 = vmatprep.subr.bf16.mxu0 0
        %1547 = vmatpush1.bf16.msra.mxu0 0
        %1548 = vmatprep.subr.bf16.mxu0 0
        %1549 = vmatpush1.bf16.msra.mxu0 0
        %1550 = vmatprep.subr.bf16.mxu0 0
        %1551 = vmatpush1.bf16.msra.mxu0 0
        %1552 = vmatprep.subr.bf16.mxu0 0
        %1553 = vmatpush1.bf16.msra.mxu0 0
        %1554 = vmatprep.subr.bf16.mxu0 0
        %1555 = vmatpush1.bf16.msra.mxu0 0
        %1556 = vmatprep.subr.bf16.mxu0 0
        %1557 = vmatpush1.bf16.msra.mxu0 0
        %1558 = vmatprep.subr.bf16.mxu0 0
        %1559 = vmatpush1.bf16.msra.mxu0 0
        %1560 = vmatprep.subr.bf16.mxu0 0
        %1561 = vmatpush1.bf16.msra.mxu0 0
        %1562 = vmatprep.subr.bf16.mxu0 0
        %1563 = vmatpush1.bf16.msra.mxu0 0
        %1564 = vmatprep.subr.bf16.mxu0 0
        %1565 = vmatpush1.bf16.msra.mxu0 0
        %1566 = vmatprep.subr.bf16.mxu0 0
        %1567 = vmatpush1.bf16.msra.mxu0 0
        %1568 = vmatprep.subr.bf16.mxu0 0
        %1569 = vmatpush1.bf16.msra.mxu0 0
        %1570 = vmatprep.subr.bf16.mxu0 0
        %1571 = vmatpush1.bf16.msra.mxu0 0
        %1572 = vmatprep.subr.bf16.mxu0 0
        %1573 = vmatpush1.bf16.msra.mxu0 0
        %1574 = vmatprep.mubr.bf16.mxu0 0
        %1575 = vmatmul.mubr.bf16.gmra.mrb[0].mxu0 %v1540
        %v1576 = vpop.f32.mrb[0].mxu0
        %v1577 = vadd.f32 0.0, %v1576
        %v1578 = vpop.f32.mrb[0].mxu0
        %v1579 = vpop.f32.mrb[0].mxu0
        %v1580 = vpop.f32.mrb[0].mxu0
        %1581 = vdwg.mxu0
        %v1582 = vadd.f32 %v1225, %v1577
        %v1583 = vadd.f32 %v1582, %v850
        %v1584 = vld [vmem:[%s8] sm:$0x1]
        %v1585 = vld [vmem:[%s9] sm:$0x1]
        %v1586 = vsel %vm822, %v1583, 0.0
        %1587 = vadd.xlane.f32.xlu0 %v1586
        %v1588 = vpop.xlane.xlu0 %1587
        %v1589 = vmul.f32 %v1588, %v826
        %v1590 = vsub.f32 %v1583, %v1589
        %v1591 = vmul.f32 %v1590, %v1590
        %v1592 = vsel %vm822, %v1591, 0.0
        %1593 = vadd.xlane.f32.xlu0 %v1592
        %v1594 = vpop.xlane.xlu0 %1593
        %v1595 = vmul.f32 %v1594, %v826
        %v1596 = vadd.f32 %v1595, 1e-12
        %v1597 = vrsqrt.pop %v1596
        %v1598 = vmul.f32 %v1590, %v1597
        %v1600 = vlaneseq
        %v1601 = vshrl.u32 %v1600, 7
        %v1602 = vsub.s32 0, %v1601
        %v1603 = vrot.slane %v1584, %v1602
        %v1605 = vmul.f32 %v1598, %v1603
        %v1607 = vlaneseq
        %v1608 = vshrl.u32 %v1607, 7
        %v1609 = vsub.s32 0, %v1608
        %v1610 = vrot.slane %v1585, %v1609
        %v1612 = vadd.f32 %v1605, %v1610
        %v1613 = vld [vmem:[%s10] sm:$0xf]
        %v1614 = vld [vmem:[%s10 + $0x4] sm:$0xf]
        %v1615 = vld [vmem:[%s10 + $0x8] sm:$0xf]
        %v1616 = vld [vmem:[%s10 + $0xc] sm:$0xf]
        %v1617 = vpack.c.bf16 %v1612, %v1612
        %v1618 = vld [vmem:[%s11] sm:$0x1]
        %v1620 = vlaneseq
        %v1621 = vshrl.u32 %v1620, 7
        %v1622 = vsub.s32 0, %v1621
        %v1623 = vrot.slane %v1618, %v1622
        %v1629 = vunpack.c.l.b16 %v1613
        %v1630 = vunpack.c.l.b16 %v1614
        %v1631 = vunpack.c.l.b16 %v1615
        %v1632 = vunpack.c.l.b16 %v1616
        %v1633 = vpack.c.b16 %v1630, %v1629
        %v1634 = vpack.c.b16 %v1632, %v1631
        %v1638 = vsel %vm822, %v1617, 0
        %1640 = vmatprep.subr.bf16.mxu0 0
        %1641 = vmatpush1.bf16.msra.mxu0 %v1633
        %1642 = vmatprep.subr.bf16.mxu0 0
        %1643 = vmatpush1.bf16.msra.mxu0 %v1634
        %1644 = vmatprep.subr.bf16.mxu0 0
        %1645 = vmatpush1.bf16.msra.mxu0 0
        %1646 = vmatprep.subr.bf16.mxu0 0
        %1647 = vmatpush1.bf16.msra.mxu0 0
        %1648 = vmatprep.subr.bf16.mxu0 0
        %1649 = vmatpush1.bf16.msra.mxu0 0
        %1650 = vmatprep.subr.bf16.mxu0 0
        %1651 = vmatpush1.bf16.msra.mxu0 0
        %1652 = vmatprep.subr.bf16.mxu0 0
        %1653 = vmatpush1.bf16.msra.mxu0 0
        %1654 = vmatprep.subr.bf16.mxu0 0
        %1655 = vmatpush1.bf16.msra.mxu0 0
        %1656 = vmatprep.subr.bf16.mxu0 0
        %1657 = vmatpush1.bf16.msra.mxu0 0
        %1658 = vmatprep.subr.bf16.mxu0 0
        %1659 = vmatpush1.bf16.msra.mxu0 0
        %1660 = vmatprep.subr.bf16.mxu0 0
        %1661 = vmatpush1.bf16.msra.mxu0 0
        %1662 = vmatprep.subr.bf16.mxu0 0
        %1663 = vmatpush1.bf16.msra.mxu0 0
        %1664 = vmatprep.subr.bf16.mxu0 0
        %1665 = vmatpush1.bf16.msra.mxu0 0
        %1666 = vmatprep.subr.bf16.mxu0 0
        %1667 = vmatpush1.bf16.msra.mxu0 0
        %1668 = vmatprep.subr.bf16.mxu0 0
        %1669 = vmatpush1.bf16.msra.mxu0 0
        %1670 = vmatprep.subr.bf16.mxu0 0
        %1671 = vmatpush1.bf16.msra.mxu0 0
        %1672 = vmatprep.mubr.bf16.mxu0 0
        %1673 = vmatmul.mubr.bf16.gmra.mrb[0].mxu0 %v1638
        %v1674 = vpop.f32.mrb[0].mxu0
        %v1675 = vadd.f32 %v1623, %v1674
        %v1676 = vpop.f32.mrb[0].mxu0
        %v1677 = vpop.f32.mrb[0].mxu0
        %v1678 = vpop.f32.mrb[0].mxu0
        %1679 = vdwg.mxu0
        %v1680 = vmul.f32 %v1675, %v1675
        %v1681 = vmul.f32 %v1675, %v1680
        %v1682 = vmul.f32 %v1681, 0.044715
        %v1683 = vadd.f32 %v1675, %v1682
        %v1684 = vmul.f32 %v1683, 0.7978846
        %v1685 = vtanh.pop %v1684
        %v1686 = vadd.f32 %v1685, 1.0
        %v1687 = vmul.f32 %v1686, 0.5
        %v1688 = vmul.f32 %v1675, %v1687
        %v1689 = vld [vmem:[%s12] sm:$0xf]
        %v1690 = vld [vmem:[%s12 + $0x4] sm:$0xf]
        %v1691 = vld [vmem:[%s12 + $0x8] sm:$0xf]
        %v1692 = vld [vmem:[%s12 + $0xc] sm:$0xf]
        %v1693 = vld [vmem:[%s12 + $0x10] sm:$0xf]
        %v1694 = vld [vmem:[%s12 + $0x14] sm:$0xf]
        %v1695 = vld [vmem:[%s12 + $0x18] sm:$0xf]
        %v1696 = vld [vmem:[%s12 + $0x1c] sm:$0xf]
        %v1697 = vpack.c.bf16 %v1688, %v1688
        %v1698 = vld [vmem:[%s13] sm:$0x1]
        %v1700 = vlaneseq
        %v1701 = vshrl.u32 %v1700, 7
        %v1702 = vsub.s32 0, %v1701
        %v1703 = vrot.slane %v1698, %v1702
        %v1713 = vunpack.c.l.b16 %v1689
        %v1714 = vunpack.c.l.b16 %v1690
        %v1715 = vunpack.c.l.b16 %v1691
        %v1716 = vunpack.c.l.b16 %v1692
        %v1717 = vunpack.c.l.b16 %v1693
        %v1718 = vunpack.c.l.b16 %v1694
        %v1719 = vunpack.c.l.b16 %v1695
        %v1720 = vunpack.c.l.b16 %v1696
        %v1721 = vpack.c.b16 %v1714, %v1713
        %v1722 = vpack.c.b16 %v1716, %v1715
        %v1723 = vpack.c.b16 %v1718, %v1717
        %v1724 = vpack.c.b16 %v1720, %v1719
        %vm1729 = vcmask 523264
        %v1731 = vsel %vm1729, %v1697, 0
        %1733 = vmatprep.subr.bf16.mxu0 0
        %1734 = vmatpush1.bf16.msra.mxu0 %v1721
        %1735 = vmatprep.subr.bf16.mxu0 0
        %1736 = vmatpush1.bf16.msra.mxu0 %v1722
        %1737 = vmatprep.subr.bf16.mxu0 0
        %1738 = vmatpush1.bf16.msra.mxu0 %v1723
        %1739 = vmatprep.subr.bf16.mxu0 0
        %1740 = vmatpush1.bf16.msra.mxu0 %v1724
        %1741 = vmatprep.subr.bf16.mxu0 0
        %1742 = vmatpush1.bf16.msra.mxu0 0
        %1743 = vmatprep.subr.bf16.mxu0 0
        %1744 = vmatpush1.bf16.msra.mxu0 0
        %1745 = vmatprep.subr.bf16.mxu0 0
        %1746 = vmatpush1.bf16.msra.mxu0 0
        %1747 = vmatprep.subr.bf16.mxu0 0
        %1748 = vmatpush1.bf16.msra.mxu0 0
        %1749 = vmatprep.subr.bf16.mxu0 0
        %1750 = vmatpush1.bf16.msra.mxu0 0
        %1751 = vmatprep.subr.bf16.mxu0 0
        %1752 = vmatpush1.bf16.msra.mxu0 0
        %1753 = vmatprep.subr.bf16.mxu0 0
        %1754 = vmatpush1.bf16.msra.mxu0 0
        %1755 = vmatprep.subr.bf16.mxu0 0
        %1756 = vmatpush1.bf16.msra.mxu0 0
        %1757 = vmatprep.subr.bf16.mxu0 0
        %1758 = vmatpush1.bf16.msra.mxu0 0
        %1759 = vmatprep.subr.bf16.mxu0 0
        %1760 = vmatpush1.bf16.msra.mxu0 0
        %1761 = vmatprep.subr.bf16.mxu0 0
        %1762 = vmatpush1.bf16.msra.mxu0 0
        %1763 = vmatprep.subr.bf16.mxu0 0
        %1764 = vmatpush1.bf16.msra.mxu0 0
        %1765 = vmatprep.mubr.bf16.mxu0 0
        %1766 = vmatmul.mubr.bf16.gmra.mrb[0].mxu0 %v1731
        %v1767 = vpop.f32.mrb[0].mxu0
        %v1768 = vadd.f32 %v1703, %v1767
        %v1769 = vpop.f32.mrb[0].mxu0
        %v1770 = vpop.f32.mrb[0].mxu0
        %v1771 = vpop.f32.mrb[0].mxu0
        %1772 = vdwg.mxu0
        %v1773 = vadd.f32 %v1768, %v1612
        %v1774 = vld [vmem:[%s14] sm:$0x1]
        %v1775 = vld [vmem:[%s15] sm:$0x1]
        %v1776 = vsel %vm822, %v1773, 0.0
        %1777 = vadd.xlane.f32.xlu0 %v1776
        %v1778 = vpop.xlane.xlu0 %1777
        %v1779 = vmul.f32 %v1778, %v826
        %v1780 = vsub.f32 %v1773, %v1779
        %v1781 = vmul.f32 %v1780, %v1780
        %v1782 = vsel %vm822, %v1781, 0.0
        %1783 = vadd.xlane.f32.xlu0 %v1782
        %v1784 = vpop.xlane.xlu0 %1783
        %v1785 = vmul.f32 %v1784, %v826
        %v1786 = vadd.f32 %v1785, 1e-12
        %v1787 = vrsqrt.pop %v1786
        %v1788 = vmul.f32 %v1780, %v1787
        %v1790 = vlaneseq
        %v1791 = vshrl.u32 %v1790, 7
        %v1792 = vsub.s32 0, %v1791
        %v1793 = vrot.slane %v1774, %v1792
        %v1795 = vmul.f32 %v1788, %v1793
        %v1797 = vlaneseq
        %v1798 = vshrl.u32 %v1797, 7
        %v1799 = vsub.s32 0, %v1798
        %v1800 = vrot.slane %v1775, %v1799
        %v1802 = vadd.f32 %v1795, %v1800
        %s1803 = scalar_lea.vmem %s797, 8 [#allocation2]
        %1804 = vst.msk [vmem:[%s1803] sm:$0xff] %vm822, %v1802
        %s1805 = scalar_lea.vmem %s7, 1
        %v1806 = vld [vmem:[%s1805] sm:$0x1]
        %s1807 = scalar_lea.vmem %s4, 96
        %v1808 = vld [vmem:[%s1807] sm:$0xf]
        %v1809 = vld [vmem:[%s1807 + $0x4] sm:$0xf]
        %v1810 = vld [vmem:[%s1807 + $0x8] sm:$0xf]
        %v1811 = vld [vmem:[%s1807 + $0xc] sm:$0xf]
        %v1812 = vpack.c.bf16 %v1802, %v1802
        %s1813 = scalar_lea.vmem %s5, 6
        %v1814 = vld [vmem:[%s1813] sm:$0x1]
        %v1816 = vlaneseq
        %v1817 = vshrl.u32 %v1816, 7
        %v1818 = vsub.s32 0, %v1817
        %v1819 = vrot.slane %v1814, %v1818
        %v1825 = vunpack.c.l.b16 %v1808
        %v1826 = vunpack.c.l.b16 %v1809
        %v1827 = vunpack.c.l.b16 %v1810
        %v1828 = vunpack.c.l.b16 %v1811
        %v1829 = vpack.c.b16 %v1826, %v1825
        %v1830 = vpack.c.b16 %v1828, %v1827
        %v1834 = vsel %vm822, %v1812, 0
        %1836 = vmatprep.subr.bf16.mxu0 0
        %1837 = vmatpush1.bf16.msra.mxu0 %v1829
        %1838 = vmatprep.subr.bf16.mxu0 0
        %1839 = vmatpush1.bf16.msra.mxu0 %v1830
        %1840 = vmatprep.subr.bf16.mxu0 0
        %1841 = vmatpush1.bf16.msra.mxu0 0
        %1842 = vmatprep.subr.bf16.mxu0 0
        %1843 = vmatpush1.bf16.msra.mxu0 0
        %1844 = vmatprep.subr.bf16.mxu0 0
        %1845 = vmatpush1.bf16.msra.mxu0 0
        %1846 = vmatprep.subr.bf16.mxu0 0
        %1847 = vmatpush1.bf16.msra.mxu0 0
        %1848 = vmatprep.subr.bf16.mxu0 0
        %1849 = vmatpush1.bf16.msra.mxu0 0
        %1850 = vmatprep.subr.bf16.mxu0 0
        %1851 = vmatpush1.bf16.msra.mxu0 0
        %1852 = vmatprep.subr.bf16.mxu0 0
        %1853 = vmatpush1.bf16.msra.mxu0 0
        %1854 = vmatprep.subr.bf16.mxu0 0
        %1855 = vmatpush1.bf16.msra.mxu0 0
        %1856 = vmatprep.subr.bf16.mxu0 0
        %1857 = vmatpush1.bf16.msra.mxu0 0
        %1858 = vmatprep.subr.bf16.mxu0 0
        %1859 = vmatpush1.bf16.msra.mxu0 0
        %1860 = vmatprep.subr.bf16.mxu0 0
        %1861 = vmatpush1.bf16.msra.mxu0 0
        %1862 = vmatprep.subr.bf16.mxu0 0
        %1863 = vmatpush1.bf16.msra.mxu0 0
        %1864 = vmatprep.subr.bf16.mxu0 0
        %1865 = vmatpush1.bf16.msra.mxu0 0
        %1866 = vmatprep.subr.bf16.mxu0 0
        %1867 = vmatpush1.bf16.msra.mxu0 0
        %1868 = vmatprep.mubr.bf16.mxu0 0
        %1869 = vmatmul.mubr.bf16.gmra.mrb[0].mxu0 %v1834
        %v1870 = vpop.f32.mrb[0].mxu0
        %v1871 = vadd.f32 %v1819, %v1870
        %v1872 = vpop.f32.mrb[0].mxu0
        %v1873 = vpop.f32.mrb[0].mxu0
        %v1874 = vpop.f32.mrb[0].mxu0
        %1875 = vdwg.mxu0
        %v1876 = vmul.f32 %v1871, 0.25
        %s1877 = scalar_lea.vmem %s4, 128
        %v1878 = vld [vmem:[%s1877] sm:$0xf]
        %v1879 = vld [vmem:[%s1877 + $0x4] sm:$0xf]
        %v1880 = vld [vmem:[%s1877 + $0x8] sm:$0xf]
        %v1881 = vld [vmem:[%s1877 + $0xc] sm:$0xf]
        %s1882 = scalar_lea.vmem %s5, 8
        %v1883 = vld [vmem:[%s1882] sm:$0x1]
        %v1885 = vlaneseq
        %v1886 = vshrl.u32 %v1885, 7
        %v1887 = vsub.s32 0, %v1886
        %v1888 = vrot.slane %v1883, %v1887
        %v1894 = vunpack.c.l.b16 %v1878
        %v1895 = vunpack.c.l.b16 %v1879
        %v1896 = vunpack.c.l.b16 %v1880
        %v1897 = vunpack.c.l.b16 %v1881
        %v1898 = vpack.c.b16 %v1895, %v1894
        %v1899 = vpack.c.b16 %v1897, %v1896
        %1902 = vmatprep.subr.bf16.mxu0 0
        %1903 = vmatpush1.bf16.msra.mxu0 %v1898
        %1904 = vmatprep.subr.bf16.mxu0 0
        %1905 = vmatpush1.bf16.msra.mxu0 %v1899
        %1906 = vmatprep.subr.bf16.mxu0 0
        %1907 = vmatpush1.bf16.msra.mxu0 0
        %1908 = vmatprep.subr.bf16.mxu0 0
        %1909 = vmatpush1.bf16.msra.mxu0 0
        %1910 = vmatprep.subr.bf16.mxu0 0
        %1911 = vmatpush1.bf16.msra.mxu0 0
        %1912 = vmatprep.subr.bf16.mxu0 0
        %1913 = vmatpush1.bf16.msra.mxu0 0
        %1914 = vmatprep.subr.bf16.mxu0 0
        %1915 = vmatpush1.bf16.msra.mxu0 0
        %1916 = vmatprep.subr.bf16.mxu0 0
        %1917 = vmatpush1.bf16.msra.mxu0 0
        %1918 = vmatprep.subr.bf16.mxu0 0
        %1919 = vmatpush1.bf16.msra.mxu0 0
        %1920 = vmatprep.subr.bf16.mxu0 0
        %1921 = vmatpush1.bf16.msra.mxu0 0
        %1922 = vmatprep.subr.bf16.mxu0 0
        %1923 = vmatpush1.bf16.msra.mxu0 0
        %1924 = vmatprep.subr.bf16.mxu0 0
        %1925 = vmatpush1.bf16.msra.mxu0 0
        %1926 = vmatprep.subr.bf16.mxu0 0
        %1927 = vmatpush1.bf16.msra.mxu0 0
        %1928 = vmatprep.subr.bf16.mxu0 0
        %1929 = vmatpush1.bf16.msra.mxu0 0
        %1930 = vmatprep.subr.bf16.mxu0 0
        %1931 = vmatpush1.bf16.msra.mxu0 0
        %1932 = vmatprep.subr.bf16.mxu0 0
        %1933 = vmatpush1.bf16.msra.mxu0 0
        %1934 = vmatprep.mubr.bf16.mxu0 0
        %1935 = vmatmul.mubr.bf16.gmra.mrb[0].mxu0 %v1834
        %v1936 = vpop.f32.mrb[0].mxu0
        %v1937 = vadd.f32 %v1888, %v1936
        %v1938 = vpop.f32.mrb[0].mxu0
        %v1939 = vpop.f32.mrb[0].mxu0
        %v1940 = vpop.f32.mrb[0].mxu0
        %1941 = vdwg.mxu0
        %s1942 = scalar_lea.vmem %s4, 160
        %v1943 = vld [vmem:[%s1942] sm:$0xf]
        %v1944 = vld [vmem:[%s1942 + $0x4] sm:$0xf]
        %v1945 = vld [vmem:[%s1942 + $0x8] sm:$0xf]
        %v1946 = vld [vmem:[%s1942 + $0xc] sm:$0xf]
        %s1947 = scalar_lea.vmem %s5, 10
        %v1948 = vld [vmem:[%s1947] sm:$0x1]
        %v1950 = vlaneseq
        %v1951 = vshrl.u32 %v1950, 7
        %v1952 = vsub.s32 0, %v1951
        %v1953 = vrot.slane %v1948, %v1952
        %v1959 = vunpack.c.l.b16 %v1943
        %v1960 = vunpack.c.l.b16 %v1944
        %v1961 = vunpack.c.l.b16 %v1945
        %v1962 = vunpack.c.l.b16 %v1946
        %v1963 = vpack.c.b16 %v1960, %v1959
        %v1964 = vpack.c.b16 %v1962, %v1961
        %1967 = vmatprep.subr.bf16.mxu0 0
        %1968 = vmatpush1.bf16.msra.mxu0 %v1963
        %1969 = vmatprep.subr.bf16.mxu0 0
        %1970 = vmatpush1.bf16.msra.mxu0 %v1964
        %1971 = vmatprep.subr.bf16.mxu0 0
        %1972 = vmatpush1.bf16.msra.mxu0 0
        %1973 = vmatprep.subr.bf16.mxu0 0
        %1974 = vmatpush1.bf16.msra.mxu0 0
        %1975 = vmatprep.subr.bf16.mxu0 0
        %1976 = vmatpush1.bf16.msra.mxu0 0
        %1977 = vmatprep.subr.bf16.mxu0 0
        %1978 = vmatpush1.bf16.msra.mxu0 0
        %1979 = vmatprep.subr.bf16.mxu0 0
        %1980 = vmatpush1.bf16.msra.mxu0 0
        %1981 = vmatprep.subr.bf16.mxu0 0
        %1982 = vmatpush1.bf16.msra.mxu0 0
        %1983 = vmatprep.subr.bf16.mxu0 0
        %1984 = vmatpush1.bf16.msra.mxu0 0
        %1985 = vmatprep.subr.bf16.mxu0 0
        %1986 = vmatpush1.bf16.msra.mxu0 0
        %1987 = vmatprep.subr.bf16.mxu0 0
        %1988 = vmatpush1.bf16.msra.mxu0 0
        %1989 = vmatprep.subr.bf16.mxu0 0
        %1990 = vmatpush1.bf16.msra.mxu0 0
        %1991 = vmatprep.subr.bf16.mxu0 0
        %1992 = vmatpush1.bf16.msra.mxu0 0
        %1993 = vmatprep.subr.bf16.mxu0 0
        %1994 = vmatpush1.bf16.msra.mxu0 0
        %1995 = vmatprep.subr.bf16.mxu0 0
        %1996 = vmatpush1.bf16.msra.mxu0 0
        %1997 = vmatprep.subr.bf16.mxu0 0
        %1998 = vmatpush1.bf16.msra.mxu0 0
        %1999 = vmatprep.mubr.bf16.mxu0 0
        %2000 = vmatmul.mubr.bf16.gmra.mrb[0].mxu0 %v1834
        %v2001 = vpop.f32.mrb[0].mxu0
        %v2002 = vadd.f32 %v1953, %v2001
        %v2003 = vpop.f32.mrb[0].mxu0
        %v2004 = vpop.f32.mrb[0].mxu0
        %v2005 = vpop.f32.mrb[0].mxu0
        %2006 = vdwg.mxu0
        %v2007 = vpack.c.bf16 %v1876, %v1876
        %v2008 = vpack.c.bf16 %v1937, %v1937
        %v2010 = vsel %vm1059, %v2007, 0
        %v2013 = vsel %vm1059, %v2008, 0
        %2015 = vmatprep.subr.bf16.mxu0 0
        %2016 = vmatpush1.bf16.xpose.msra.mxu0 %v2013
        %2017 = vmatprep.subr.bf16.mxu0 0
        %2018 = vmatpush1.bf16.xpose.msra.mxu0 0
        %2019 = vmatprep.subr.bf16.mxu0 0
        %2020 = vmatpush1.bf16.xpose.msra.mxu0 0
        %2021 = vmatprep.subr.bf16.mxu0 0
        %2022 = vmatpush1.bf16.xpose.msra.mxu0 0
        %2023 = vmatprep.subr.bf16.mxu0 0
        %2024 = vmatpush1.bf16.xpose.msra.mxu0 0
        %2025 = vmatprep.subr.bf16.mxu0 0
        %2026 = vmatpush1.bf16.xpose.msra.mxu0 0
        %2027 = vmatprep.subr.bf16.mxu0 0
        %2028 = vmatpush1.bf16.xpose.msra.mxu0 0
        %2029 = vmatprep.subr.bf16.mxu0 0
        %2030 = vmatpush1.bf16.xpose.msra.mxu0 0
        %2031 = vmatprep.subr.bf16.mxu0 0
        %2032 = vmatpush1.bf16.xpose.msra.mxu0 0
        %2033 = vmatprep.subr.bf16.mxu0 0
        %2034 = vmatpush1.bf16.xpose.msra.mxu0 0
        %2035 = vmatprep.subr.bf16.mxu0 0
        %2036 = vmatpush1.bf16.xpose.msra.mxu0 0
        %2037 = vmatprep.subr.bf16.mxu0 0
        %2038 = vmatpush1.bf16.xpose.msra.mxu0 0
        %2039 = vmatprep.subr.bf16.mxu0 0
        %2040 = vmatpush1.bf16.xpose.msra.mxu0 0
        %2041 = vmatprep.subr.bf16.mxu0 0
        %2042 = vmatpush1.bf16.xpose.msra.mxu0 0
        %2043 = vmatprep.subr.bf16.mxu0 0
        %2044 = vmatpush1.bf16.xpose.msra.mxu0 0
        %2045 = vmatprep.subr.bf16.mxu0 0
        %2046 = vmatpush1.bf16.xpose.msra.mxu0 0
        %2047 = vmatprep.mubr.bf16.mxu0 0
        %2048 = vmatmul.mubr.bf16.gmra.mrb[0].mxu0 %v2010
        %v2049 = vpop.f32.mrb[0].mxu0
        %v2050 = vadd.f32 %v1057, %v2049
        %v2051 = vpop.f32.mrb[0].mxu0
        %v2052 = vpop.f32.mrb[0].mxu0
        %v2053 = vpop.f32.mrb[0].mxu0
        %2054 = vdwg.mxu0
        %v2055 = vsel %vm1106, %v2050, -inf
        %2056 = vmax.xlane.f32.xlu0 %v2055
        %v2057 = vpop.xlane.xlu0 %2056
        %v2058 = vsub.f32 %v2050, %v2057
        %v2059 = vmul.f32 %v2058, 1.442695
        %v2060 = vpow.pop %v2059
        %v2061 = vsel %vm1106, %v2060, 0.0
        %2062 = vadd.xlane.f32.xlu0 %v2061
        %v2063 = vpop.xlane.xlu0 %2062
        %v2064 = vrcp.pop %v2063
        %v2065 = vmul.f32 %v2060, %v2064
        %v2066 = vpack.c.bf16 %v2065, %v2065
        %v2067 = vpack.c.bf16 %v2002, %v2002
        %v2069 = vsel %vm1106, %v2066, 0
        %v2072 = vsel %vm1123, %v2067, 0
        %2074 = vmatprep.subr.bf16.mxu0 0
        %2075 = vmatpush1.bf16.msra.mxu0 %v2072
        %2076 = vmatprep.subr.bf16.mxu0 0
        %2077 = vmatpush1.bf16.msra.mxu0 0
        %2078 = vmatprep.subr.bf16.mxu0 0
        %2079 = vmatpush1.bf16.msra.mxu0 0
        %2080 = vmatprep.subr.bf16.mxu0 0
        %2081 = vmatpush1.bf16.msra.mxu0 0
        %2082 = vmatprep.subr.bf16.mxu0 0
        %2083 = vmatpush1.bf16.msra.mxu0 0
        %2084 = vmatprep.subr.bf16.mxu0 0
        %2085 = vmatpush1.bf16.msra.mxu0 0
        %2086 = vmatprep.subr.bf16.mxu0 0
        %2087 = vmatpush1.bf16.msra.mxu0 0
        %2088 = vmatprep.subr.bf16.mxu0 0
        %2089 = vmatpush1.bf16.msra.mxu0 0
        %2090 = vmatprep.subr.bf16.mxu0 0
        %2091 = vmatpush1.bf16.msra.mxu0 0
        %2092 = vmatprep.subr.bf16.mxu0 0
        %2093 = vmatpush1.bf16.msra.mxu0 0
        %2094 = vmatprep.subr.bf16.mxu0 0
        %2095 = vmatpush1.bf16.msra.mxu0 0
        %2096 = vmatprep.subr.bf16.mxu0 0
        %2097 = vmatpush1.bf16.msra.mxu0 0
        %2098 = vmatprep.subr.bf16.mxu0 0
        %2099 = vmatpush1.bf16.msra.mxu0 0
        %2100 = vmatprep.subr.bf16.mxu0 0
        %2101 = vmatpush1.bf16.msra.mxu0 0
        %2102 = vmatprep.subr.bf16.mxu0 0
        %2103 = vmatpush1.bf16.msra.mxu0 0
        %2104 = vmatprep.subr.bf16.mxu0 0
        %2105 = vmatpush1.bf16.msra.mxu0 0
        %2106 = vmatprep.mubr.bf16.mxu0 0
        %2107 = vmatmul.mubr.bf16.gmra.mrb[0].mxu0 %v2069
        %v2108 = vpop.f32.mrb[0].mxu0
        %v2109 = vadd.f32 0.0, %v2108
        %v2110 = vpop.f32.mrb[0].mxu0
        %v2111 = vpop.f32.mrb[0].mxu0
        %v2112 = vpop.f32.mrb[0].mxu0
        %2113 = vdwg.mxu0
        %s2114 = scalar_lea.vmem %s6, 16
        %v2115 = vld [vmem:[%s2114] sm:$0xf]
        %v2116 = vld [vmem:[%s2114 + $0x4] sm:$0xf]
        %v2117 = vpack.c.bf16 %v2109, %v2109
        %v2120 = vunpack.c.l.b16 %v2115
        %v2121 = vunpack.c.l.b16 %v2116
        %v2122 = vpack.c.b16 %v2121, %v2120
        %v2125 = vsel %vm1059, %v2117, 0
        %2127 = vmatprep.subr.bf16.mxu0 0
        %2128 = vmatpush1.bf16.msra.mxu0 %v2122
        %2129 = vmatprep.subr.bf16.mxu0 0
        %2130 = vmatpush1.bf16.msra.mxu0 0
        %2131 = vmatprep.subr.bf16.mxu0 0
        %2132 = vmatpush1.bf16.msra.mxu0 0
        %2133 = vmatprep.subr.bf16.mxu0 0
        %2134 = vmatpush1.bf16.msra.mxu0 0
        %2135 = vmatprep.subr.bf16.mxu0 0
        %2136 = vmatpush1.bf16.msra.mxu0 0
        %2137 = vmatprep.subr.bf16.mxu0 0
        %2138 = vmatpush1.bf16.msra.mxu0 0
        %2139 = vmatprep.subr.bf16.mxu0 0
        %2140 = vmatpush1.bf16.msra.mxu0 0
        %2141 = vmatprep.subr.bf16.mxu0 0
        %2142 = vmatpush1.bf16.msra.mxu0 0
        %2143 = vmatprep.subr.bf16.mxu0 0
        %2144 = vmatpush1.bf16.msra.mxu0 0
        %2145 = vmatprep.subr.bf16.mxu0 0
        %2146 = vmatpush1.bf16.msra.mxu0 0
        %2147 = vmatprep.subr.bf16.mxu0 0
        %2148 = vmatpush1.bf16.msra.mxu0 0
        %2149 = vmatprep.subr.bf16.mxu0 0
        %2150 = vmatpush1.bf16.msra.mxu0 0
        %2151 = vmatprep.subr.bf16.mxu0 0
        %2152 = vmatpush1.bf16.msra.mxu0 0
        %2153 = vmatprep.subr.bf16.mxu0 0
        %2154 = vmatpush1.bf16.msra.mxu0 0
        %2155 = vmatprep.subr.bf16.mxu0 0
        %2156 = vmatpush1.bf16.msra.mxu0 0
        %2157 = vmatprep.subr.bf16.mxu0 0
        %2158 = vmatpush1.bf16.msra.mxu0 0
        %2159 = vmatprep.mubr.bf16.mxu0 0
        %2160 = vmatmul.mubr.bf16.gmra.mrb[0].mxu0 %v2125
        %v2161 = vpop.f32.mrb[0].mxu0
        %v2162 = vadd.f32 0.0, %v2161
        %v2163 = vpop.f32.mrb[0].mxu0
        %v2164 = vpop.f32.mrb[0].mxu0
        %v2165 = vpop.f32.mrb[0].mxu0
        %2166 = vdwg.mxu0
        %v2168 = vlaneseq
        %v2169 = vshrl.u32 %v2168, 7
        %v2170 = vsub.s32 0, %v2169
        %v2171 = vrot.slane %v1806, %v2170
        %v2173 = vadd.f32 %v2171, %v2162
        %s2174 = scalar_lea.vmem %s4, 112
        %v2175 = vld [vmem:[%s2174] sm:$0xf]
        %v2176 = vld [vmem:[%s2174 + $0x4] sm:$0xf]
        %v2177 = vld [vmem:[%s2174 + $0x8] sm:$0xf]
        %v2178 = vld [vmem:[%s2174 + $0xc] sm:$0xf]
        %s2179 = scalar_lea.vmem %s5, 7
        %v2180 = vld [vmem:[%s2179] sm:$0x1]
        %v2182 = vlaneseq
        %v2183 = vshrl.u32 %v2182, 7
        %v2184 = vsub.s32 0, %v2183
        %v2185 = vrot.slane %v2180, %v2184
        %v2191 = vunpack.c.l.b16 %v2175
        %v2192 = vunpack.c.l.b16 %v2176
        %v2193 = vunpack.c.l.b16 %v2177
        %v2194 = vunpack.c.l.b16 %v2178
        %v2195 = vpack.c.b16 %v2192, %v2191
        %v2196 = vpack.c.b16 %v2194, %v2193
        %2199 = vmatprep.subr.bf16.mxu0 0
        %2200 = vmatpush1.bf16.msra.mxu0 %v2195
        %2201 = vmatprep.subr.bf16.mxu0 0
        %2202 = vmatpush1.bf16.msra.mxu0 %v2196
        %2203 = vmatprep.subr.bf16.mxu0 0
        %2204 = vmatpush1.bf16.msra.mxu0 0
        %2205 = vmatprep.subr.bf16.mxu0 0
        %2206 = vmatpush1.bf16.msra.mxu0 0
        %2207 = vmatprep.subr.bf16.mxu0 0
        %2208 = vmatpush1.bf16.msra.mxu0 0
        %2209 = vmatprep.subr.bf16.mxu0 0
        %2210 = vmatpush1.bf16.msra.mxu0 0
        %2211 = vmatprep.subr.bf16.mxu0 0
        %2212 = vmatpush1.bf16.msra.mxu0 0
        %2213 = vmatprep.subr.bf16.mxu0 0
        %2214 = vmatpush1.bf16.msra.mxu0 0
        %2215 = vmatprep.subr.bf16.mxu0 0
        %2216 = vmatpush1.bf16.msra.mxu0 0
        %2217 = vmatprep.subr.bf16.mxu0 0
        %2218 = vmatpush1.bf16.msra.mxu0 0
        %2219 = vmatprep.subr.bf16.mxu0 0
        %2220 = vmatpush1.bf16.msra.mxu0 0
        %2221 = vmatprep.subr.bf16.mxu0 0
        %2222 = vmatpush1.bf16.msra.mxu0 0
        %2223 = vmatprep.subr.bf16.mxu0 0
        %2224 = vmatpush1.bf16.msra.mxu0 0
        %2225 = vmatprep.subr.bf16.mxu0 0
        %2226 = vmatpush1.bf16.msra.mxu0 0
        %2227 = vmatprep.subr.bf16.mxu0 0
        %2228 = vmatpush1.bf16.msra.mxu0 0
        %2229 = vmatprep.subr.bf16.mxu0 0
        %2230 = vmatpush1.bf16.msra.mxu0 0
        %2231 = vmatprep.mubr.bf16.mxu0 0
        %2232 = vmatmul.mubr.bf16.gmra.mrb[0].mxu0 %v1834
        %v2233 = vpop.f32.mrb[0].mxu0
        %v2234 = vadd.f32 %v2185, %v2233
        %v2235 = vpop.f32.mrb[0].mxu0
        %v2236 = vpop.f32.mrb[0].mxu0
        %v2237 = vpop.f32.mrb[0].mxu0
        %2238 = vdwg.mxu0
        %v2239 = vmul.f32 %v2234, 0.25
        %s2240 = scalar_lea.vmem %s4, 144
        %v2241 = vld [vmem:[%s2240] sm:$0xf]
        %v2242 = vld [vmem:[%s2240 + $0x4] sm:$0xf]
        %v2243 = vld [vmem:[%s2240 + $0x8] sm:$0xf]
        %v2244 = vld [vmem:[%s2240 + $0xc] sm:$0xf]
        %s2245 = scalar_lea.vmem %s5, 9
        %v2246 = vld [vmem:[%s2245] sm:$0x1]
        %v2248 = vlaneseq
        %v2249 = vshrl.u32 %v2248, 7
        %v2250 = vsub.s32 0, %v2249
        %v2251 = vrot.slane %v2246, %v2250
        %v2257 = vunpack.c.l.b16 %v2241
        %v2258 = vunpack.c.l.b16 %v2242
        %v2259 = vunpack.c.l.b16 %v2243
        %v2260 = vunpack.c.l.b16 %v2244
        %v2261 = vpack.c.b16 %v2258, %v2257
        %v2262 = vpack.c.b16 %v2260, %v2259
        %2265 = vmatprep.subr.bf16.mxu0 0
        %2266 = vmatpush1.bf16.msra.mxu0 %v2261
        %2267 = vmatprep.subr.bf16.mxu0 0
        %2268 = vmatpush1.bf16.msra.mxu0 %v2262
        %2269 = vmatprep.subr.bf16.mxu0 0
        %2270 = vmatpush1.bf16.msra.mxu0 0
        %2271 = vmatprep.subr.bf16.mxu0 0
        %2272 = vmatpush1.bf16.msra.mxu0 0
        %2273 = vmatprep.subr.bf16.mxu0 0
        %2274 = vmatpush1.bf16.msra.mxu0 0
        %2275 = vmatprep.subr.bf16.mxu0 0
        %2276 = vmatpush1.bf16.msra.mxu0 0
        %2277 = vmatprep.subr.bf16.mxu0 0
        %2278 = vmatpush1.bf16.msra.mxu0 0
        %2279 = vmatprep.subr.bf16.mxu0 0
        %2280 = vmatpush1.bf16.msra.mxu0 0
        %2281 = vmatprep.subr.bf16.mxu0 0
        %2282 = vmatpush1.bf16.msra.mxu0 0
        %2283 = vmatprep.subr.bf16.mxu0 0
        %2284 = vmatpush1.bf16.msra.mxu0 0
        %2285 = vmatprep.subr.bf16.mxu0 0
        %2286 = vmatpush1.bf16.msra.mxu0 0
        %2287 = vmatprep.subr.bf16.mxu0 0
        %2288 = vmatpush1.bf16.msra.mxu0 0
        %2289 = vmatprep.subr.bf16.mxu0 0
        %2290 = vmatpush1.bf16.msra.mxu0 0
        %2291 = vmatprep.subr.bf16.mxu0 0
        %2292 = vmatpush1.bf16.msra.mxu0 0
        %2293 = vmatprep.subr.bf16.mxu0 0
        %2294 = vmatpush1.bf16.msra.mxu0 0
        %2295 = vmatprep.subr.bf16.mxu0 0
        %2296 = vmatpush1.bf16.msra.mxu0 0
        %2297 = vmatprep.mubr.bf16.mxu0 0
        %2298 = vmatmul.mubr.bf16.gmra.mrb[0].mxu0 %v1834
        %v2299 = vpop.f32.mrb[0].mxu0
        %v2300 = vadd.f32 %v2251, %v2299
        %v2301 = vpop.f32.mrb[0].mxu0
        %v2302 = vpop.f32.mrb[0].mxu0
        %v2303 = vpop.f32.mrb[0].mxu0
        %2304 = vdwg.mxu0
        %s2305 = scalar_lea.vmem %s4, 176
        %v2306 = vld [vmem:[%s2305] sm:$0xf]
        %v2307 = vld [vmem:[%s2305 + $0x4] sm:$0xf]
        %v2308 = vld [vmem:[%s2305 + $0x8] sm:$0xf]
        %v2309 = vld [vmem:[%s2305 + $0xc] sm:$0xf]
        %s2310 = scalar_lea.vmem %s5, 11
        %v2311 = vld [vmem:[%s2310] sm:$0x1]
        %v2313 = vlaneseq
        %v2314 = vshrl.u32 %v2313, 7
        %v2315 = vsub.s32 0, %v2314
        %v2316 = vrot.slane %v2311, %v2315
        %v2322 = vunpack.c.l.b16 %v2306
        %v2323 = vunpack.c.l.b16 %v2307
        %v2324 = vunpack.c.l.b16 %v2308
        %v2325 = vunpack.c.l.b16 %v2309
        %v2326 = vpack.c.b16 %v2323, %v2322
        %v2327 = vpack.c.b16 %v2325, %v2324
        %2330 = vmatprep.subr.bf16.mxu0 0
        %2331 = vmatpush1.bf16.msra.mxu0 %v2326
        %2332 = vmatprep.subr.bf16.mxu0 0
        %2333 = vmatpush1.bf16.msra.mxu0 %v2327
        %2334 = vmatprep.subr.bf16.mxu0 0
        %2335 = vmatpush1.bf16.msra.mxu0 0
        %2336 = vmatprep.subr.bf16.mxu0 0
        %2337 = vmatpush1.bf16.msra.mxu0 0
        %2338 = vmatprep.subr.bf16.mxu0 0
        %2339 = vmatpush1.bf16.msra.mxu0 0
        %2340 = vmatprep.subr.bf16.mxu0 0
        %2341 = vmatpush1.bf16.msra.mxu0 0
        %2342 = vmatprep.subr.bf16.mxu0 0
        %2343 = vmatpush1.bf16.msra.mxu0 0
        %2344 = vmatprep.subr.bf16.mxu0 0
        %2345 = vmatpush1.bf16.msra.mxu0 0
        %2346 = vmatprep.subr.bf16.mxu0 0
        %2347 = vmatpush1.bf16.msra.mxu0 0
        %2348 = vmatprep.subr.bf16.mxu0 0
        %2349 = vmatpush1.bf16.msra.mxu0 0
        %2350 = vmatprep.subr.bf16.mxu0 0
        %2351 = vmatpush1.bf16.msra.mxu0 0
        %2352 = vmatprep.subr.bf16.mxu0 0
        %2353 = vmatpush1.bf16.msra.mxu0 0
        %2354 = vmatprep.subr.bf16.mxu0 0
        %2355 = vmatpush1.bf16.msra.mxu0 0
        %2356 = vmatprep.subr.bf16.mxu0 0
        %2357 = vmatpush1.bf16.msra.mxu0 0
        %2358 = vmatprep.subr.bf16.mxu0 0
        %2359 = vmatpush1.bf16.msra.mxu0 0
        %2360 = vmatprep.subr.bf16.mxu0 0
        %2361 = vmatpush1.bf16.msra.mxu0 0
        %2362 = vmatprep.mubr.bf16.mxu0 0
        %2363 = vmatmul.mubr.bf16.gmra.mrb[0].mxu0 %v1834
        %v2364 = vpop.f32.mrb[0].mxu0
        %v2365 = vadd.f32 %v2316, %v2364
        %v2366 = vpop.f32.mrb[0].mxu0
        %v2367 = vpop.f32.mrb[0].mxu0
        %v2368 = vpop.f32.mrb[0].mxu0
        %2369 = vdwg.mxu0
        %v2370 = vpack.c.bf16 %v2239, %v2239
        %v2371 = vpack.c.bf16 %v2300, %v2300
        %v2373 = vsel %vm1059, %v2370, 0
        %v2376 = vsel %vm1059, %v2371, 0
        %2378 = vmatprep.subr.bf16.mxu0 0
        %2379 = vmatpush1.bf16.xpose.msra.mxu0 %v2376
        %2380 = vmatprep.subr.bf16.mxu0 0
        %2381 = vmatpush1.bf16.xpose.msra.mxu0 0
        %2382 = vmatprep.subr.bf16.mxu0 0
        %2383 = vmatpush1.bf16.xpose.msra.mxu0 0
        %2384 = vmatprep.subr.bf16.mxu0 0
        %2385 = vmatpush1.bf16.xpose.msra.mxu0 0
        %2386 = vmatprep.subr.bf16.mxu0 0
        %2387 = vmatpush1.bf16.xpose.msra.mxu0 0
        %2388 = vmatprep.subr.bf16.mxu0 0
        %2389 = vmatpush1.bf16.xpose.msra.mxu0 0
        %2390 = vmatprep.subr.bf16.mxu0 0
        %2391 = vmatpush1.bf16.xpose.msra.mxu0 0
        %2392 = vmatprep.subr.bf16.mxu0 0
        %2393 = vmatpush1.bf16.xpose.msra.mxu0 0
        %2394 = vmatprep.subr.bf16.mxu0 0
        %2395 = vmatpush1.bf16.xpose.msra.mxu0 0
        %2396 = vmatprep.subr.bf16.mxu0 0
        %2397 = vmatpush1.bf16.xpose.msra.mxu0 0
        %2398 = vmatprep.subr.bf16.mxu0 0
        %2399 = vmatpush1.bf16.xpose.msra.mxu0 0
        %2400 = vmatprep.subr.bf16.mxu0 0
        %2401 = vmatpush1.bf16.xpose.msra.mxu0 0
        %2402 = vmatprep.subr.bf16.mxu0 0
        %2403 = vmatpush1.bf16.xpose.msra.mxu0 0
        %2404 = vmatprep.subr.bf16.mxu0 0
        %2405 = vmatpush1.bf16.xpose.msra.mxu0 0
        %2406 = vmatprep.subr.bf16.mxu0 0
        %2407 = vmatpush1.bf16.xpose.msra.mxu0 0
        %2408 = vmatprep.subr.bf16.mxu0 0
        %2409 = vmatpush1.bf16.xpose.msra.mxu0 0
        %2410 = vmatprep.mubr.bf16.mxu0 0
        %2411 = vmatmul.mubr.bf16.gmra.mrb[0].mxu0 %v2373
        %v2412 = vpop.f32.mrb[0].mxu0
        %v2413 = vadd.f32 %v1057, %v2412
        %v2414 = vpop.f32.mrb[0].mxu0
        %v2415 = vpop.f32.mrb[0].mxu0
        %v2416 = vpop.f32.mrb[0].mxu0
        %2417 = vdwg.mxu0
        %v2418 = vsel %vm1106, %v2413, -inf
        %2419 = vmax.xlane.f32.xlu0 %v2418
        %v2420 = vpop.xlane.xlu0 %2419
        %v2421 = vsub.f32 %v2413, %v2420
        %v2422 = vmul.f32 %v2421, 1.442695
        %v2423 = vpow.pop %v2422
        %v2424 = vsel %vm1106, %v2423, 0.0
        %2425 = vadd.xlane.f32.xlu0 %v2424
        %v2426 = vpop.xlane.xlu0 %2425
        %v2427 = vrcp.pop %v2426
        %v2428 = vmul.f32 %v2423, %v2427
        %v2429 = vpack.c.bf16 %v2428, %v2428
        %v2430 = vpack.c.bf16 %v2365, %v2365
        %v2432 = vsel %vm1106, %v2429, 0
        %v2435 = vsel %vm1123, %v2430, 0
        %2437 = vmatprep.subr.bf16.mxu0 0
        %2438 = vmatpush1.bf16.msra.mxu0 %v2435
        %2439 = vmatprep.subr.bf16.mxu0 0
        %2440 = vmatpush1.bf16.msra.mxu0 0
        %2441 = vmatprep.subr.bf16.mxu0 0
        %2442 = vmatpush1.bf16.msra.mxu0 0
        %2443 = vmatprep.subr.bf16.mxu0 0
        %2444 = vmatpush1.bf16.msra.mxu0 0
        %2445 = vmatprep.subr.bf16.mxu0 0
        %2446 = vmatpush1.bf16.msra.mxu0 0
        %2447 = vmatprep.subr.bf16.mxu0 0
        %2448 = vmatpush1.bf16.msra.mxu0 0
        %2449 = vmatprep.subr.bf16.mxu0 0
        %2450 = vmatpush1.bf16.msra.mxu0 0
        %2451 = vmatprep.subr.bf16.mxu0 0
        %2452 = vmatpush1.bf16.msra.mxu0 0
        %2453 = vmatprep.subr.bf16.mxu0 0
        %2454 = vmatpush1.bf16.msra.mxu0 0
        %2455 = vmatprep.subr.bf16.mxu0 0
        %2456 = vmatpush1.bf16.msra.mxu0 0
        %2457 = vmatprep.subr.bf16.mxu0 0
        %2458 = vmatpush1.bf16.msra.mxu0 0
        %2459 = vmatprep.subr.bf16.mxu0 0
        %2460 = vmatpush1.bf16.msra.mxu0 0
        %2461 = vmatprep.subr.bf16.mxu0 0
        %2462 = vmatpush1.bf16.msra.mxu0 0
        %2463 = vmatprep.subr.bf16.mxu0 0
        %2464 = vmatpush1.bf16.msra.mxu0 0
        %2465 = vmatprep.subr.bf16.mxu0 0
        %2466 = vmatpush1.bf16.msra.mxu0 0
        %2467 = vmatprep.subr.bf16.mxu0 0
        %2468 = vmatpush1.bf16.msra.mxu0 0
        %2469 = vmatprep.mubr.bf16.mxu0 0
        %2470 = vmatmul.mubr.bf16.gmra.mrb[0].mxu0 %v2432
        %v2471 = vpop.f32.mrb[0].mxu0
        %v2472 = vadd.f32 0.0, %v2471
        %v2473 = vpop.f32.mrb[0].mxu0
        %v2474 = vpop.f32.mrb[0].mxu0
        %v2475 = vpop.f32.mrb[0].mxu0
        %2476 = vdwg.mxu0
        %s2477 = scalar_lea.vmem %s6, 24
        %v2478 = vld [vmem:[%s2477] sm:$0xf]
        %v2479 = vld [vmem:[%s2477 + $0x4] sm:$0xf]
        %v2480 = vpack.c.bf16 %v2472, %v2472
        %v2483 = vunpack.c.l.b16 %v2478
        %v2484 = vunpack.c.l.b16 %v2479
        %v2485 = vpack.c.b16 %v2484, %v2483
        %v2488 = vsel %vm1059, %v2480, 0
        %2490 = vmatprep.subr.bf16.mxu0 0
        %2491 = vmatpush1.bf16.msra.mxu0 %v2485
        %2492 = vmatprep.subr.bf16.mxu0 0
        %2493 = vmatpush1.bf16.msra.mxu0 0
        %2494 = vmatprep.subr.bf16.mxu0 0
        %2495 = vmatpush1.bf16.msra.mxu0 0
        %2496 = vmatprep.subr.bf16.mxu0 0
        %2497 = vmatpush1.bf16.msra.mxu0 0
        %2498 = vmatprep.subr.bf16.mxu0 0
        %2499 = vmatpush1.bf16.msra.mxu0 0
        %2500 = vmatprep.subr.bf16.mxu0 0
        %2501 = vmatpush1.bf16.msra.mxu0 0
        %2502 = vmatprep.subr.bf16.mxu0 0
        %2503 = vmatpush1.bf16.msra.mxu0 0
        %2504 = vmatprep.subr.bf16.mxu0 0
        %2505 = vmatpush1.bf16.msra.mxu0 0
        %2506 = vmatprep.subr.bf16.mxu0 0
        %2507 = vmatpush1.bf16.msra.mxu0 0
        %2508 = vmatprep.subr.bf16.mxu0 0
        %2509 = vmatpush1.bf16.msra.mxu0 0
        %2510 = vmatprep.subr.bf16.mxu0 0
        %2511 = vmatpush1.bf16.msra.mxu0 0
        %2512 = vmatprep.subr.bf16.mxu0 0
        %2513 = vmatpush1.bf16.msra.mxu0 0
        %2514 = vmatprep.subr.bf16.mxu0 0
        %2515 = vmatpush1.bf16.msra.mxu0 0
        %2516 = vmatprep.subr.bf16.mxu0 0
        %2517 = vmatpush1.bf16.msra.mxu0 0
        %2518 = vmatprep.subr.bf16.mxu0 0
        %2519 = vmatpush1.bf16.msra.mxu0 0
        %2520 = vmatprep.subr.bf16.mxu0 0
        %2521 = vmatpush1.bf16.msra.mxu0 0
        %2522 = vmatprep.mubr.bf16.mxu0 0
        %2523 = vmatmul.mubr.bf16.gmra.mrb[0].mxu0 %v2488
        %v2524 = vpop.f32.mrb[0].mxu0
        %v2525 = vadd.f32 0.0, %v2524
        %v2526 = vpop.f32.mrb[0].mxu0
        %v2527 = vpop.f32.mrb[0].mxu0
        %v2528 = vpop.f32.mrb[0].mxu0
        %2529 = vdwg.mxu0
        %v2530 = vadd.f32 %v2173, %v2525
        %v2531 = vadd.f32 %v2530, %v1802
        %s2532 = scalar_lea.vmem %s8, 1
        %v2533 = vld [vmem:[%s2532] sm:$0x1]
        %s2534 = scalar_lea.vmem %s9, 1
        %v2535 = vld [vmem:[%s2534] sm:$0x1]
        %v2536 = vsel %vm822, %v2531, 0.0
        %2537 = vadd.xlane.f32.xlu0 %v2536
        %v2538 = vpop.xlane.xlu0 %2537
        %v2539 = vmul.f32 %v2538, %v826
        %v2540 = vsub.f32 %v2531, %v2539
        %v2541 = vmul.f32 %v2540, %v2540
        %v2542 = vsel %vm822, %v2541, 0.0
        %2543 = vadd.xlane.f32.xlu0 %v2542
        %v2544 = vpop.xlane.xlu0 %2543
        %v2545 = vmul.f32 %v2544, %v826
        %v2546 = vadd.f32 %v2545, 1e-12
        %v2547 = vrsqrt.pop %v2546
        %v2548 = vmul.f32 %v2540, %v2547
        %v2550 = vlaneseq
        %v2551 = vshrl.u32 %v2550, 7
        %v2552 = vsub.s32 0, %v2551
        %v2553 = vrot.slane %v2533, %v2552
        %v2555 = vmul.f32 %v2548, %v2553
        %v2557 = vlaneseq
        %v2558 = vshrl.u32 %v2557, 7
        %v2559 = vsub.s32 0, %v2558
        %v2560 = vrot.slane %v2535, %v2559
        %v2562 = vadd.f32 %v2555, %v2560
        %s2563 = scalar_lea.vmem %s10, 16
        %v2564 = vld [vmem:[%s2563] sm:$0xf]
        %v2565 = vld [vmem:[%s2563 + $0x4] sm:$0xf]
        %v2566 = vld [vmem:[%s2563 + $0x8] sm:$0xf]
        %v2567 = vld [vmem:[%s2563 + $0xc] sm:$0xf]
        %v2568 = vpack.c.bf16 %v2562, %v2562
        %s2569 = scalar_lea.vmem %s11, 1
        %v2570 = vld [vmem:[%s2569] sm:$0x1]
        %v2572 = vlaneseq
        %v2573 = vshrl.u32 %v2572, 7
        %v2574 = vsub.s32 0, %v2573
        %v2575 = vrot.slane %v2570, %v2574
        %v2581 = vunpack.c.l.b16 %v2564
        %v2582 = vunpack.c.l.b16 %v2565
        %v2583 = vunpack.c.l.b16 %v2566
        %v2584 = vunpack.c.l.b16 %v2567
        %v2585 = vpack.c.b16 %v2582, %v2581
        %v2586 = vpack.c.b16 %v2584, %v2583
        %v2590 = vsel %vm822, %v2568, 0
        %2592 = vmatprep.subr.bf16.mxu0 0
        %2593 = vmatpush1.bf16.msra.mxu0 %v2585
        %2594 = vmatprep.subr.bf16.mxu0 0
        %2595 = vmatpush1.bf16.msra.mxu0 %v2586
        %2596 = vmatprep.subr.bf16.mxu0 0
        %2597 = vmatpush1.bf16.msra.mxu0 0
        %2598 = vmatprep.subr.bf16.mxu0 0
        %2599 = vmatpush1.bf16.msra.mxu0 0
        %2600 = vmatprep.subr.bf16.mxu0 0
        %2601 = vmatpush1.bf16.msra.mxu0 0
        %2602 = vmatprep.subr.bf16.mxu0 0
        %2603 = vmatpush1.bf16.msra.mxu0 0
        %2604 = vmatprep.subr.bf16.mxu0 0
        %2605 = vmatpush1.bf16.msra.mxu0 0
        %2606 = vmatprep.subr.bf16.mxu0 0
        %2607 = vmatpush1.bf16.msra.mxu0 0
        %2608 = vmatprep.subr.bf16.mxu0 0
        %2609 = vmatpush1.bf16.msra.mxu0 0
        %2610 = vmatprep.subr.bf16.mxu0 0
        %2611 = vmatpush1.bf16.msra.mxu0 0
        %2612 = vmatprep.subr.bf16.mxu0 0
        %2613 = vmatpush1.bf16.msra.mxu0 0
        %2614 = vmatprep.subr.bf16.mxu0 0
        %2615 = vmatpush1.bf16.msra.mxu0 0
        %2616 = vmatprep.subr.bf16.mxu0 0
        %2617 = vmatpush1.bf16.msra.mxu0 0
        %2618 = vmatprep.subr.bf16.mxu0 0
        %2619 = vmatpush1.bf16.msra.mxu0 0
        %2620 = vmatprep.subr.bf16.mxu0 0
        %2621 = vmatpush1.bf16.msra.mxu0 0
        %2622 = vmatprep.subr.bf16.mxu0 0
        %2623 = vmatpush1.bf16.msra.mxu0 0
        %2624 = vmatprep.mubr.bf16.mxu0 0
        %2625 = vmatmul.mubr.bf16.gmra.mrb[0].mxu0 %v2590
        %v2626 = vpop.f32.mrb[0].mxu0
        %v2627 = vadd.f32 %v2575, %v2626
        %v2628 = vpop.f32.mrb[0].mxu0
        %v2629 = vpop.f32.mrb[0].mxu0
        %v2630 = vpop.f32.mrb[0].mxu0
        %2631 = vdwg.mxu0
        %v2632 = vmul.f32 %v2627, %v2627
        %v2633 = vmul.f32 %v2627, %v2632
        %v2634 = vmul.f32 %v2633, 0.044715
        %v2635 = vadd.f32 %v2627, %v2634
        %v2636 = vmul.f32 %v2635, 0.7978846
        %v2637 = vtanh.pop %v2636
        %v2638 = vadd.f32 %v2637, 1.0
        %v2639 = vmul.f32 %v2638, 0.5
        %v2640 = vmul.f32 %v2627, %v2639
        %s2641 = scalar_lea.vmem %s12, 32
        %v2642 = vld [vmem:[%s2641] sm:$0xf]
        %v2643 = vld [vmem:[%s2641 + $0x4] sm:$0xf]
        %v2644 = vld [vmem:[%s2641 + $0x8] sm:$0xf]
        %v2645 = vld [vmem:[%s2641 + $0xc] sm:$0xf]
        %v2646 = vld [vmem:[%s2641 + $0x10] sm:$0xf]
        %v2647 = vld [vmem:[%s2641 + $0x14] sm:$0xf]
        %v2648 = vld [vmem:[%s2641 + $0x18] sm:$0xf]
        %v2649 = vld [vmem:[%s2641 + $0x1c] sm:$0xf]
        %v2650 = vpack.c.bf16 %v2640, %v2640
        %s2651 = scalar_lea.vmem %s13, 1
        %v2652 = vld [vmem:[%s2651] sm:$0x1]
        %v2654 = vlaneseq
        %v2655 = vshrl.u32 %v2654, 7
        %v2656 = vsub.s32 0, %v2655
        %v2657 = vrot.slane %v2652, %v2656
        %v2667 = vunpack.c.l.b16 %v2642
        %v2668 = vunpack.c.l.b16 %v2643
        %v2669 = vunpack.c.l.b16 %v2644
        %v2670 = vunpack.c.l.b16 %v2645
        %v2671 = vunpack.c.l.b16 %v2646
        %v2672 = vunpack.c.l.b16 %v2647
        %v2673 = vunpack.c.l.b16 %v2648
        %v2674 = vunpack.c.l.b16 %v2649
        %v2675 = vpack.c.b16 %v2668, %v2667
        %v2676 = vpack.c.b16 %v2670, %v2669
        %v2677 = vpack.c.b16 %v2672, %v2671
        %v2678 = vpack.c.b16 %v2674, %v2673
        %v2684 = vsel %vm1729, %v2650, 0
        %2686 = vmatprep.subr.bf16.mxu0 0
        %2687 = vmatpush1.bf16.msra.mxu0 %v2675
        %2688 = vmatprep.subr.bf16.mxu0 0
        %2689 = vmatpush1.bf16.msra.mxu0 %v2676
        %2690 = vmatprep.subr.bf16.mxu0 0
        %2691 = vmatpush1.bf16.msra.mxu0 %v2677
        %2692 = vmatprep.subr.bf16.mxu0 0
        %2693 = vmatpush1.bf16.msra.mxu0 %v2678
        %2694 = vmatprep.subr.bf16.mxu0 0
        %2695 = vmatpush1.bf16.msra.mxu0 0
        %2696 = vmatprep.subr.bf16.mxu0 0
        %2697 = vmatpush1.bf16.msra.mxu0 0
        %2698 = vmatprep.subr.bf16.mxu0 0
        %2699 = vmatpush1.bf16.msra.mxu0 0
        %2700 = vmatprep.subr.bf16.mxu0 0
        %2701 = vmatpush1.bf16.msra.mxu0 0
        %2702 = vmatprep.subr.bf16.mxu0 0
        %2703 = vmatpush1.bf16.msra.mxu0 0
        %2704 = vmatprep.subr.bf16.mxu0 0
        %2705 = vmatpush1.bf16.msra.mxu0 0
        %2706 = vmatprep.subr.bf16.mxu0 0
        %2707 = vmatpush1.bf16.msra.mxu0 0
        %2708 = vmatprep.subr.bf16.mxu0 0
        %2709 = vmatpush1.bf16.msra.mxu0 0
        %2710 = vmatprep.subr.bf16.mxu0 0
        %2711 = vmatpush1.bf16.msra.mxu0 0
        %2712 = vmatprep.subr.bf16.mxu0 0
        %2713 = vmatpush1.bf16.msra.mxu0 0
        %2714 = vmatprep.subr.bf16.mxu0 0
        %2715 = vmatpush1.bf16.msra.mxu0 0
        %2716 = vmatprep.subr.bf16.mxu0 0
        %2717 = vmatpush1.bf16.msra.mxu0 0
        %2718 = vmatprep.mubr.bf16.mxu0 0
        %2719 = vmatmul.mubr.bf16.gmra.mrb[0].mxu0 %v2684
        %v2720 = vpop.f32.mrb[0].mxu0
        %v2721 = vadd.f32 %v2657, %v2720
        %v2722 = vpop.f32.mrb[0].mxu0
        %v2723 = vpop.f32.mrb[0].mxu0
        %v2724 = vpop.f32.mrb[0].mxu0
        %2725 = vdwg.mxu0
        %v2726 = vadd.f32 %v2721, %v2562
        %s2727 = scalar_lea.vmem %s14, 1
        %v2728 = vld [vmem:[%s2727] sm:$0x1]
        %s2729 = scalar_lea.vmem %s15, 1
        %v2730 = vld [vmem:[%s2729] sm:$0x1]
        %v2731 = vsel %vm822, %v2726, 0.0
        %2732 = vadd.xlane.f32.xlu0 %v2731
        %v2733 = vpop.xlane.xlu0 %2732
        %v2734 = vmul.f32 %v2733, %v826
        %v2735 = vsub.f32 %v2726, %v2734
        %v2736 = vmul.f32 %v2735, %v2735
        %v2737 = vsel %vm822, %v2736, 0.0
        %2738 = vadd.xlane.f32.xlu0 %v2737
        %v2739 = vpop.xlane.xlu0 %2738
        %v2740 = vmul.f32 %v2739, %v826
        %v2741 = vadd.f32 %v2740, 1e-12
        %v2742 = vrsqrt.pop %v2741
        %v2743 = vmul.f32 %v2735, %v2742
        %v2745 = vlaneseq
        %v2746 = vshrl.u32 %v2745, 7
        %v2747 = vsub.s32 0, %v2746
        %v2748 = vrot.slane %v2728, %v2747
        %v2750 = vmul.f32 %v2743, %v2748
        %v2752 = vlaneseq
        %v2753 = vshrl.u32 %v2752, 7
        %v2754 = vsub.s32 0, %v2753
        %v2755 = vrot.slane %v2730, %v2754
        %v2757 = vadd.f32 %v2750, %v2755
        %s2758 = scalar_lea.vmem %s797, 16 [#allocation2]
        %2759 = vst.msk [vmem:[%s2758] sm:$0xff] %vm822, %v2757
        %v2760 = vld [vmem:[%s16] sm:$0xf]
        %v2761 = vld [vmem:[%s16 + $0x4] sm:$0xf]
        %v2762 = vld [vmem:[%s16 + $0x8] sm:$0xf]
        %v2763 = vld [vmem:[%s16 + $0xc] sm:$0xf]
        %v2764 = vpack.c.bf16 %v2757, %v2757
        %v2765 = vld [vmem:[%s17] sm:$0x1]
        %v2770 = vunpack.c.l.b16 %v2760
        %v2771 = vunpack.c.l.b16 %v2761
        %v2772 = vunpack.c.l.b16 %v2762
        %v2773 = vunpack.c.l.b16 %v2763
        %v2774 = vpack.c.b16 %v2771, %v2770
        %v2775 = vpack.c.b16 %v2773, %v2772
        %v2779 = vsel %vm822, %v2764, 0
        %2781 = vmatprep.subr.bf16.mxu0 0
        %2782 = vmatpush1.bf16.msra.mxu0 %v2774
        %2783 = vmatprep.subr.bf16.mxu0 0
        %2784 = vmatpush1.bf16.msra.mxu0 %v2775
        %2785 = vmatprep.subr.bf16.mxu0 0
        %2786 = vmatpush1.bf16.msra.mxu0 0
        %2787 = vmatprep.subr.bf16.mxu0 0
        %2788 = vmatpush1.bf16.msra.mxu0 0
        %2789 = vmatprep.subr.bf16.mxu0 0
        %2790 = vmatpush1.bf16.msra.mxu0 0
        %2791 = vmatprep.subr.bf16.mxu0 0
        %2792 = vmatpush1.bf16.msra.mxu0 0
        %2793 = vmatprep.subr.bf16.mxu0 0
        %2794 = vmatpush1.bf16.msra.mxu0 0
        %2795 = vmatprep.subr.bf16.mxu0 0
        %2796 = vmatpush1.bf16.msra.mxu0 0
        %2797 = vmatprep.subr.bf16.mxu0 0
        %2798 = vmatpush1.bf16.msra.mxu0 0
        %2799 = vmatprep.subr.bf16.mxu0 0
        %2800 = vmatpush1.bf16.msra.mxu0 0
        %2801 = vmatprep.subr.bf16.mxu0 0
        %2802 = vmatpush1.bf16.msra.mxu0 0
        %2803 = vmatprep.subr.bf16.mxu0 0
        %2804 = vmatpush1.bf16.msra.mxu0 0
        %2805 = vmatprep.subr.bf16.mxu0 0
        %2806 = vmatpush1.bf16.msra.mxu0 0
        %2807 = vmatprep.subr.bf16.mxu0 0
        %2808 = vmatpush1.bf16.msra.mxu0 0
        %2809 = vmatprep.subr.bf16.mxu0 0
        %2810 = vmatpush1.bf16.msra.mxu0 0
        %2811 = vmatprep.subr.bf16.mxu0 0
        %2812 = vmatpush1.bf16.msra.mxu0 0
        %2813 = vmatprep.mubr.bf16.mxu0 0
        %2814 = vmatmul.mubr.bf16.gmra.mrb[0].mxu0 %v2779
        %v2815 = vpop.f32.mrb[0].mxu0
        %v2816 = vadd.f32 %v2765, %v2815
        %v2817 = vpop.f32.mrb[0].mxu0
        %v2818 = vpop.f32.mrb[0].mxu0
        %v2819 = vpop.f32.mrb[0].mxu0
        %2820 = vdwg.mxu0
        %v2821 = vtanh.pop %v2816
        %v2822 = vld [vmem:[%s18] sm:$0xf]
        %v2823 = vld [vmem:[%s18 + $0x4] sm:$0xf]
        %v2824 = vld [vmem:[%s18 + $0x8] sm:$0xf]
        %v2825 = vld [vmem:[%s18 + $0xc] sm:$0xf]
        %v2826 = vpack.c.bf16 %v2821, %v2821
        %v2827 = vld [vmem:[%s19] sm:$0x1]
        %v2832 = vunpack.c.l.b16 %v2822
        %v2833 = vunpack.c.l.b16 %v2823
        %v2834 = vunpack.c.l.b16 %v2824
        %v2835 = vunpack.c.l.b16 %v2825
        %v2836 = vpack.c.b16 %v2833, %v2832
        %v2837 = vpack.c.b16 %v2835, %v2834
        %v2841 = vsel %vm822, %v2826, 0
        %2843 = vmatprep.subr.bf16.mxu0 0
        %2844 = vmatpush1.bf16.msra.mxu0 %v2836
        %2845 = vmatprep.subr.bf16.mxu0 0
        %2846 = vmatpush1.bf16.msra.mxu0 %v2837
        %2847 = vmatprep.subr.bf16.mxu0 0
        %2848 = vmatpush1.bf16.msra.mxu0 0
        %2849 = vmatprep.subr.bf16.mxu0 0
        %2850 = vmatpush1.bf16.msra.mxu0 0
        %2851 = vmatprep.subr.bf16.mxu0 0
        %2852 = vmatpush1.bf16.msra.mxu0 0
        %2853 = vmatprep.subr.bf16.mxu0 0
        %2854 = vmatpush1.bf16.msra.mxu0 0
        %2855 = vmatprep.subr.bf16.mxu0 0
        %2856 = vmatpush1.bf16.msra.mxu0 0
        %2857 = vmatprep.subr.bf16.mxu0 0
        %2858 = vmatpush1.bf16.msra.mxu0 0
        %2859 = vmatprep.subr.bf16.mxu0 0
        %2860 = vmatpush1.bf16.msra.mxu0 0
        %2861 = vmatprep.subr.bf16.mxu0 0
        %2862 = vmatpush1.bf16.msra.mxu0 0
        %2863 = vmatprep.subr.bf16.mxu0 0
        %2864 = vmatpush1.bf16.msra.mxu0 0
        %2865 = vmatprep.subr.bf16.mxu0 0
        %2866 = vmatpush1.bf16.msra.mxu0 0
        %2867 = vmatprep.subr.bf16.mxu0 0
        %2868 = vmatpush1.bf16.msra.mxu0 0
        %2869 = vmatprep.subr.bf16.mxu0 0
        %2870 = vmatpush1.bf16.msra.mxu0 0
        %2871 = vmatprep.subr.bf16.mxu0 0
        %2872 = vmatpush1.bf16.msra.mxu0 0
        %2873 = vmatprep.subr.bf16.mxu0 0
        %2874 = vmatpush1.bf16.msra.mxu0 0
        %2875 = vmatprep.mubr.bf16.mxu0 0
        %2876 = vmatmul.mubr.bf16.gmra.mrb[0].mxu0 %v2841
        %v2877 = vpop.f32.mrb[0].mxu0
        %v2878 = vadd.f32 %v2827, %v2877
        %v2879 = vpop.f32.mrb[0].mxu0
        %v2880 = vpop.f32.mrb[0].mxu0
        %v2881 = vpop.f32.mrb[0].mxu0
        %2882 = vdwg.mxu0
        %2883 = vst [vmem:[%s803] sm:$0x1] %v2878
        %v2884 = vld [vmem:[%s20] sm:$0xf]
        %v2885 = vld [vmem:[%s20 + $0x4] sm:$0xf]
        %v2886 = vld [vmem:[%s20 + $0x8] sm:$0xf]
        %v2887 = vld [vmem:[%s20 + $0xc] sm:$0xf]
        %v2888 = vld [vmem:[%s21] sm:$0x1]
        %v2893 = vunpack.c.l.b16 %v2884
        %v2894 = vunpack.c.l.b16 %v2885
        %v2895 = vunpack.c.l.b16 %v2886
        %v2896 = vunpack.c.l.b16 %v2887
        %v2897 = vpack.c.b16 %v2894, %v2893
        %v2898 = vpack.c.b16 %v2896, %v2895
        %2901 = vmatprep.subr.bf16.mxu0 0
        %2902 = vmatpush1.bf16.msra.mxu0 %v2897
        %2903 = vmatprep.subr.bf16.mxu0 0
        %2904 = vmatpush1.bf16.msra.mxu0 %v2898
        %2905 = vmatprep.subr.bf16.mxu0 0
        %2906 = vmatpush1.bf16.msra.mxu0 0
        %2907 = vmatprep.subr.bf16.mxu0 0
        %2908 = vmatpush1.bf16.msra.mxu0 0
        %2909 = vmatprep.subr.bf16.mxu0 0
        %2910 = vmatpush1.bf16.msra.mxu0 0
        %2911 = vmatprep.subr.bf16.mxu0 0
        %2912 = vmatpush1.bf16.msra.mxu0 0
        %2913 = vmatprep.subr.bf16.mxu0 0
        %2914 = vmatpush1.bf16.msra.mxu0 0
        %2915 = vmatprep.subr.bf16.mxu0 0
        %2916 = vmatpush1.bf16.msra.mxu0 0
        %2917 = vmatprep.subr.bf16.mxu0 0
        %2918 = vmatpush1.bf16.msra.mxu0 0
        %2919 = vmatprep.subr.bf16.mxu0 0
        %2920 = vmatpush1.bf16.msra.mxu0 0
        %2921 = vmatprep.subr.bf16.mxu0 0
        %2922 = vmatpush1.bf16.msra.mxu0 0
        %2923 = vmatprep.subr.bf16.mxu0 0
        %2924 = vmatpush1.bf16.msra.mxu0 0
        %2925 = vmatprep.subr.bf16.mxu0 0
        %2926 = vmatpush1.bf16.msra.mxu0 0
        %2927 = vmatprep.subr.bf16.mxu0 0
        %2928 = vmatpush1.bf16.msra.mxu0 0
        %2929 = vmatprep.subr.bf16.mxu0 0
        %2930 = vmatpush1.bf16.msra.mxu0 0
        %2931 = vmatprep.subr.bf16.mxu0 0
        %2932 = vmatpush1.bf16.msra.mxu0 0
        %2933 = vmatprep.mubr.bf16.mxu0 0
        %2934 = vmatmul.mubr.bf16.gmra.mrb[0].mxu0 %v2841
        %v2935 = vpop.f32.mrb[0].mxu0
        %v2936 = vadd.f32 %v2888, %v2935
        %v2937 = vpop.f32.mrb[0].mxu0
        %v2938 = vpop.f32.mrb[0].mxu0
        %v2939 = vpop.f32.mrb[0].mxu0
        %2940 = vdwg.mxu0
        %v2941 = vmax.f32 %v2936, 0.0
        %v2942 = vld [vmem:[%s22] sm:$0xf]
        %v2943 = vld [vmem:[%s22 + $0x4] sm:$0xf]
        %v2944 = vld [vmem:[%s22 + $0x8] sm:$0xf]
        %v2945 = vld [vmem:[%s22 + $0xc] sm:$0xf]
        %v2946 = vpack.c.bf16 %v2941, %v2941
        %v2947 = vld [vmem:[%s23] sm:$0x1]
        %v2952 = vunpack.c.l.b16 %v2942
        %v2953 = vunpack.c.l.b16 %v2943
        %v2954 = vunpack.c.l.b16 %v2944
        %v2955 = vunpack.c.l.b16 %v2945
        %v2956 = vpack.c.b16 %v2953, %v2952
        %v2957 = vpack.c.b16 %v2955, %v2954
        %v2961 = vsel %vm822, %v2946, 0
        %2963 = vmatprep.subr.bf16.mxu0 0
        %2964 = vmatpush1.bf16.msra.mxu0 %v2956
        %2965 = vmatprep.subr.bf16.mxu0 0
        %2966 = vmatpush1.bf16.msra.mxu0 %v2957
        %2967 = vmatprep.subr.bf16.mxu0 0
        %2968 = vmatpush1.bf16.msra.mxu0 0
        %2969 = vmatprep.subr.bf16.mxu0 0
        %2970 = vmatpush1.bf16.msra.mxu0 0
        %2971 = vmatprep.subr.bf16.mxu0 0
        %2972 = vmatpush1.bf16.msra.mxu0 0
        %2973 = vmatprep.subr.bf16.mxu0 0
        %2974 = vmatpush1.bf16.msra.mxu0 0
        %2975 = vmatprep.subr.bf16.mxu0 0
        %2976 = vmatpush1.bf16.msra.mxu0 0
        %2977 = vmatprep.subr.bf16.mxu0 0
        %2978 = vmatpush1.bf16.msra.mxu0 0
        %2979 = vmatprep.subr.bf16.mxu0 0
        %2980 = vmatpush1.bf16.msra.mxu0 0
        %2981 = vmatprep.subr.bf16.mxu0 0
        %2982 = vmatpush1.bf16.msra.mxu0 0
        %2983 = vmatprep.subr.bf16.mxu0 0
        %2984 = vmatpush1.bf16.msra.mxu0 0
        %2985 = vmatprep.subr.bf16.mxu0 0
        %2986 = vmatpush1.bf16.msra.mxu0 0
        %2987 = vmatprep.subr.bf16.mxu0 0
        %2988 = vmatpush1.bf16.msra.mxu0 0
        %2989 = vmatprep.subr.bf16.mxu0 0
        %2990 = vmatpush1.bf16.msra.mxu0 0
        %2991 = vmatprep.subr.bf16.mxu0 0
        %2992 = vmatpush1.bf16.msra.mxu0 0
        %2993 = vmatprep.subr.bf16.mxu0 0
        %2994 = vmatpush1.bf16.msra.mxu0 0
        %2995 = vmatprep.mubr.bf16.mxu0 0
        %2996 = vmatmul.mubr.bf16.gmra.mrb[0].mxu0 %v2961
        %v2997 = vpop.f32.mrb[0].mxu0
        %v2998 = vadd.f32 %v2947, %v2997
        %v2999 = vpop.f32.mrb[0].mxu0
        %v3000 = vpop.f32.mrb[0].mxu0
        %v3001 = vpop.f32.mrb[0].mxu0
        %3002 = vdwg.mxu0
        %3003 = vst [vmem:[%s809] sm:$0x1] %v2998
        %s3004 = sand.u32 %s566, 1
        %s3005 = scalar_lea.sflag [#allocation3], %s3004
        %s3006 = sand.u32 %s566, 1
        %s3007 = smul.addr %s3006, 24
        %s3008 = scalar_lea.vmem [#allocation2], %s3007
        %s3009 = sand.u32 %s44, 1
        %s3010 = scalar_lea.sflag [#allocation5], %s3009
        %s3011 = sand.u32 %s592, 1
        %s3012 = scalar_lea.vmem [#allocation4], %s3011
        %s3013 = sand.u32 %s44, 1
        %s3014 = scalar_lea.sflag [#allocation5], %s3013
        %s3015 = sand.u32 %s618, 1
        %s3016 = scalar_lea.vmem [#allocation6], %s3015
        // Predicated region
        $region117: #{tpu_custom_call.1} parent=115 // pred_check
          %p3017 = pneg %p576
        $region118: #{tpu_custom_call.1} parent=115 // pred_check_branch
          %3019 = sbr.rel (%p3017) target = $region120
        $region119: #{tpu_custom_call.1} parent=115 // pred_region
          %s3021 = ssub.s32 384, 384
          %3022 = vsyncadd %s3005, %s3021
          %s3023 = smul.addr %s44, 3
          %s3024 = smul.addr %s3023, 128
          %s3025 = scalar_lea.hbm %s24, %s3024
          %s3026 = sshll.u32 %s3008, 4
          %s3027 = int_to_ptr.vmem [resolvable:$true] %s3026
          %3032 = dma.vmem_to_hbm [thread:$0]  %s3027, 384, %s3025, %s3005, 128, 128, 8
        $region120: #{tpu_custom_call.1} parent=115 // pred_fallthru
          _
        // Predicated region
        $region121: #{tpu_custom_call.1} parent=115 // pred_check
          %p3033 = pneg %p602
        $region122: #{tpu_custom_call.1} parent=115 // pred_check_branch
          %3035 = sbr.rel (%p3033) target = $region124
        $region123: #{tpu_custom_call.1} parent=115 // pred_region
          %s3037 = ssub.s32 16, 16
          %3038 = vsyncadd %s3010, %s3037
          %s3039 = smul.addr %s44, 16
          %s3040 = scalar_lea.hbm %s25, %s3039
          %s3042 = sshll.u32 %s3012, 4
          %s3043 = int_to_ptr.vmem [resolvable:$true] %s3042
          %3045 = dma.vmem_to_hbm [thread:$0]  %s3043, 16, %s3040, %s3010
        $region124: #{tpu_custom_call.1} parent=115 // pred_fallthru
          _
        // Predicated region
        $region125: #{tpu_custom_call.1} parent=115 // pred_check
          %p3046 = pneg %p628
        $region126: #{tpu_custom_call.1} parent=115 // pred_check_branch
          %3048 = sbr.rel (%p3046) target = $region128
        $region127: #{tpu_custom_call.1} parent=115 // pred_region
          %s3050 = ssub.s32 16, 16
          %3051 = vsyncadd %s3014, %s3050
          %s3052 = smul.addr %s44, 16
          %s3053 = scalar_lea.hbm %s26, %s3052
          %s3055 = sshll.u32 %s3016, 4
          %s3056 = int_to_ptr.vmem [resolvable:$true] %s3055
          %3058 = dma.vmem_to_hbm [thread:$0]  %s3056, 16, %s3053, %s3014
        $region128: #{tpu_custom_call.1} parent=115 // pred_fallthru
          _
      $region116: #{tpu_custom_call.1} parent=5 // pred_fallthru
        _
      %p3059 = scmp.le.s32.totalorder 2, %s39
      // Predicated region
      $region129: #{tpu_custom_call.1} parent=5 // pred_check
        %p3060 = pneg %p3059
      $region130: #{tpu_custom_call.1} parent=5 // pred_check_branch
        %3062 = sbr.rel (%p3060) target = $region132
      $region131: #{tpu_custom_call.1} parent=5 // pred_region
        %s3063 = ssub.s32 %s39, 2
        // Predicated region
        $region133: #{tpu_custom_call.1} parent=131 // pred_check
          %p3064 = pneg %p582
        $region134: #{tpu_custom_call.1} parent=131 // pred_check_branch
          %3066 = sbr.rel (%p3064) target = $region136
        $region135: #{tpu_custom_call.1} parent=131 // pred_region
          %s3067 = sand.u32 %s567, 1
          %s3068 = scalar_lea.sflag [#allocation3], %s3067
          %s3069 = sand.u32 %s567, 1
          %s3070 = smul.addr %s3069, 24
          %s3071 = scalar_lea.vmem [#allocation2], %s3070
          %3072 = dma.done %s3068, 384
        $region136: #{tpu_custom_call.1} parent=131 // pred_fallthru
          _
        // Predicated region
        $region137: #{tpu_custom_call.1} parent=131 // pred_check
          %p3073 = pneg %p608
        $region138: #{tpu_custom_call.1} parent=131 // pred_check_branch
          %3075 = sbr.rel (%p3073) target = $region140
        $region139: #{tpu_custom_call.1} parent=131 // pred_region
          %s3076 = sand.u32 %s45, 1
          %s3077 = scalar_lea.sflag [#allocation5], %s3076
          %s3078 = sand.u32 %s593, 1
          %s3079 = scalar_lea.vmem [#allocation4], %s3078
          %3080 = dma.done %s3077, 16
        $region140: #{tpu_custom_call.1} parent=131 // pred_fallthru
          _
        // Predicated region
        $region141: #{tpu_custom_call.1} parent=131 // pred_check
          %p3081 = pneg %p634
        $region142: #{tpu_custom_call.1} parent=131 // pred_check_branch
          %3083 = sbr.rel (%p3081) target = $region144
        $region143: #{tpu_custom_call.1} parent=131 // pred_region
          %s3084 = sand.u32 %s45, 1
          %s3085 = scalar_lea.sflag [#allocation5], %s3084
          %s3086 = sand.u32 %s619, 1
          %s3087 = scalar_lea.vmem [#allocation6], %s3086
          %3088 = dma.done %s3085, 16
        $region144: #{tpu_custom_call.1} parent=131 // pred_fallthru
          _
      $region132: #{tpu_custom_call.1} parent=5 // pred_fallthru
        _
    $region6: #{tpu_custom_call.1} parent=1 // loop_footer
      %s43 = sadd.s32 1, %s39
    $region7: #{tpu_custom_call.1} parent=1 // loop_footer_branch
      %38 = sbr.rel target = $region3
    $region8: #{tpu_custom_call.1} parent=1 // loop_exit
      _
    %3089 = vsyncpa [#allocation3], 1
    %s3090 = scalar_lea.sflag [#allocation3], 1
    %3091 = vsyncpa %s3090, 1
    %3092 = vsyncpa [#allocation5], 1
    %s3093 = scalar_lea.sflag [#allocation5], 1
    %3094 = vsyncpa %s3093, 1

</llo_original>
